<compile_context>
chip_gen: v6e
topology: v6e:2x2x1
jax: 0.10.0
libtpu: 0.0.40
codegen_flags: <defaults>
</compile_context>

<pallas_src>
import jax
import jax.numpy as jnp
from jax.experimental import pallas as pl
from jax.experimental.pallas import tpu as pltpu

NEG_SLOPE = 0.01

# logical (PyTorch) dims
D_IN, D_HID, D_LAT, D_OUT = 1000, 500, 50, 1000
# lane-padded dims (multiples of 128)
D_IN_P, D_HID_P, D_LAT_P, D_OUT_P = 1024, 512, 128, 1024


def _round_up(n, m):
    return (n + m - 1) // m * m


def _leaky_relu(x):
    return jnp.where(x > 0, x, NEG_SLOPE * x)


# ---------------------------------------------------------------------------
# Kernel: one batch tile through all four Linear layers
# ---------------------------------------------------------------------------
def autoencoder_kernel(x_ref,
                       w1_ref, b1_ref,
                       w2_ref, b2_ref,
                       w3_ref, b3_ref,
                       w4_ref, b4_ref,
                       o_ref):
    bf16 = jnp.bfloat16
    x = x_ref[...]                                                    # (TM, 1024) bf16

    # ---- encoder: Linear -> Dropout(identity, eval) -> LeakyReLU -> Linear ----
    h = jnp.dot(x, w1_ref[...], preferred_element_type=jnp.float32)   # (TM, 512) f32
    h = _leaky_relu(h + b1_ref[...])
    z = jnp.dot(h.astype(bf16), w2_ref[...],
                preferred_element_type=jnp.float32)                    # (TM, 128) f32
    z = z + b2_ref[...]

    # ---- decoder: Linear -> Dropout(identity, eval) -> LeakyReLU -> Linear ----
    d = jnp.dot(z.astype(bf16), w3_ref[...],
                preferred_element_type=jnp.float32)                    # (TM, 512) f32
    d = _leaky_relu(d + b3_ref[...])
    y = jnp.dot(d.astype(bf16), w4_ref[...],
                preferred_element_type=jnp.float32)                    # (TM, 1024) f32
    y = y + b4_ref[...]

    o_ref[...] = y.astype(o_ref.dtype)    # bf16 store -> half the output HBM traffic


# ---------------------------------------------------------------------------
# Host-side wrapper
# ---------------------------------------------------------------------------
def pack_params(params):
    """Zero-pad feature dims to lane multiples; weights -> bf16, biases -> f32."""
    def pad_to(a, shape):
        return jnp.pad(a, [(0, s - d) for d, s in zip(a.shape, shape)])

    return {
        "w1": pad_to(params["w1"], (D_IN_P, D_HID_P)).astype(jnp.bfloat16),
        "b1": pad_to(params["b1"], (1, D_HID_P)).astype(jnp.float32),
        "w2": pad_to(params["w2"], (D_HID_P, D_LAT_P)).astype(jnp.bfloat16),
        "b2": pad_to(params["b2"], (1, D_LAT_P)).astype(jnp.float32),
        "w3": pad_to(params["w3"], (D_LAT_P, D_HID_P)).astype(jnp.bfloat16),
        "b3": pad_to(params["b3"], (1, D_HID_P)).astype(jnp.float32),
        "w4": pad_to(params["w4"], (D_HID_P, D_OUT_P)).astype(jnp.bfloat16),
        "b4": pad_to(params["b4"], (1, D_OUT_P)).astype(jnp.float32),
    }


def _pick_tile(B, max_tile):
    """Batch tile: multiple of 16 (bf16 sublane packing), minimize padding."""
    b16 = _round_up(max(B, 1), 16)
    if b16 <= max_tile:
        return b16                      # single tile, padding only to 16 rows
    best_tm, best_pad = 128, None
    for tm in (128, 256, 512):          # multiples of 128 -> MXU-aligned rows
        if tm > max_tile:
            continue
        pad = _round_up(B, tm) - B
        if best_pad is None or pad < best_pad or (pad == best_pad and tm > best_tm):
            best_tm, best_pad = tm, pad
    return best_tm


def autoencoder_forward(x, packed, *, max_tile_m=512):
    """x: (B, 1000) float32.  packed: output of pack_params(...).  Returns (B, 1000) bf16."""
    B, d_in = x.shape
    assert d_in == D_IN, d_in

    tm = _pick_tile(B, max_tile_m)
    b_pad = _round_up(B, tm)
    grid = (b_pad // tm,)

    # single-pass pad of the bf16-cast input; padded rows/cols are exactly zero
    x_p = jnp.pad(x.astype(jnp.bfloat16),
                  ((0, b_pad - B), (0, D_IN_P - D_IN)))

    w1, b1 = packed["w1"], packed["b1"]
    w2, b2 = packed["w2"], packed["b2"]
    w3, b3 = packed["w3"], packed["b3"]
    w4, b4 = packed["w4"], packed["b4"]

    def resident(shape):
        # same block every grid step -> VMEM-resident; single-buffered to save VMEM
        return pl.BlockSpec(shape, lambda i: (0, 0), pipeline_mode=pl.Buffered(1))

    flops = 2 * b_pad * (D_IN_P * D_HID_P + D_HID_P * D_LAT_P
                         + D_LAT_P * D_HID_P + D_HID_P * D_OUT_P)
    weight_bytes = sum(int(a.size) * a.dtype.itemsize
                       for a in (w1, b1, w2, b2, w3, b3, w4, b4))
    bytes_accessed = int(x_p.size) * 2 + weight_bytes + b_pad * D_OUT_P * 2

    out = pl.pallas_call(
        autoencoder_kernel,
        out_shape=jax.ShapeDtypeStruct((b_pad, D_OUT_P), jnp.bfloat16),
        grid_spec=pltpu.PrefetchScalarGridSpec(
            num_scalar_prefetch=0,
            grid=grid,
            in_specs=[
                pl.BlockSpec((tm, D_IN_P), lambda i: (i, 0)),
                resident(w1.shape), resident(b1.shape),
                resident(w2.shape), resident(b2.shape),
                resident(w3.shape), resident(b3.shape),
                resident(w4.shape), resident(b4.shape),
            ],
            out_specs=pl.BlockSpec((tm, D_OUT_P), lambda i: (i, 0)),
        ),
        compiler_params=pltpu.CompilerParams(
            dimension_semantics=("parallel",),
            vmem_limit_bytes=32 << 20,        # fits tm=512 comfortably, v7x-safe
        ),
        cost_estimate=pl.CostEstimate(
            flops=flops, transcendentals=0, bytes_accessed=bytes_accessed),
    )(x_p, w1, b1, w2, b2, w3, b3, w4, b4)

    # bf16 slice (cheap); consumers wanting f32 can upcast once themselves
    return out[:B, :D_OUT]


# ---------------------------------------------------------------------------
# Params + pure-JAX reference (same bf16-operand / f32-accumulate numerics)
# ---------------------------------------------------------------------------
def init_params(key):
    """Deterministic init mimicking nn.Linear's uniform(-1/sqrt(fan_in), +)."""
    dims = [(D_IN, D_HID), (D_HID, D_LAT), (D_LAT, D_HID), (D_HID, D_OUT)]
    params = {}
    for i, (fan_in, fan_out) in enumerate(dims, start=1):
        key, kw, kb = jax.random.split(key, 3)
        bound = 1.0 / jnp.sqrt(fan_in)
        # stored as (in, out) = torch weight transposed
        params[f"w{i}"] = jax.random.uniform(
            kw, (fan_in, fan_out), jnp.float32, -bound, bound)
        params[f"b{i}"] = jax.random.uniform(
            kb, (1, fan_out), jnp.float32, -bound, bound)
    return params


def reference_forward(x, params):
    bf16 = jnp.bfloat16
    def dot(a, w):
        return jnp.dot(a.astype(bf16), w.astype(bf16),
                       preferred_element_type=jnp.float32)
    h = _leaky_relu(dot(x, params["w1"]) + params["b1"])
    z = dot(h, params["w2"]) + params["b2"]
    d = _leaky_relu(dot(z, params["w3"]) + params["b3"])
    return dot(d, params["w4"]) + params["b4"]


if __name__ == "__main__":
    key = jax.random.PRNGKey(0)
    kx, kp = jax.random.split(key)

    B = 8
    x = jax.random.normal(kx, (B, D_IN), dtype=jnp.float32)
    params = init_params(kp)
    packed = pack_params(params)

    out = autoencoder_forward(x, packed)
    out = jax.block_until_ready(out)

    ref = reference_forward(x, params).astype(jnp.bfloat16)
    assert out.shape == (B, D_OUT), out.shape
    assert jnp.allclose(out.astype(jnp.float32), ref.astype(jnp.float32),
                        atol=2e-2, rtol=2e-2), (
        "mismatch vs reference, max abs diff = %s"
        % float(jnp.max(jnp.abs(out.astype(jnp.float32) - ref.astype(jnp.float32)))))

    print("KERNEL_OK")
</pallas_src>

<mosaic_0001>
module attributes {stable_mosaic.version = 11 : i64} {
  func.func @autoencoder_kernel(%arg0: i32, %arg1: memref<16x1024xbf16, #tpu.memory_space<vmem>>, %arg2: memref<1024x512xbf16, #tpu.memory_space<vmem>>, %arg3: memref<1x512xf32, #tpu.memory_space<vmem>>, %arg4: memref<512x128xbf16, #tpu.memory_space<vmem>>, %arg5: memref<1x128xf32, #tpu.memory_space<vmem>>, %arg6: memref<128x512xbf16, #tpu.memory_space<vmem>>, %arg7: memref<1x512xf32, #tpu.memory_space<vmem>>, %arg8: memref<512x1024xbf16, #tpu.memory_space<vmem>>, %arg9: memref<1x1024xf32, #tpu.memory_space<vmem>>, %arg10: memref<16x1024xbf16, #tpu.memory_space<vmem>>) attributes {dimension_semantics = [#tpu.dimension_semantics<parallel>], iteration_bounds = array<i64: 1>, scalar_prefetch = 0 : i64, scratch_operands = 0 : i64, tpu.core_type = #tpu.core_type<tc>, window_params = [{transform_indices = @transform_0, window_bounds = array<i64: 16, 1024>}, {pipeline_mode = #tpu.pipeline_mode<synchronous>, transform_indices = @transform_1, window_bounds = array<i64: 1024, 512>}, {pipeline_mode = #tpu.pipeline_mode<synchronous>, transform_indices = @transform_2, window_bounds = array<i64: 1, 512>}, {pipeline_mode = #tpu.pipeline_mode<synchronous>, transform_indices = @transform_3, window_bounds = array<i64: 512, 128>}, {pipeline_mode = #tpu.pipeline_mode<synchronous>, transform_indices = @transform_4, window_bounds = array<i64: 1, 128>}, {pipeline_mode = #tpu.pipeline_mode<synchronous>, transform_indices = @transform_5, window_bounds = array<i64: 128, 512>}, {pipeline_mode = #tpu.pipeline_mode<synchronous>, transform_indices = @transform_6, window_bounds = array<i64: 1, 512>}, {pipeline_mode = #tpu.pipeline_mode<synchronous>, transform_indices = @transform_7, window_bounds = array<i64: 512, 1024>}, {pipeline_mode = #tpu.pipeline_mode<synchronous>, transform_indices = @transform_8, window_bounds = array<i64: 1, 1024>}, {transform_indices = @transform_9, window_bounds = array<i64: 16, 1024>}]} {
    %c0 = arith.constant 0 : index
    %c0_0 = arith.constant 0 : index
    %0 = vector.load %arg1[%c0, %c0_0] : memref<16x1024xbf16, #tpu.memory_space<vmem>>, vector<16x1024xbf16>
    %c0_1 = arith.constant 0 : index
    %c0_2 = arith.constant 0 : index
    %1 = vector.load %arg2[%c0_1, %c0_2] : memref<1024x512xbf16, #tpu.memory_space<vmem>>, vector<1024x512xbf16>
    %cst = arith.constant dense<0.000000e+00> : vector<16x512xf32>
    %2 = tpu.matmul %0, %1, %cst {dimension_numbers = #tpu.dot_dimension_numbers<[1], [0], [0], [1], [0, 0, 1, 1], [], []>} : vector<16x1024xbf16>, vector<1024x512xbf16>, vector<16x512xf32> -> vector<16x512xf32>
    %c0_3 = arith.constant 0 : index
    %c0_4 = arith.constant 0 : index
    %3 = vector.load %arg3[%c0_3, %c0_4] : memref<1x512xf32, #tpu.memory_space<vmem>>, vector<1x512xf32>
    %4 = vector.broadcast %3 : vector<1x512xf32> to vector<16x512xf32>
    %5 = arith.addf %2, %4 : vector<16x512xf32>
    %cst_5 = arith.constant 0.000000e+00 : f32
    %6 = vector.broadcast %cst_5 : f32 to vector<16x512xf32>
    %7 = arith.cmpf ogt, %5, %6 : vector<16x512xf32>
    %cst_6 = arith.constant 0.00999999977 : f32
    %8 = vector.broadcast %cst_6 : f32 to vector<16x512xf32>
    %9 = arith.mulf %8, %5 : vector<16x512xf32>
    %10 = arith.select %7, %5, %9 : vector<16x512xi1>, vector<16x512xf32>
    %11 = arith.truncf %10 : vector<16x512xf32> to vector<16x512xbf16>
    %c0_7 = arith.constant 0 : index
    %c0_8 = arith.constant 0 : index
    %12 = vector.load %arg4[%c0_7, %c0_8] : memref<512x128xbf16, #tpu.memory_space<vmem>>, vector<512x128xbf16>
    %cst_9 = arith.constant dense<0.000000e+00> : vector<16x128xf32>
    %13 = tpu.matmul %11, %12, %cst_9 {dimension_numbers = #tpu.dot_dimension_numbers<[1], [0], [0], [1], [0, 0, 1, 1], [], []>} : vector<16x512xbf16>, vector<512x128xbf16>, vector<16x128xf32> -> vector<16x128xf32>
    %c0_10 = arith.constant 0 : index
    %c0_11 = arith.constant 0 : index
    %14 = vector.load %arg5[%c0_10, %c0_11] : memref<1x128xf32, #tpu.memory_space<vmem>>, vector<1x128xf32>
    %15 = vector.broadcast %14 : vector<1x128xf32> to vector<16x128xf32>
    %16 = arith.addf %13, %15 : vector<16x128xf32>
    %17 = arith.truncf %16 : vector<16x128xf32> to vector<16x128xbf16>
    %c0_12 = arith.constant 0 : index
    %c0_13 = arith.constant 0 : index
    %18 = vector.load %arg6[%c0_12, %c0_13] : memref<128x512xbf16, #tpu.memory_space<vmem>>, vector<128x512xbf16>
    %cst_14 = arith.constant dense<0.000000e+00> : vector<16x512xf32>
    %19 = tpu.matmul %17, %18, %cst_14 {dimension_numbers = #tpu.dot_dimension_numbers<[1], [0], [0], [1], [0, 0, 1, 1], [], []>} : vector<16x128xbf16>, vector<128x512xbf16>, vector<16x512xf32> -> vector<16x512xf32>
    %c0_15 = arith.constant 0 : index
    %c0_16 = arith.constant 0 : index
    %20 = vector.load %arg7[%c0_15, %c0_16] : memref<1x512xf32, #tpu.memory_space<vmem>>, vector<1x512xf32>
    %21 = vector.broadcast %20 : vector<1x512xf32> to vector<16x512xf32>
    %22 = arith.addf %19, %21 : vector<16x512xf32>
    %cst_17 = arith.constant 0.000000e+00 : f32
    %23 = vector.broadcast %cst_17 : f32 to vector<16x512xf32>
    %24 = arith.cmpf ogt, %22, %23 : vector<16x512xf32>
    %cst_18 = arith.constant 0.00999999977 : f32
    %25 = vector.broadcast %cst_18 : f32 to vector<16x512xf32>
    %26 = arith.mulf %25, %22 : vector<16x512xf32>
    %27 = arith.select %24, %22, %26 : vector<16x512xi1>, vector<16x512xf32>
    %28 = arith.truncf %27 : vector<16x512xf32> to vector<16x512xbf16>
    %c0_19 = arith.constant 0 : index
    %c0_20 = arith.constant 0 : index
    %29 = vector.load %arg8[%c0_19, %c0_20] : memref<512x1024xbf16, #tpu.memory_space<vmem>>, vector<512x1024xbf16>
    %cst_21 = arith.constant dense<0.000000e+00> : vector<16x1024xf32>
    %30 = tpu.matmul %28, %29, %cst_21 {dimension_numbers = #tpu.dot_dimension_numbers<[1], [0], [0], [1], [0, 0, 1, 1], [], []>} : vector<16x512xbf16>, vector<512x1024xbf16>, vector<16x1024xf32> -> vector<16x1024xf32>
    %c0_22 = arith.constant 0 : index
    %c0_23 = arith.constant 0 : index
    %31 = vector.load %arg9[%c0_22, %c0_23] : memref<1x1024xf32, #tpu.memory_space<vmem>>, vector<1x1024xf32>
    %32 = vector.broadcast %31 : vector<1x1024xf32> to vector<16x1024xf32>
    %33 = arith.addf %30, %32 : vector<16x1024xf32>
    %34 = arith.truncf %33 : vector<16x1024xf32> to vector<16x1024xbf16>
    %c0_24 = arith.constant 0 : index
    %c0_25 = arith.constant 0 : index
    %35 = vector.load %arg10[%c0_24, %c0_25] : memref<16x1024xbf16, #tpu.memory_space<vmem>>, vector<16x1024xbf16>
    tpu.vector_store %arg10[%c0_24, %c0_25], %34 {strides = array<i32>} : memref<16x1024xbf16, #tpu.memory_space<vmem>>, vector<16x1024xbf16>,
    return
  }
  func.func @transform_0(%arg0: i32) -> (i32, i32) {
    %c0_i32 = arith.constant 0 : i32
    %c0_i32_0 = arith.constant 0 : i32
    return %arg0, %c0_i32 : i32, i32
  }
  func.func @transform_1(%arg0: i32) -> (i32, i32) {
    %c0_i32 = arith.constant 0 : i32
    %c0_i32_0 = arith.constant 0 : i32
    %c0_i32_1 = arith.constant 0 : i32
    return %c0_i32, %c0_i32_0 : i32, i32
  }
  func.func @transform_2(%arg0: i32) -> (i32, i32) {
    %c0_i32 = arith.constant 0 : i32
    %c0_i32_0 = arith.constant 0 : i32
    %c0_i32_1 = arith.constant 0 : i32
    return %c0_i32, %c0_i32_0 : i32, i32
  }
  func.func @transform_3(%arg0: i32) -> (i32, i32) {
    %c0_i32 = arith.constant 0 : i32
    %c0_i32_0 = arith.constant 0 : i32
    %c0_i32_1 = arith.constant 0 : i32
    return %c0_i32, %c0_i32_0 : i32, i32
  }
  func.func @transform_4(%arg0: i32) -> (i32, i32) {
    %c0_i32 = arith.constant 0 : i32
    %c0_i32_0 = arith.constant 0 : i32
    %c0_i32_1 = arith.constant 0 : i32
    return %c0_i32, %c0_i32_0 : i32, i32
  }
  func.func @transform_5(%arg0: i32) -> (i32, i32) {
    %c0_i32 = arith.constant 0 : i32
    %c0_i32_0 = arith.constant 0 : i32
    %c0_i32_1 = arith.constant 0 : i32
    return %c0_i32, %c0_i32_0 : i32, i32
  }
  func.func @transform_6(%arg0: i32) -> (i32, i32) {
    %c0_i32 = arith.constant 0 : i32
    %c0_i32_0 = arith.constant 0 : i32
    %c0_i32_1 = arith.constant 0 : i32
    return %c0_i32, %c0_i32_0 : i32, i32
  }
  func.func @transform_7(%arg0: i32) -> (i32, i32) {
    %c0_i32 = arith.constant 0 : i32
    %c0_i32_0 = arith.constant 0 : i32
    %c0_i32_1 = arith.constant 0 : i32
    return %c0_i32, %c0_i32_0 : i32, i32
  }
  func.func @transform_8(%arg0: i32) -> (i32, i32) {
    %c0_i32 = arith.constant 0 : i32
    %c0_i32_0 = arith.constant 0 : i32
    %c0_i32_1 = arith.constant 0 : i32
    return %c0_i32, %c0_i32_0 : i32, i32
  }
  func.func @transform_9(%arg0: i32) -> (i32, i32) {
    %c0_i32 = arith.constant 0 : i32
    %c0_i32_0 = arith.constant 0 : i32
    return %arg0, %c0_i32 : i32, i32
  }
}

</mosaic_0001>

<llo_original>
// kernel: tpu_custom_call.1
$region0: #{tpu_custom_call.1}
  #allocation0 [shape = 'u32[]', space=smem, size = 0x4, offset = 0x4, fixed_abs, tag = 'smem constant byte address 0x4 - core index']
  #allocation1 [shape = 'u32[144,128]{1,0:T(1,128)}', space=vmem, size = 0x12000, scoped, tag = 'internal scratch']
  %s0 = inlined_call_operand.hbm [shape: bf16[16,1024], index: 0, kind: input, shape index: {}]
  %s1 = inlined_call_operand.hbm [shape: bf16[1024,512], index: 1, kind: input, shape index: {}]
  %s2 = inlined_call_operand.hbm [shape: f32[1,512], index: 2, kind: input, shape index: {}]
  %s3 = inlined_call_operand.hbm [shape: bf16[512,128], index: 3, kind: input, shape index: {}]
  %s4 = inlined_call_operand.vmem [shape: f32[1,128], index: 4, kind: input, shape index: {}]
  %s5 = inlined_call_operand.hbm [shape: bf16[128,512], index: 5, kind: input, shape index: {}]
  %s6 = inlined_call_operand.vmem [shape: f32[1,512], index: 6, kind: input, shape index: {}]
  %s7 = inlined_call_operand.hbm [shape: bf16[512,1024], index: 7, kind: input, shape index: {}]
  %s8 = inlined_call_operand.vmem [shape: f32[1,1024], index: 8, kind: input, shape index: {}]
  %s9 = inlined_call_operand.hbm [shape: bf16[16,1024], index: 9, kind: output, shape index: {}]
  %s10 = sld [smem:[#allocation0]]
  $region70: #{tpu_custom_call.1} parent=0
    _
  %s12 = ssub.s32 1, %s10
  %s13 = scalar_select 0, %s12, %s10
  $region1: #{tpu_custom_call.1} parent=0
    #allocation2 [shape = 'u8[32768]{0}', space=vmem, size = 0x8000, scoped, tag = 'input window, operand 0, single buffered']
    #allocation3 [shape = 's32[1]{0}', space=sflag, size = 0x4, scoped, tag = 'scoped memory for tpu_custom_call.1']
    #allocation4 [shape = 's32[1]{0}', space=sflag, size = 0x4, scoped, tag = 'scoped memory for tpu_custom_call.1']
    #allocation5 [shape = 'u8[1048576]{0}', space=vmem, size = 0x100000, scoped, tag = 'input window, operand 1, single buffered']
    #allocation6 [shape = 's32[1]{0}', space=sflag, size = 0x4, scoped, tag = 'scoped memory for tpu_custom_call.1']
    #allocation7 [shape = 'u8[2048]{0}', space=vmem, size = 0x800, scoped, tag = 'input window, operand 2, single buffered']
    #allocation8 [shape = 'u8[131072]{0}', space=vmem, size = 0x20000, scoped, tag = 'input window, operand 3, single buffered']
    #allocation9 [shape = 's32[1]{0}', space=sflag, size = 0x4, scoped, tag = 'scoped memory for tpu_custom_call.1']
    #allocation10 [shape = 'u8[131072]{0}', space=vmem, size = 0x20000, scoped, tag = 'input window, operand 5, single buffered']
    #allocation11 [shape = 'u8[1048576]{0}', space=vmem, size = 0x100000, scoped, tag = 'input window, operand 7, single buffered']
    #allocation12 [shape = 's32[1]{0}', space=sflag, size = 0x4, scoped, tag = 'scoped memory for tpu_custom_call.1']
    #allocation13 [shape = 'u8[32768]{0}', space=vmem, size = 0x8000, scoped, tag = 'output window, operand 0, single buffered']
    %14 = vsyncpa [#allocation3], 0
    %15 = vsyncpa [#allocation6], 0
    %16 = vsyncpa [#allocation9], 0
    %17 = vsyncpa [#allocation12], 0
    %18 = vsyncpa [#allocation4], 0
    // Predicated region
    $region2: #{tpu_custom_call.1} parent=1 // pred_check
      _
    $region3: #{tpu_custom_call.1} parent=1 // pred_check_branch
      %20 = sbr.rel (0) target = $region5
    $region4: #{tpu_custom_call.1} parent=1 // pred_region
      %s22 = ssub.s32 1024, 1024
      %23 = vsyncadd [#allocation3], %s22
      %s24 = sshll.u32 [#allocation2], 4
      %s25 = int_to_ptr.vmem [resolvable:$true] %s24
      %30 = dma.hbm_to_vmem [thread:$0]  %s0, 1024, %s25, [#allocation3], 512, 512, 32
    $region5: #{tpu_custom_call.1} parent=1 // pred_fallthru
      _
    // Predicated region
    $region6: #{tpu_custom_call.1} parent=1 // pred_check
      _
    $region7: #{tpu_custom_call.1} parent=1 // pred_check_branch
      %32 = sbr.rel (0) target = $region9
    $region8: #{tpu_custom_call.1} parent=1 // pred_region
      %s34 = ssub.s32 32768, 32768
      %35 = vsyncadd [#allocation6], %s34
      %s36 = sshll.u32 [#allocation5], 4
      %s37 = int_to_ptr.vmem [resolvable:$true] %s36
      %42 = dma.hbm_to_vmem [thread:$0]  %s1, 32768, %s37, [#allocation6], 256, 256, 16
    $region9: #{tpu_custom_call.1} parent=1 // pred_fallthru
      _
    // Predicated region
    $region10: #{tpu_custom_call.1} parent=1 // pred_check
      _
    $region11: #{tpu_custom_call.1} parent=1 // pred_check_branch
      %44 = sbr.rel (0) target = $region13
    $region12: #{tpu_custom_call.1} parent=1 // pred_region
      %s46 = ssub.s32 64, 64
      %47 = vsyncadd [#allocation6], %s46
      %s49 = sshll.u32 [#allocation7], 4
      %s50 = int_to_ptr.vmem [resolvable:$true] %s49
      %52 = dma.hbm_to_vmem [thread:$0]  %s2, 64, %s50, [#allocation6]
    $region13: #{tpu_custom_call.1} parent=1 // pred_fallthru
      _
    // Predicated region
    $region14: #{tpu_custom_call.1} parent=1 // pred_check
      _
    $region15: #{tpu_custom_call.1} parent=1 // pred_check_branch
      %54 = sbr.rel (0) target = $region17
    $region16: #{tpu_custom_call.1} parent=1 // pred_region
      %s56 = ssub.s32 4096, 4096
      %57 = vsyncadd [#allocation9], %s56
      %s58 = sshll.u32 [#allocation8], 4
      %s59 = int_to_ptr.vmem [resolvable:$true] %s58
      %64 = dma.hbm_to_vmem [thread:$0]  %s3, 4096, %s59, [#allocation9], 64, 64, 4
    $region17: #{tpu_custom_call.1} parent=1 // pred_fallthru
      _
    // Predicated region
    $region18: #{tpu_custom_call.1} parent=1 // pred_check
      _
    $region19: #{tpu_custom_call.1} parent=1 // pred_check_branch
      %66 = sbr.rel (0) target = $region21
    $region20: #{tpu_custom_call.1} parent=1 // pred_region
      _
    $region21: #{tpu_custom_call.1} parent=1 // pred_fallthru
      _
    // Predicated region
    $region22: #{tpu_custom_call.1} parent=1 // pred_check
      _
    $region23: #{tpu_custom_call.1} parent=1 // pred_check_branch
      %68 = sbr.rel (0) target = $region25
    $region24: #{tpu_custom_call.1} parent=1 // pred_region
      %s70 = ssub.s32 4096, 4096
      %71 = vsyncadd [#allocation9], %s70
      %s72 = sshll.u32 [#allocation10], 4
      %s73 = int_to_ptr.vmem [resolvable:$true] %s72
      %78 = dma.hbm_to_vmem [thread:$0]  %s5, 4096, %s73, [#allocation9], 256, 256, 16
    $region25: #{tpu_custom_call.1} parent=1 // pred_fallthru
      _
    // Predicated region
    $region26: #{tpu_custom_call.1} parent=1 // pred_check
      _
    $region27: #{tpu_custom_call.1} parent=1 // pred_check_branch
      %80 = sbr.rel (0) target = $region29
    $region28: #{tpu_custom_call.1} parent=1 // pred_region
      _
    $region29: #{tpu_custom_call.1} parent=1 // pred_fallthru
      _
    // Predicated region
    $region30: #{tpu_custom_call.1} parent=1 // pred_check
      _
    $region31: #{tpu_custom_call.1} parent=1 // pred_check_branch
      %82 = sbr.rel (0) target = $region33
    $region32: #{tpu_custom_call.1} parent=1 // pred_region
      %s84 = ssub.s32 32768, 32768
      %85 = vsyncadd [#allocation12], %s84
      %s86 = sshll.u32 [#allocation11], 4
      %s87 = int_to_ptr.vmem [resolvable:$true] %s86
      %92 = dma.hbm_to_vmem [thread:$0]  %s7, 32768, %s87, [#allocation12], 512, 512, 32
    $region33: #{tpu_custom_call.1} parent=1 // pred_fallthru
      _
    // Predicated region
    $region34: #{tpu_custom_call.1} parent=1 // pred_check
      _
    $region35: #{tpu_custom_call.1} parent=1 // pred_check_branch
      %94 = sbr.rel (0) target = $region37
    $region36: #{tpu_custom_call.1} parent=1 // pred_region
      _
    $region37: #{tpu_custom_call.1} parent=1 // pred_fallthru
      _
    // Predicated region
    $region38: #{tpu_custom_call.1} parent=1 // pred_check
      _
    $region39: #{tpu_custom_call.1} parent=1 // pred_check_branch
      %96 = sbr.rel (0) target = $region41
    $region40: #{tpu_custom_call.1} parent=1 // pred_region
      %97 = dma.done [#allocation3], 1024
    $region41: #{tpu_custom_call.1} parent=1 // pred_fallthru
      _
    // Predicated region
    $region42: #{tpu_custom_call.1} parent=1 // pred_check
      _
    $region43: #{tpu_custom_call.1} parent=1 // pred_check_branch
      %99 = sbr.rel (0) target = $region45
    $region44: #{tpu_custom_call.1} parent=1 // pred_region
      %100 = dma.done [#allocation6], 32768
    $region45: #{tpu_custom_call.1} parent=1 // pred_fallthru
      _
    // Predicated region
    $region46: #{tpu_custom_call.1} parent=1 // pred_check
      _
    $region47: #{tpu_custom_call.1} parent=1 // pred_check_branch
      %102 = sbr.rel (0) target = $region49
    $region48: #{tpu_custom_call.1} parent=1 // pred_region
      %103 = dma.done [#allocation6], 64
    $region49: #{tpu_custom_call.1} parent=1 // pred_fallthru
      _
    // Predicated region
    $region50: #{tpu_custom_call.1} parent=1 // pred_check
      _
    $region51: #{tpu_custom_call.1} parent=1 // pred_check_branch
      %105 = sbr.rel (0) target = $region53
    $region52: #{tpu_custom_call.1} parent=1 // pred_region
      %106 = dma.done [#allocation9], 4096
    $region53: #{tpu_custom_call.1} parent=1 // pred_fallthru
      _
    // Predicated region
    $region54: #{tpu_custom_call.1} parent=1 // pred_check
      _
    $region55: #{tpu_custom_call.1} parent=1 // pred_check_branch
      %108 = sbr.rel (0) target = $region57
    $region56: #{tpu_custom_call.1} parent=1 // pred_region
      %109 = dma.done [#allocation9], 4096
    $region57: #{tpu_custom_call.1} parent=1 // pred_fallthru
      _
    // Predicated region
    $region58: #{tpu_custom_call.1} parent=1 // pred_check
      _
    $region59: #{tpu_custom_call.1} parent=1 // pred_check_branch
      %111 = sbr.rel (0) target = $region61
    $region60: #{tpu_custom_call.1} parent=1 // pred_region
      %112 = dma.done [#allocation12], 32768
    $region61: #{tpu_custom_call.1} parent=1 // pred_fallthru
      _
    %v114 = vld [vmem:[#allocation2] sm:$0xff]
    %v115 = vld [vmem:[#allocation2 + $0x8] sm:$0xff]
    %v116 = vld [vmem:[#allocation2 + $0x10] sm:$0xff]
    %v117 = vld [vmem:[#allocation2 + $0x18] sm:$0xff]
    %v118 = vld [vmem:[#allocation2 + $0x20] sm:$0xff]
    %v119 = vld [vmem:[#allocation2 + $0x28] sm:$0xff]
    %v120 = vld [vmem:[#allocation2 + $0x30] sm:$0xff]
    %v121 = vld [vmem:[#allocation2 + $0x38] sm:$0xff]
    %v122 = vld [vmem:[#allocation5] sm:$0xff]
    %v123 = vld [vmem:[#allocation5 + $0x8] sm:$0xff]
    %v124 = vld [vmem:[#allocation5 + $0x10] sm:$0xff]
    %v125 = vld [vmem:[#allocation5 + $0x18] sm:$0xff]
    %v126 = vld [vmem:[#allocation5 + $0x20] sm:$0xff]
    %v127 = vld [vmem:[#allocation5 + $0x28] sm:$0xff]
    %v128 = vld [vmem:[#allocation5 + $0x30] sm:$0xff]
    %v129 = vld [vmem:[#allocation5 + $0x38] sm:$0xff]
    %v130 = vld [vmem:[#allocation5 + $0x40] sm:$0xff]
    %v131 = vld [vmem:[#allocation5 + $0x48] sm:$0xff]
    %v132 = vld [vmem:[#allocation5 + $0x50] sm:$0xff]
    %v133 = vld [vmem:[#allocation5 + $0x58] sm:$0xff]
    %v134 = vld [vmem:[#allocation5 + $0x60] sm:$0xff]
    %v135 = vld [vmem:[#allocation5 + $0x68] sm:$0xff]
    %v136 = vld [vmem:[#allocation5 + $0x70] sm:$0xff]
    %v137 = vld [vmem:[#allocation5 + $0x78] sm:$0xff]
    %v138 = vld [vmem:[#allocation5 + $0x80] sm:$0xff]
    %v139 = vld [vmem:[#allocation5 + $0x88] sm:$0xff]
    %v140 = vld [vmem:[#allocation5 + $0x90] sm:$0xff]
    %v141 = vld [vmem:[#allocation5 + $0x98] sm:$0xff]
    %v142 = vld [vmem:[#allocation5 + $0xa0] sm:$0xff]
    %v143 = vld [vmem:[#allocation5 + $0xa8] sm:$0xff]
    %v144 = vld [vmem:[#allocation5 + $0xb0] sm:$0xff]
    %v145 = vld [vmem:[#allocation5 + $0xb8] sm:$0xff]
    %v146 = vld [vmem:[#allocation5 + $0xc0] sm:$0xff]
    %v147 = vld [vmem:[#allocation5 + $0xc8] sm:$0xff]
    %v148 = vld [vmem:[#allocation5 + $0xd0] sm:$0xff]
    %v149 = vld [vmem:[#allocation5 + $0xd8] sm:$0xff]
    %v150 = vld [vmem:[#allocation5 + $0xe0] sm:$0xff]
    %v151 = vld [vmem:[#allocation5 + $0xe8] sm:$0xff]
    %v152 = vld [vmem:[#allocation5 + $0xf0] sm:$0xff]
    %v153 = vld [vmem:[#allocation5 + $0xf8] sm:$0xff]
    %v154 = vld [vmem:[#allocation5 + $0x100] sm:$0xff]
    %v155 = vld [vmem:[#allocation5 + $0x108] sm:$0xff]
    %v156 = vld [vmem:[#allocation5 + $0x110] sm:$0xff]
    %v157 = vld [vmem:[#allocation5 + $0x118] sm:$0xff]
    %v158 = vld [vmem:[#allocation5 + $0x120] sm:$0xff]
    %v159 = vld [vmem:[#allocation5 + $0x128] sm:$0xff]
    %v160 = vld [vmem:[#allocation5 + $0x130] sm:$0xff]
    %v161 = vld [vmem:[#allocation5 + $0x138] sm:$0xff]
    %v162 = vld [vmem:[#allocation5 + $0x140] sm:$0xff]
    %v163 = vld [vmem:[#allocation5 + $0x148] sm:$0xff]
    %v164 = vld [vmem:[#allocation5 + $0x150] sm:$0xff]
    %v165 = vld [vmem:[#allocation5 + $0x158] sm:$0xff]
    %v166 = vld [vmem:[#allocation5 + $0x160] sm:$0xff]
    %v167 = vld [vmem:[#allocation5 + $0x168] sm:$0xff]
    %v168 = vld [vmem:[#allocation5 + $0x170] sm:$0xff]
    %v169 = vld [vmem:[#allocation5 + $0x178] sm:$0xff]
    %v170 = vld [vmem:[#allocation5 + $0x180] sm:$0xff]
    %v171 = vld [vmem:[#allocation5 + $0x188] sm:$0xff]
    %v172 = vld [vmem:[#allocation5 + $0x190] sm:$0xff]
    %v173 = vld [vmem:[#allocation5 + $0x198] sm:$0xff]
    %v174 = vld [vmem:[#allocation5 + $0x1a0] sm:$0xff]
    %v175 = vld [vmem:[#allocation5 + $0x1a8] sm:$0xff]
    %v176 = vld [vmem:[#allocation5 + $0x1b0] sm:$0xff]
    %v177 = vld [vmem:[#allocation5 + $0x1b8] sm:$0xff]
    %v178 = vld [vmem:[#allocation5 + $0x1c0] sm:$0xff]
    %v179 = vld [vmem:[#allocation5 + $0x1c8] sm:$0xff]
    %v180 = vld [vmem:[#allocation5 + $0x1d0] sm:$0xff]
    %v181 = vld [vmem:[#allocation5 + $0x1d8] sm:$0xff]
    %v182 = vld [vmem:[#allocation5 + $0x1e0] sm:$0xff]
    %v183 = vld [vmem:[#allocation5 + $0x1e8] sm:$0xff]
    %v184 = vld [vmem:[#allocation5 + $0x1f0] sm:$0xff]
    %v185 = vld [vmem:[#allocation5 + $0x1f8] sm:$0xff]
    %v186 = vld [vmem:[#allocation5 + $0x200] sm:$0xff]
    %v187 = vld [vmem:[#allocation5 + $0x208] sm:$0xff]
    %v188 = vld [vmem:[#allocation5 + $0x210] sm:$0xff]
    %v189 = vld [vmem:[#allocation5 + $0x218] sm:$0xff]
    %v190 = vld [vmem:[#allocation5 + $0x220] sm:$0xff]
    %v191 = vld [vmem:[#allocation5 + $0x228] sm:$0xff]
    %v192 = vld [vmem:[#allocation5 + $0x230] sm:$0xff]
    %v193 = vld [vmem:[#allocation5 + $0x238] sm:$0xff]
    %v194 = vld [vmem:[#allocation5 + $0x240] sm:$0xff]
    %v195 = vld [vmem:[#allocation5 + $0x248] sm:$0xff]
    %v196 = vld [vmem:[#allocation5 + $0x250] sm:$0xff]
    %v197 = vld [vmem:[#allocation5 + $0x258] sm:$0xff]
    %v198 = vld [vmem:[#allocation5 + $0x260] sm:$0xff]
    %v199 = vld [vmem:[#allocation5 + $0x268] sm:$0xff]
    %v200 = vld [vmem:[#allocation5 + $0x270] sm:$0xff]
    %v201 = vld [vmem:[#allocation5 + $0x278] sm:$0xff]
    %v202 = vld [vmem:[#allocation5 + $0x280] sm:$0xff]
    %v203 = vld [vmem:[#allocation5 + $0x288] sm:$0xff]
    %v204 = vld [vmem:[#allocation5 + $0x290] sm:$0xff]
    %v205 = vld [vmem:[#allocation5 + $0x298] sm:$0xff]
    %v206 = vld [vmem:[#allocation5 + $0x2a0] sm:$0xff]
    %v207 = vld [vmem:[#allocation5 + $0x2a8] sm:$0xff]
    %v208 = vld [vmem:[#allocation5 + $0x2b0] sm:$0xff]
    %v209 = vld [vmem:[#allocation5 + $0x2b8] sm:$0xff]
    %v210 = vld [vmem:[#allocation5 + $0x2c0] sm:$0xff]
    %v211 = vld [vmem:[#allocation5 + $0x2c8] sm:$0xff]
    %v212 = vld [vmem:[#allocation5 + $0x2d0] sm:$0xff]
    %v213 = vld [vmem:[#allocation5 + $0x2d8] sm:$0xff]
    %v214 = vld [vmem:[#allocation5 + $0x2e0] sm:$0xff]
    %v215 = vld [vmem:[#allocation5 + $0x2e8] sm:$0xff]
    %v216 = vld [vmem:[#allocation5 + $0x2f0] sm:$0xff]
    %v217 = vld [vmem:[#allocation5 + $0x2f8] sm:$0xff]
    %v218 = vld [vmem:[#allocation5 + $0x300] sm:$0xff]
    %v219 = vld [vmem:[#allocation5 + $0x308] sm:$0xff]
    %v220 = vld [vmem:[#allocation5 + $0x310] sm:$0xff]
    %v221 = vld [vmem:[#allocation5 + $0x318] sm:$0xff]
    %v222 = vld [vmem:[#allocation5 + $0x320] sm:$0xff]
    %v223 = vld [vmem:[#allocation5 + $0x328] sm:$0xff]
    %v224 = vld [vmem:[#allocation5 + $0x330] sm:$0xff]
    %v225 = vld [vmem:[#allocation5 + $0x338] sm:$0xff]
    %v226 = vld [vmem:[#allocation5 + $0x340] sm:$0xff]
    %v227 = vld [vmem:[#allocation5 + $0x348] sm:$0xff]
    %v228 = vld [vmem:[#allocation5 + $0x350] sm:$0xff]
    %v229 = vld [vmem:[#allocation5 + $0x358] sm:$0xff]
    %v230 = vld [vmem:[#allocation5 + $0x360] sm:$0xff]
    %v231 = vld [vmem:[#allocation5 + $0x368] sm:$0xff]
    %v232 = vld [vmem:[#allocation5 + $0x370] sm:$0xff]
    %v233 = vld [vmem:[#allocation5 + $0x378] sm:$0xff]
    %v234 = vld [vmem:[#allocation5 + $0x380] sm:$0xff]
    %v235 = vld [vmem:[#allocation5 + $0x388] sm:$0xff]
    %v236 = vld [vmem:[#allocation5 + $0x390] sm:$0xff]
    %v237 = vld [vmem:[#allocation5 + $0x398] sm:$0xff]
    %v238 = vld [vmem:[#allocation5 + $0x3a0] sm:$0xff]
    %v239 = vld [vmem:[#allocation5 + $0x3a8] sm:$0xff]
    %v240 = vld [vmem:[#allocation5 + $0x3b0] sm:$0xff]
    %v241 = vld [vmem:[#allocation5 + $0x3b8] sm:$0xff]
    %v242 = vld [vmem:[#allocation5 + $0x3c0] sm:$0xff]
    %v243 = vld [vmem:[#allocation5 + $0x3c8] sm:$0xff]
    %v244 = vld [vmem:[#allocation5 + $0x3d0] sm:$0xff]
    %v245 = vld [vmem:[#allocation5 + $0x3d8] sm:$0xff]
    %v246 = vld [vmem:[#allocation5 + $0x3e0] sm:$0xff]
    %v247 = vld [vmem:[#allocation5 + $0x3e8] sm:$0xff]
    %v248 = vld [vmem:[#allocation5 + $0x3f0] sm:$0xff]
    %v249 = vld [vmem:[#allocation5 + $0x3f8] sm:$0xff]
    %v250 = vld [vmem:[#allocation5 + $0x400] sm:$0xff]
    %v251 = vld [vmem:[#allocation5 + $0x408] sm:$0xff]
    %v252 = vld [vmem:[#allocation5 + $0x410] sm:$0xff]
    %v253 = vld [vmem:[#allocation5 + $0x418] sm:$0xff]
    %v254 = vld [vmem:[#allocation5 + $0x420] sm:$0xff]
    %v255 = vld [vmem:[#allocation5 + $0x428] sm:$0xff]
    %v256 = vld [vmem:[#allocation5 + $0x430] sm:$0xff]
    %v257 = vld [vmem:[#allocation5 + $0x438] sm:$0xff]
    %v258 = vld [vmem:[#allocation5 + $0x440] sm:$0xff]
    %v259 = vld [vmem:[#allocation5 + $0x448] sm:$0xff]
    %v260 = vld [vmem:[#allocation5 + $0x450] sm:$0xff]
    %v261 = vld [vmem:[#allocation5 + $0x458] sm:$0xff]
    %v262 = vld [vmem:[#allocation5 + $0x460] sm:$0xff]
    %v263 = vld [vmem:[#allocation5 + $0x468] sm:$0xff]
    %v264 = vld [vmem:[#allocation5 + $0x470] sm:$0xff]
    %v265 = vld [vmem:[#allocation5 + $0x478] sm:$0xff]
    %v266 = vld [vmem:[#allocation5 + $0x480] sm:$0xff]
    %v267 = vld [vmem:[#allocation5 + $0x488] sm:$0xff]
    %v268 = vld [vmem:[#allocation5 + $0x490] sm:$0xff]
    %v269 = vld [vmem:[#allocation5 + $0x498] sm:$0xff]
    %v270 = vld [vmem:[#allocation5 + $0x4a0] sm:$0xff]
    %v271 = vld [vmem:[#allocation5 + $0x4a8] sm:$0xff]
    %v272 = vld [vmem:[#allocation5 + $0x4b0] sm:$0xff]
    %v273 = vld [vmem:[#allocation5 + $0x4b8] sm:$0xff]
    %v274 = vld [vmem:[#allocation5 + $0x4c0] sm:$0xff]
    %v275 = vld [vmem:[#allocation5 + $0x4c8] sm:$0xff]
    %v276 = vld [vmem:[#allocation5 + $0x4d0] sm:$0xff]
    %v277 = vld [vmem:[#allocation5 + $0x4d8] sm:$0xff]
    %v278 = vld [vmem:[#allocation5 + $0x4e0] sm:$0xff]
    %v279 = vld [vmem:[#allocation5 + $0x4e8] sm:$0xff]
    %v280 = vld [vmem:[#allocation5 + $0x4f0] sm:$0xff]
    %v281 = vld [vmem:[#allocation5 + $0x4f8] sm:$0xff]
    %v282 = vld [vmem:[#allocation5 + $0x500] sm:$0xff]
    %v283 = vld [vmem:[#allocation5 + $0x508] sm:$0xff]
    %v284 = vld [vmem:[#allocation5 + $0x510] sm:$0xff]
    %v285 = vld [vmem:[#allocation5 + $0x518] sm:$0xff]
    %v286 = vld [vmem:[#allocation5 + $0x520] sm:$0xff]
    %v287 = vld [vmem:[#allocation5 + $0x528] sm:$0xff]
    %v288 = vld [vmem:[#allocation5 + $0x530] sm:$0xff]
    %v289 = vld [vmem:[#allocation5 + $0x538] sm:$0xff]
    %v290 = vld [vmem:[#allocation5 + $0x540] sm:$0xff]
    %v291 = vld [vmem:[#allocation5 + $0x548] sm:$0xff]
    %v292 = vld [vmem:[#allocation5 + $0x550] sm:$0xff]
    %v293 = vld [vmem:[#allocation5 + $0x558] sm:$0xff]
    %v294 = vld [vmem:[#allocation5 + $0x560] sm:$0xff]
    %v295 = vld [vmem:[#allocation5 + $0x568] sm:$0xff]
    %v296 = vld [vmem:[#allocation5 + $0x570] sm:$0xff]
    %v297 = vld [vmem:[#allocation5 + $0x578] sm:$0xff]
    %v298 = vld [vmem:[#allocation5 + $0x580] sm:$0xff]
    %v299 = vld [vmem:[#allocation5 + $0x588] sm:$0xff]
    %v300 = vld [vmem:[#allocation5 + $0x590] sm:$0xff]
    %v301 = vld [vmem:[#allocation5 + $0x598] sm:$0xff]
    %v302 = vld [vmem:[#allocation5 + $0x5a0] sm:$0xff]
    %v303 = vld [vmem:[#allocation5 + $0x5a8] sm:$0xff]
    %v304 = vld [vmem:[#allocation5 + $0x5b0] sm:$0xff]
    %v305 = vld [vmem:[#allocation5 + $0x5b8] sm:$0xff]
    %v306 = vld [vmem:[#allocation5 + $0x5c0] sm:$0xff]
    %v307 = vld [vmem:[#allocation5 + $0x5c8] sm:$0xff]
    %v308 = vld [vmem:[#allocation5 + $0x5d0] sm:$0xff]
    %v309 = vld [vmem:[#allocation5 + $0x5d8] sm:$0xff]
    %v310 = vld [vmem:[#allocation5 + $0x5e0] sm:$0xff]
    %v311 = vld [vmem:[#allocation5 + $0x5e8] sm:$0xff]
    %v312 = vld [vmem:[#allocation5 + $0x5f0] sm:$0xff]
    %v313 = vld [vmem:[#allocation5 + $0x5f8] sm:$0xff]
    %v314 = vld [vmem:[#allocation5 + $0x600] sm:$0xff]
    %v315 = vld [vmem:[#allocation5 + $0x608] sm:$0xff]
    %v316 = vld [vmem:[#allocation5 + $0x610] sm:$0xff]
    %v317 = vld [vmem:[#allocation5 + $0x618] sm:$0xff]
    %v318 = vld [vmem:[#allocation5 + $0x620] sm:$0xff]
    %v319 = vld [vmem:[#allocation5 + $0x628] sm:$0xff]
    %v320 = vld [vmem:[#allocation5 + $0x630] sm:$0xff]
    %v321 = vld [vmem:[#allocation5 + $0x638] sm:$0xff]
    %v322 = vld [vmem:[#allocation5 + $0x640] sm:$0xff]
    %v323 = vld [vmem:[#allocation5 + $0x648] sm:$0xff]
    %v324 = vld [vmem:[#allocation5 + $0x650] sm:$0xff]
    %v325 = vld [vmem:[#allocation5 + $0x658] sm:$0xff]
    %v326 = vld [vmem:[#allocation5 + $0x660] sm:$0xff]
    %v327 = vld [vmem:[#allocation5 + $0x668] sm:$0xff]
    %v328 = vld [vmem:[#allocation5 + $0x670] sm:$0xff]
    %v329 = vld [vmem:[#allocation5 + $0x678] sm:$0xff]
    %v330 = vld [vmem:[#allocation5 + $0x680] sm:$0xff]
    %v331 = vld [vmem:[#allocation5 + $0x688] sm:$0xff]
    %v332 = vld [vmem:[#allocation5 + $0x690] sm:$0xff]
    %v333 = vld [vmem:[#allocation5 + $0x698] sm:$0xff]
    %v334 = vld [vmem:[#allocation5 + $0x6a0] sm:$0xff]
    %v335 = vld [vmem:[#allocation5 + $0x6a8] sm:$0xff]
    %v336 = vld [vmem:[#allocation5 + $0x6b0] sm:$0xff]
    %v337 = vld [vmem:[#allocation5 + $0x6b8] sm:$0xff]
    %v338 = vld [vmem:[#allocation5 + $0x6c0] sm:$0xff]
    %v339 = vld [vmem:[#allocation5 + $0x6c8] sm:$0xff]
    %v340 = vld [vmem:[#allocation5 + $0x6d0] sm:$0xff]
    %v341 = vld [vmem:[#allocation5 + $0x6d8] sm:$0xff]
    %v342 = vld [vmem:[#allocation5 + $0x6e0] sm:$0xff]
    %v343 = vld [vmem:[#allocation5 + $0x6e8] sm:$0xff]
    %v344 = vld [vmem:[#allocation5 + $0x6f0] sm:$0xff]
    %v345 = vld [vmem:[#allocation5 + $0x6f8] sm:$0xff]
    %v346 = vld [vmem:[#allocation5 + $0x700] sm:$0xff]
    %v347 = vld [vmem:[#allocation5 + $0x708] sm:$0xff]
    %v348 = vld [vmem:[#allocation5 + $0x710] sm:$0xff]
    %v349 = vld [vmem:[#allocation5 + $0x718] sm:$0xff]
    %v350 = vld [vmem:[#allocation5 + $0x720] sm:$0xff]
    %v351 = vld [vmem:[#allocation5 + $0x728] sm:$0xff]
    %v352 = vld [vmem:[#allocation5 + $0x730] sm:$0xff]
    %v353 = vld [vmem:[#allocation5 + $0x738] sm:$0xff]
    %v354 = vld [vmem:[#allocation5 + $0x740] sm:$0xff]
    %v355 = vld [vmem:[#allocation5 + $0x748] sm:$0xff]
    %v356 = vld [vmem:[#allocation5 + $0x750] sm:$0xff]
    %v357 = vld [vmem:[#allocation5 + $0x758] sm:$0xff]
    %v358 = vld [vmem:[#allocation5 + $0x760] sm:$0xff]
    %v359 = vld [vmem:[#allocation5 + $0x768] sm:$0xff]
    %v360 = vld [vmem:[#allocation5 + $0x770] sm:$0xff]
    %v361 = vld [vmem:[#allocation5 + $0x778] sm:$0xff]
    %v362 = vld [vmem:[#allocation5 + $0x780] sm:$0xff]
    %v363 = vld [vmem:[#allocation5 + $0x788] sm:$0xff]
    %v364 = vld [vmem:[#allocation5 + $0x790] sm:$0xff]
    %v365 = vld [vmem:[#allocation5 + $0x798] sm:$0xff]
    %v366 = vld [vmem:[#allocation5 + $0x7a0] sm:$0xff]
    %v367 = vld [vmem:[#allocation5 + $0x7a8] sm:$0xff]
    %v368 = vld [vmem:[#allocation5 + $0x7b0] sm:$0xff]
    %v369 = vld [vmem:[#allocation5 + $0x7b8] sm:$0xff]
    %v370 = vld [vmem:[#allocation5 + $0x7c0] sm:$0xff]
    %v371 = vld [vmem:[#allocation5 + $0x7c8] sm:$0xff]
    %v372 = vld [vmem:[#allocation5 + $0x7d0] sm:$0xff]
    %v373 = vld [vmem:[#allocation5 + $0x7d8] sm:$0xff]
    %v374 = vld [vmem:[#allocation5 + $0x7e0] sm:$0xff]
    %v375 = vld [vmem:[#allocation5 + $0x7e8] sm:$0xff]
    %v376 = vld [vmem:[#allocation5 + $0x7f0] sm:$0xff]
    %v377 = vld [vmem:[#allocation5 + $0x7f8] sm:$0xff]
    %v378 = vld [vmem:[#allocation7] sm:$0xf]
    %v380 = vlaneseq
    %v381 = vshrl.u32 %v380, 7
    %v382 = vsub.s32 0, %v381
    %v383 = vrot.slane %v378, %v382
    %v384 = vlaneseq
    %v385 = vshrl.u32 %v384, 7
    %v386 = vsub.s32 1, %v385
    %v387 = vrot.slane %v378, %v386
    %v388 = vlaneseq
    %v389 = vshrl.u32 %v388, 7
    %v390 = vsub.s32 2, %v389
    %v391 = vrot.slane %v378, %v390
    %v392 = vlaneseq
    %v393 = vshrl.u32 %v392, 7
    %v394 = vsub.s32 3, %v393
    %v395 = vrot.slane %v378, %v394
    %v408 = vunpack.c.l.b16 %v114
    %v409 = vunpack.c.h.b16 %v114
    %v410 = vunpack.c.l.b16 %v115
    %v411 = vunpack.c.h.b16 %v115
    %v412 = vunpack.c.l.b16 %v116
    %v413 = vunpack.c.h.b16 %v116
    %v414 = vunpack.c.l.b16 %v117
    %v415 = vunpack.c.h.b16 %v117
    %v416 = vunpack.c.l.b16 %v118
    %v417 = vunpack.c.h.b16 %v118
    %v418 = vunpack.c.l.b16 %v119
    %v419 = vunpack.c.h.b16 %v119
    %v420 = vunpack.c.l.b16 %v120
    %v421 = vunpack.c.h.b16 %v120
    %v422 = vunpack.c.l.b16 %v121
    %v423 = vunpack.c.h.b16 %v121
    %v424 = vpack.c.b16 %v416, %v408
    %v425 = vpack.c.b16 %v417, %v409
    %v426 = vpack.c.b16 %v418, %v410
    %v427 = vpack.c.b16 %v419, %v411
    %v428 = vpack.c.b16 %v420, %v412
    %v429 = vpack.c.b16 %v421, %v413
    %v430 = vpack.c.b16 %v422, %v414
    %v431 = vpack.c.b16 %v423, %v415
    %v696 = vunpack.c.l.b16 %v122
    %v697 = vunpack.c.h.b16 %v122
    %v698 = vunpack.c.l.b16 %v123
    %v699 = vunpack.c.h.b16 %v123
    %v700 = vunpack.c.l.b16 %v124
    %v701 = vunpack.c.h.b16 %v124
    %v702 = vunpack.c.l.b16 %v125
    %v703 = vunpack.c.h.b16 %v125
    %v704 = vunpack.c.l.b16 %v126
    %v705 = vunpack.c.h.b16 %v126
    %v706 = vunpack.c.l.b16 %v127
    %v707 = vunpack.c.h.b16 %v127
    %v708 = vunpack.c.l.b16 %v128
    %v709 = vunpack.c.h.b16 %v128
    %v710 = vunpack.c.l.b16 %v129
    %v711 = vunpack.c.h.b16 %v129
    %v712 = vunpack.c.l.b16 %v130
    %v713 = vunpack.c.h.b16 %v130
    %v714 = vunpack.c.l.b16 %v131
    %v715 = vunpack.c.h.b16 %v131
    %v716 = vunpack.c.l.b16 %v132
    %v717 = vunpack.c.h.b16 %v132
    %v718 = vunpack.c.l.b16 %v133
    %v719 = vunpack.c.h.b16 %v133
    %v720 = vunpack.c.l.b16 %v134
    %v721 = vunpack.c.h.b16 %v134
    %v722 = vunpack.c.l.b16 %v135
    %v723 = vunpack.c.h.b16 %v135
    %v724 = vunpack.c.l.b16 %v136
    %v725 = vunpack.c.h.b16 %v136
    %v726 = vunpack.c.l.b16 %v137
    %v727 = vunpack.c.h.b16 %v137
    %v728 = vunpack.c.l.b16 %v138
    %v729 = vunpack.c.h.b16 %v138
    %v730 = vunpack.c.l.b16 %v139
    %v731 = vunpack.c.h.b16 %v139
    %v732 = vunpack.c.l.b16 %v140
    %v733 = vunpack.c.h.b16 %v140
    %v734 = vunpack.c.l.b16 %v141
    %v735 = vunpack.c.h.b16 %v141
    %v736 = vunpack.c.l.b16 %v142
    %v737 = vunpack.c.h.b16 %v142
    %v738 = vunpack.c.l.b16 %v143
    %v739 = vunpack.c.h.b16 %v143
    %v740 = vunpack.c.l.b16 %v144
    %v741 = vunpack.c.h.b16 %v144
    %v742 = vunpack.c.l.b16 %v145
    %v743 = vunpack.c.h.b16 %v145
    %v744 = vunpack.c.l.b16 %v146
    %v745 = vunpack.c.h.b16 %v146
    %v746 = vunpack.c.l.b16 %v147
    %v747 = vunpack.c.h.b16 %v147
    %v748 = vunpack.c.l.b16 %v148
    %v749 = vunpack.c.h.b16 %v148
    %v750 = vunpack.c.l.b16 %v149
    %v751 = vunpack.c.h.b16 %v149
    %v752 = vunpack.c.l.b16 %v150
    %v753 = vunpack.c.h.b16 %v150
    %v754 = vunpack.c.l.b16 %v151
    %v755 = vunpack.c.h.b16 %v151
    %v756 = vunpack.c.l.b16 %v152
    %v757 = vunpack.c.h.b16 %v152
    %v758 = vunpack.c.l.b16 %v153
    %v759 = vunpack.c.h.b16 %v153
    %v760 = vunpack.c.l.b16 %v154
    %v761 = vunpack.c.h.b16 %v154
    %v762 = vunpack.c.l.b16 %v155
    %v763 = vunpack.c.h.b16 %v155
    %v764 = vunpack.c.l.b16 %v156
    %v765 = vunpack.c.h.b16 %v156
    %v766 = vunpack.c.l.b16 %v157
    %v767 = vunpack.c.h.b16 %v157
    %v768 = vunpack.c.l.b16 %v158
    %v769 = vunpack.c.h.b16 %v158
    %v770 = vunpack.c.l.b16 %v159
    %v771 = vunpack.c.h.b16 %v159
    %v772 = vunpack.c.l.b16 %v160
    %v773 = vunpack.c.h.b16 %v160
    %v774 = vunpack.c.l.b16 %v161
    %v775 = vunpack.c.h.b16 %v161
    %v776 = vunpack.c.l.b16 %v162
    %v777 = vunpack.c.h.b16 %v162
    %v778 = vunpack.c.l.b16 %v163
    %v779 = vunpack.c.h.b16 %v163
    %v780 = vunpack.c.l.b16 %v164
    %v781 = vunpack.c.h.b16 %v164
    %v782 = vunpack.c.l.b16 %v165
    %v783 = vunpack.c.h.b16 %v165
    %v784 = vunpack.c.l.b16 %v166
    %v785 = vunpack.c.h.b16 %v166
    %v786 = vunpack.c.l.b16 %v167
    %v787 = vunpack.c.h.b16 %v167
    %v788 = vunpack.c.l.b16 %v168
    %v789 = vunpack.c.h.b16 %v168
    %v790 = vunpack.c.l.b16 %v169
    %v791 = vunpack.c.h.b16 %v169
    %v792 = vunpack.c.l.b16 %v170
    %v793 = vunpack.c.h.b16 %v170
    %v794 = vunpack.c.l.b16 %v171
    %v795 = vunpack.c.h.b16 %v171
    %v796 = vunpack.c.l.b16 %v172
    %v797 = vunpack.c.h.b16 %v172
    %v798 = vunpack.c.l.b16 %v173
    %v799 = vunpack.c.h.b16 %v173
    %v800 = vunpack.c.l.b16 %v174
    %v801 = vunpack.c.h.b16 %v174
    %v802 = vunpack.c.l.b16 %v175
    %v803 = vunpack.c.h.b16 %v175
    %v804 = vunpack.c.l.b16 %v176
    %v805 = vunpack.c.h.b16 %v176
    %v806 = vunpack.c.l.b16 %v177
    %v807 = vunpack.c.h.b16 %v177
    %v808 = vunpack.c.l.b16 %v178
    %v809 = vunpack.c.h.b16 %v178
    %v810 = vunpack.c.l.b16 %v179
    %v811 = vunpack.c.h.b16 %v179
    %v812 = vunpack.c.l.b16 %v180
    %v813 = vunpack.c.h.b16 %v180
    %v814 = vunpack.c.l.b16 %v181
    %v815 = vunpack.c.h.b16 %v181
    %v816 = vunpack.c.l.b16 %v182
    %v817 = vunpack.c.h.b16 %v182
    %v818 = vunpack.c.l.b16 %v183
    %v819 = vunpack.c.h.b16 %v183
    %v820 = vunpack.c.l.b16 %v184
    %v821 = vunpack.c.h.b16 %v184
    %v822 = vunpack.c.l.b16 %v185
    %v823 = vunpack.c.h.b16 %v185
    %v824 = vunpack.c.l.b16 %v186
    %v825 = vunpack.c.h.b16 %v186
    %v826 = vunpack.c.l.b16 %v187
    %v827 = vunpack.c.h.b16 %v187
    %v828 = vunpack.c.l.b16 %v188
    %v829 = vunpack.c.h.b16 %v188
    %v830 = vunpack.c.l.b16 %v189
    %v831 = vunpack.c.h.b16 %v189
    %v832 = vunpack.c.l.b16 %v190
    %v833 = vunpack.c.h.b16 %v190
    %v834 = vunpack.c.l.b16 %v191
    %v835 = vunpack.c.h.b16 %v191
    %v836 = vunpack.c.l.b16 %v192
    %v837 = vunpack.c.h.b16 %v192
    %v838 = vunpack.c.l.b16 %v193
    %v839 = vunpack.c.h.b16 %v193
    %v840 = vunpack.c.l.b16 %v194
    %v841 = vunpack.c.h.b16 %v194
    %v842 = vunpack.c.l.b16 %v195
    %v843 = vunpack.c.h.b16 %v195
    %v844 = vunpack.c.l.b16 %v196
    %v845 = vunpack.c.h.b16 %v196
    %v846 = vunpack.c.l.b16 %v197
    %v847 = vunpack.c.h.b16 %v197
    %v848 = vunpack.c.l.b16 %v198
    %v849 = vunpack.c.h.b16 %v198
    %v850 = vunpack.c.l.b16 %v199
    %v851 = vunpack.c.h.b16 %v199
    %v852 = vunpack.c.l.b16 %v200
    %v853 = vunpack.c.h.b16 %v200
    %v854 = vunpack.c.l.b16 %v201
    %v855 = vunpack.c.h.b16 %v201
    %v856 = vunpack.c.l.b16 %v202
    %v857 = vunpack.c.h.b16 %v202
    %v858 = vunpack.c.l.b16 %v203
    %v859 = vunpack.c.h.b16 %v203
    %v860 = vunpack.c.l.b16 %v204
    %v861 = vunpack.c.h.b16 %v204
    %v862 = vunpack.c.l.b16 %v205
    %v863 = vunpack.c.h.b16 %v205
    %v864 = vunpack.c.l.b16 %v206
    %v865 = vunpack.c.h.b16 %v206
    %v866 = vunpack.c.l.b16 %v207
    %v867 = vunpack.c.h.b16 %v207
    %v868 = vunpack.c.l.b16 %v208
    %v869 = vunpack.c.h.b16 %v208
    %v870 = vunpack.c.l.b16 %v209
    %v871 = vunpack.c.h.b16 %v209
    %v872 = vunpack.c.l.b16 %v210
    %v873 = vunpack.c.h.b16 %v210
    %v874 = vunpack.c.l.b16 %v211
    %v875 = vunpack.c.h.b16 %v211
    %v876 = vunpack.c.l.b16 %v212
    %v877 = vunpack.c.h.b16 %v212
    %v878 = vunpack.c.l.b16 %v213
    %v879 = vunpack.c.h.b16 %v213
    %v880 = vunpack.c.l.b16 %v214
    %v881 = vunpack.c.h.b16 %v214
    %v882 = vunpack.c.l.b16 %v215
    %v883 = vunpack.c.h.b16 %v215
    %v884 = vunpack.c.l.b16 %v216
    %v885 = vunpack.c.h.b16 %v216
    %v886 = vunpack.c.l.b16 %v217
    %v887 = vunpack.c.h.b16 %v217
    %v888 = vunpack.c.l.b16 %v218
    %v889 = vunpack.c.h.b16 %v218
    %v890 = vunpack.c.l.b16 %v219
    %v891 = vunpack.c.h.b16 %v219
    %v892 = vunpack.c.l.b16 %v220
    %v893 = vunpack.c.h.b16 %v220
    %v894 = vunpack.c.l.b16 %v221
    %v895 = vunpack.c.h.b16 %v221
    %v896 = vunpack.c.l.b16 %v222
    %v897 = vunpack.c.h.b16 %v222
    %v898 = vunpack.c.l.b16 %v223
    %v899 = vunpack.c.h.b16 %v223
    %v900 = vunpack.c.l.b16 %v224
    %v901 = vunpack.c.h.b16 %v224
    %v902 = vunpack.c.l.b16 %v225
    %v903 = vunpack.c.h.b16 %v225
    %v904 = vunpack.c.l.b16 %v226
    %v905 = vunpack.c.h.b16 %v226
    %v906 = vunpack.c.l.b16 %v227
    %v907 = vunpack.c.h.b16 %v227
    %v908 = vunpack.c.l.b16 %v228
    %v909 = vunpack.c.h.b16 %v228
    %v910 = vunpack.c.l.b16 %v229
    %v911 = vunpack.c.h.b16 %v229
    %v912 = vunpack.c.l.b16 %v230
    %v913 = vunpack.c.h.b16 %v230
    %v914 = vunpack.c.l.b16 %v231
    %v915 = vunpack.c.h.b16 %v231
    %v916 = vunpack.c.l.b16 %v232
    %v917 = vunpack.c.h.b16 %v232
    %v918 = vunpack.c.l.b16 %v233
    %v919 = vunpack.c.h.b16 %v233
    %v920 = vunpack.c.l.b16 %v234
    %v921 = vunpack.c.h.b16 %v234
    %v922 = vunpack.c.l.b16 %v235
    %v923 = vunpack.c.h.b16 %v235
    %v924 = vunpack.c.l.b16 %v236
    %v925 = vunpack.c.h.b16 %v236
    %v926 = vunpack.c.l.b16 %v237
    %v927 = vunpack.c.h.b16 %v237
    %v928 = vunpack.c.l.b16 %v238
    %v929 = vunpack.c.h.b16 %v238
    %v930 = vunpack.c.l.b16 %v239
    %v931 = vunpack.c.h.b16 %v239
    %v932 = vunpack.c.l.b16 %v240
    %v933 = vunpack.c.h.b16 %v240
    %v934 = vunpack.c.l.b16 %v241
    %v935 = vunpack.c.h.b16 %v241
    %v936 = vunpack.c.l.b16 %v242
    %v937 = vunpack.c.h.b16 %v242
    %v938 = vunpack.c.l.b16 %v243
    %v939 = vunpack.c.h.b16 %v243
    %v940 = vunpack.c.l.b16 %v244
    %v941 = vunpack.c.h.b16 %v244
    %v942 = vunpack.c.l.b16 %v245
    %v943 = vunpack.c.h.b16 %v245
    %v944 = vunpack.c.l.b16 %v246
    %v945 = vunpack.c.h.b16 %v246
    %v946 = vunpack.c.l.b16 %v247
    %v947 = vunpack.c.h.b16 %v247
    %v948 = vunpack.c.l.b16 %v248
    %v949 = vunpack.c.h.b16 %v248
    %v950 = vunpack.c.l.b16 %v249
    %v951 = vunpack.c.h.b16 %v249
    %v952 = vunpack.c.l.b16 %v250
    %v953 = vunpack.c.h.b16 %v250
    %v954 = vunpack.c.l.b16 %v251
    %v955 = vunpack.c.h.b16 %v251
    %v956 = vunpack.c.l.b16 %v252
    %v957 = vunpack.c.h.b16 %v252
    %v958 = vunpack.c.l.b16 %v253
    %v959 = vunpack.c.h.b16 %v253
    %v960 = vunpack.c.l.b16 %v254
    %v961 = vunpack.c.h.b16 %v254
    %v962 = vunpack.c.l.b16 %v255
    %v963 = vunpack.c.h.b16 %v255
    %v964 = vunpack.c.l.b16 %v256
    %v965 = vunpack.c.h.b16 %v256
    %v966 = vunpack.c.l.b16 %v257
    %v967 = vunpack.c.h.b16 %v257
    %v968 = vunpack.c.l.b16 %v258
    %v969 = vunpack.c.h.b16 %v258
    %v970 = vunpack.c.l.b16 %v259
    %v971 = vunpack.c.h.b16 %v259
    %v972 = vunpack.c.l.b16 %v260
    %v973 = vunpack.c.h.b16 %v260
    %v974 = vunpack.c.l.b16 %v261
    %v975 = vunpack.c.h.b16 %v261
    %v976 = vunpack.c.l.b16 %v262
    %v977 = vunpack.c.h.b16 %v262
    %v978 = vunpack.c.l.b16 %v263
    %v979 = vunpack.c.h.b16 %v263
    %v980 = vunpack.c.l.b16 %v264
    %v981 = vunpack.c.h.b16 %v264
    %v982 = vunpack.c.l.b16 %v265
    %v983 = vunpack.c.h.b16 %v265
    %v984 = vunpack.c.l.b16 %v266
    %v985 = vunpack.c.h.b16 %v266
    %v986 = vunpack.c.l.b16 %v267
    %v987 = vunpack.c.h.b16 %v267
    %v988 = vunpack.c.l.b16 %v268
    %v989 = vunpack.c.h.b16 %v268
    %v990 = vunpack.c.l.b16 %v269
    %v991 = vunpack.c.h.b16 %v269
    %v992 = vunpack.c.l.b16 %v270
    %v993 = vunpack.c.h.b16 %v270
    %v994 = vunpack.c.l.b16 %v271
    %v995 = vunpack.c.h.b16 %v271
    %v996 = vunpack.c.l.b16 %v272
    %v997 = vunpack.c.h.b16 %v272
    %v998 = vunpack.c.l.b16 %v273
    %v999 = vunpack.c.h.b16 %v273
    %v1000 = vunpack.c.l.b16 %v274
    %v1001 = vunpack.c.h.b16 %v274
    %v1002 = vunpack.c.l.b16 %v275
    %v1003 = vunpack.c.h.b16 %v275
    %v1004 = vunpack.c.l.b16 %v276
    %v1005 = vunpack.c.h.b16 %v276
    %v1006 = vunpack.c.l.b16 %v277
    %v1007 = vunpack.c.h.b16 %v277
    %v1008 = vunpack.c.l.b16 %v278
    %v1009 = vunpack.c.h.b16 %v278
    %v1010 = vunpack.c.l.b16 %v279
    %v1011 = vunpack.c.h.b16 %v279
    %v1012 = vunpack.c.l.b16 %v280
    %v1013 = vunpack.c.h.b16 %v280
    %v1014 = vunpack.c.l.b16 %v281
    %v1015 = vunpack.c.h.b16 %v281
    %v1016 = vunpack.c.l.b16 %v282
    %v1017 = vunpack.c.h.b16 %v282
    %v1018 = vunpack.c.l.b16 %v283
    %v1019 = vunpack.c.h.b16 %v283
    %v1020 = vunpack.c.l.b16 %v284
    %v1021 = vunpack.c.h.b16 %v284
    %v1022 = vunpack.c.l.b16 %v285
    %v1023 = vunpack.c.h.b16 %v285
    %v1024 = vunpack.c.l.b16 %v286
    %v1025 = vunpack.c.h.b16 %v286
    %v1026 = vunpack.c.l.b16 %v287
    %v1027 = vunpack.c.h.b16 %v287
    %v1028 = vunpack.c.l.b16 %v288
    %v1029 = vunpack.c.h.b16 %v288
    %v1030 = vunpack.c.l.b16 %v289
    %v1031 = vunpack.c.h.b16 %v289
    %v1032 = vunpack.c.l.b16 %v290
    %v1033 = vunpack.c.h.b16 %v290
    %v1034 = vunpack.c.l.b16 %v291
    %v1035 = vunpack.c.h.b16 %v291
    %v1036 = vunpack.c.l.b16 %v292
    %v1037 = vunpack.c.h.b16 %v292
    %v1038 = vunpack.c.l.b16 %v293
    %v1039 = vunpack.c.h.b16 %v293
    %v1040 = vunpack.c.l.b16 %v294
    %v1041 = vunpack.c.h.b16 %v294
    %v1042 = vunpack.c.l.b16 %v295
    %v1043 = vunpack.c.h.b16 %v295
    %v1044 = vunpack.c.l.b16 %v296
    %v1045 = vunpack.c.h.b16 %v296
    %v1046 = vunpack.c.l.b16 %v297
    %v1047 = vunpack.c.h.b16 %v297
    %v1048 = vunpack.c.l.b16 %v298
    %v1049 = vunpack.c.h.b16 %v298
    %v1050 = vunpack.c.l.b16 %v299
    %v1051 = vunpack.c.h.b16 %v299
    %v1052 = vunpack.c.l.b16 %v300
    %v1053 = vunpack.c.h.b16 %v300
    %v1054 = vunpack.c.l.b16 %v301
    %v1055 = vunpack.c.h.b16 %v301
    %v1056 = vunpack.c.l.b16 %v302
    %v1057 = vunpack.c.h.b16 %v302
    %v1058 = vunpack.c.l.b16 %v303
    %v1059 = vunpack.c.h.b16 %v303
    %v1060 = vunpack.c.l.b16 %v304
    %v1061 = vunpack.c.h.b16 %v304
    %v1062 = vunpack.c.l.b16 %v305
    %v1063 = vunpack.c.h.b16 %v305
    %v1064 = vunpack.c.l.b16 %v306
    %v1065 = vunpack.c.h.b16 %v306
    %v1066 = vunpack.c.l.b16 %v307
    %v1067 = vunpack.c.h.b16 %v307
    %v1068 = vunpack.c.l.b16 %v308
    %v1069 = vunpack.c.h.b16 %v308
    %v1070 = vunpack.c.l.b16 %v309
    %v1071 = vunpack.c.h.b16 %v309
    %v1072 = vunpack.c.l.b16 %v310
    %v1073 = vunpack.c.h.b16 %v310
    %v1074 = vunpack.c.l.b16 %v311
    %v1075 = vunpack.c.h.b16 %v311
    %v1076 = vunpack.c.l.b16 %v312
    %v1077 = vunpack.c.h.b16 %v312
    %v1078 = vunpack.c.l.b16 %v313
    %v1079 = vunpack.c.h.b16 %v313
    %v1080 = vunpack.c.l.b16 %v314
    %v1081 = vunpack.c.h.b16 %v314
    %v1082 = vunpack.c.l.b16 %v315
    %v1083 = vunpack.c.h.b16 %v315
    %v1084 = vunpack.c.l.b16 %v316
    %v1085 = vunpack.c.h.b16 %v316
    %v1086 = vunpack.c.l.b16 %v317
    %v1087 = vunpack.c.h.b16 %v317
    %v1088 = vunpack.c.l.b16 %v318
    %v1089 = vunpack.c.h.b16 %v318
    %v1090 = vunpack.c.l.b16 %v319
    %v1091 = vunpack.c.h.b16 %v319
    %v1092 = vunpack.c.l.b16 %v320
    %v1093 = vunpack.c.h.b16 %v320
    %v1094 = vunpack.c.l.b16 %v321
    %v1095 = vunpack.c.h.b16 %v321
    %v1096 = vunpack.c.l.b16 %v322
    %v1097 = vunpack.c.h.b16 %v322
    %v1098 = vunpack.c.l.b16 %v323
    %v1099 = vunpack.c.h.b16 %v323
    %v1100 = vunpack.c.l.b16 %v324
    %v1101 = vunpack.c.h.b16 %v324
    %v1102 = vunpack.c.l.b16 %v325
    %v1103 = vunpack.c.h.b16 %v325
    %v1104 = vunpack.c.l.b16 %v326
    %v1105 = vunpack.c.h.b16 %v326
    %v1106 = vunpack.c.l.b16 %v327
    %v1107 = vunpack.c.h.b16 %v327
    %v1108 = vunpack.c.l.b16 %v328
    %v1109 = vunpack.c.h.b16 %v328
    %v1110 = vunpack.c.l.b16 %v329
    %v1111 = vunpack.c.h.b16 %v329
    %v1112 = vunpack.c.l.b16 %v330
    %v1113 = vunpack.c.h.b16 %v330
    %v1114 = vunpack.c.l.b16 %v331
    %v1115 = vunpack.c.h.b16 %v331
    %v1116 = vunpack.c.l.b16 %v332
    %v1117 = vunpack.c.h.b16 %v332
    %v1118 = vunpack.c.l.b16 %v333
    %v1119 = vunpack.c.h.b16 %v333
    %v1120 = vunpack.c.l.b16 %v334
    %v1121 = vunpack.c.h.b16 %v334
    %v1122 = vunpack.c.l.b16 %v335
    %v1123 = vunpack.c.h.b16 %v335
    %v1124 = vunpack.c.l.b16 %v336
    %v1125 = vunpack.c.h.b16 %v336
    %v1126 = vunpack.c.l.b16 %v337
    %v1127 = vunpack.c.h.b16 %v337
    %v1128 = vunpack.c.l.b16 %v338
    %v1129 = vunpack.c.h.b16 %v338
    %v1130 = vunpack.c.l.b16 %v339
    %v1131 = vunpack.c.h.b16 %v339
    %v1132 = vunpack.c.l.b16 %v340
    %v1133 = vunpack.c.h.b16 %v340
    %v1134 = vunpack.c.l.b16 %v341
    %v1135 = vunpack.c.h.b16 %v341
    %v1136 = vunpack.c.l.b16 %v342
    %v1137 = vunpack.c.h.b16 %v342
    %v1138 = vunpack.c.l.b16 %v343
    %v1139 = vunpack.c.h.b16 %v343
    %v1140 = vunpack.c.l.b16 %v344
    %v1141 = vunpack.c.h.b16 %v344
    %v1142 = vunpack.c.l.b16 %v345
    %v1143 = vunpack.c.h.b16 %v345
    %v1144 = vunpack.c.l.b16 %v346
    %v1145 = vunpack.c.h.b16 %v346
    %v1146 = vunpack.c.l.b16 %v347
    %v1147 = vunpack.c.h.b16 %v347
    %v1148 = vunpack.c.l.b16 %v348
    %v1149 = vunpack.c.h.b16 %v348
    %v1150 = vunpack.c.l.b16 %v349
    %v1151 = vunpack.c.h.b16 %v349
    %v1152 = vunpack.c.l.b16 %v350
    %v1153 = vunpack.c.h.b16 %v350
    %v1154 = vunpack.c.l.b16 %v351
    %v1155 = vunpack.c.h.b16 %v351
    %v1156 = vunpack.c.l.b16 %v352
    %v1157 = vunpack.c.h.b16 %v352
    %v1158 = vunpack.c.l.b16 %v353
    %v1159 = vunpack.c.h.b16 %v353
    %v1160 = vunpack.c.l.b16 %v354
    %v1161 = vunpack.c.h.b16 %v354
    %v1162 = vunpack.c.l.b16 %v355
    %v1163 = vunpack.c.h.b16 %v355
    %v1164 = vunpack.c.l.b16 %v356
    %v1165 = vunpack.c.h.b16 %v356
    %v1166 = vunpack.c.l.b16 %v357
    %v1167 = vunpack.c.h.b16 %v357
    %v1168 = vunpack.c.l.b16 %v358
    %v1169 = vunpack.c.h.b16 %v358
    %v1170 = vunpack.c.l.b16 %v359
    %v1171 = vunpack.c.h.b16 %v359
    %v1172 = vunpack.c.l.b16 %v360
    %v1173 = vunpack.c.h.b16 %v360
    %v1174 = vunpack.c.l.b16 %v361
    %v1175 = vunpack.c.h.b16 %v361
    %v1176 = vunpack.c.l.b16 %v362
    %v1177 = vunpack.c.h.b16 %v362
    %v1178 = vunpack.c.l.b16 %v363
    %v1179 = vunpack.c.h.b16 %v363
    %v1180 = vunpack.c.l.b16 %v364
    %v1181 = vunpack.c.h.b16 %v364
    %v1182 = vunpack.c.l.b16 %v365
    %v1183 = vunpack.c.h.b16 %v365
    %v1184 = vunpack.c.l.b16 %v366
    %v1185 = vunpack.c.h.b16 %v366
    %v1186 = vunpack.c.l.b16 %v367
    %v1187 = vunpack.c.h.b16 %v367
    %v1188 = vunpack.c.l.b16 %v368
    %v1189 = vunpack.c.h.b16 %v368
    %v1190 = vunpack.c.l.b16 %v369
    %v1191 = vunpack.c.h.b16 %v369
    %v1192 = vunpack.c.l.b16 %v370
    %v1193 = vunpack.c.h.b16 %v370
    %v1194 = vunpack.c.l.b16 %v371
    %v1195 = vunpack.c.h.b16 %v371
    %v1196 = vunpack.c.l.b16 %v372
    %v1197 = vunpack.c.h.b16 %v372
    %v1198 = vunpack.c.l.b16 %v373
    %v1199 = vunpack.c.h.b16 %v373
    %v1200 = vunpack.c.l.b16 %v374
    %v1201 = vunpack.c.h.b16 %v374
    %v1202 = vunpack.c.l.b16 %v375
    %v1203 = vunpack.c.h.b16 %v375
    %v1204 = vunpack.c.l.b16 %v376
    %v1205 = vunpack.c.h.b16 %v376
    %v1206 = vunpack.c.l.b16 %v377
    %v1207 = vunpack.c.h.b16 %v377
    %v1208 = vpack.c.b16 %v700, %v696
    %v1209 = vpack.c.b16 %v701, %v697
    %v1210 = vpack.c.b16 %v702, %v698
    %v1211 = vpack.c.b16 %v703, %v699
    %v1212 = vpack.c.b16 %v708, %v704
    %v1213 = vpack.c.b16 %v709, %v705
    %v1214 = vpack.c.b16 %v710, %v706
    %v1215 = vpack.c.b16 %v711, %v707
    %v1216 = vpack.c.b16 %v716, %v712
    %v1217 = vpack.c.b16 %v717, %v713
    %v1218 = vpack.c.b16 %v718, %v714
    %v1219 = vpack.c.b16 %v719, %v715
    %v1220 = vpack.c.b16 %v724, %v720
    %v1221 = vpack.c.b16 %v725, %v721
    %v1222 = vpack.c.b16 %v726, %v722
    %v1223 = vpack.c.b16 %v727, %v723
    %v1224 = vpack.c.b16 %v732, %v728
    %v1225 = vpack.c.b16 %v733, %v729
    %v1226 = vpack.c.b16 %v734, %v730
    %v1227 = vpack.c.b16 %v735, %v731
    %v1228 = vpack.c.b16 %v740, %v736
    %v1229 = vpack.c.b16 %v741, %v737
    %v1230 = vpack.c.b16 %v742, %v738
    %v1231 = vpack.c.b16 %v743, %v739
    %v1232 = vpack.c.b16 %v748, %v744
    %v1233 = vpack.c.b16 %v749, %v745
    %v1234 = vpack.c.b16 %v750, %v746
    %v1235 = vpack.c.b16 %v751, %v747
    %v1236 = vpack.c.b16 %v756, %v752
    %v1237 = vpack.c.b16 %v757, %v753
    %v1238 = vpack.c.b16 %v758, %v754
    %v1239 = vpack.c.b16 %v759, %v755
    %v1240 = vpack.c.b16 %v764, %v760
    %v1241 = vpack.c.b16 %v765, %v761
    %v1242 = vpack.c.b16 %v766, %v762
    %v1243 = vpack.c.b16 %v767, %v763
    %v1244 = vpack.c.b16 %v772, %v768
    %v1245 = vpack.c.b16 %v773, %v769
    %v1246 = vpack.c.b16 %v774, %v770
    %v1247 = vpack.c.b16 %v775, %v771
    %v1248 = vpack.c.b16 %v780, %v776
    %v1249 = vpack.c.b16 %v781, %v777
    %v1250 = vpack.c.b16 %v782, %v778
    %v1251 = vpack.c.b16 %v783, %v779
    %v1252 = vpack.c.b16 %v788, %v784
    %v1253 = vpack.c.b16 %v789, %v785
    %v1254 = vpack.c.b16 %v790, %v786
    %v1255 = vpack.c.b16 %v791, %v787
    %v1256 = vpack.c.b16 %v796, %v792
    %v1257 = vpack.c.b16 %v797, %v793
    %v1258 = vpack.c.b16 %v798, %v794
    %v1259 = vpack.c.b16 %v799, %v795
    %v1260 = vpack.c.b16 %v804, %v800
    %v1261 = vpack.c.b16 %v805, %v801
    %v1262 = vpack.c.b16 %v806, %v802
    %v1263 = vpack.c.b16 %v807, %v803
    %v1264 = vpack.c.b16 %v812, %v808
    %v1265 = vpack.c.b16 %v813, %v809
    %v1266 = vpack.c.b16 %v814, %v810
    %v1267 = vpack.c.b16 %v815, %v811
    %v1268 = vpack.c.b16 %v820, %v816
    %v1269 = vpack.c.b16 %v821, %v817
    %v1270 = vpack.c.b16 %v822, %v818
    %v1271 = vpack.c.b16 %v823, %v819
    %v1272 = vpack.c.b16 %v828, %v824
    %v1273 = vpack.c.b16 %v829, %v825
    %v1274 = vpack.c.b16 %v830, %v826
    %v1275 = vpack.c.b16 %v831, %v827
    %v1276 = vpack.c.b16 %v836, %v832
    %v1277 = vpack.c.b16 %v837, %v833
    %v1278 = vpack.c.b16 %v838, %v834
    %v1279 = vpack.c.b16 %v839, %v835
    %v1280 = vpack.c.b16 %v844, %v840
    %v1281 = vpack.c.b16 %v845, %v841
    %v1282 = vpack.c.b16 %v846, %v842
    %v1283 = vpack.c.b16 %v847, %v843
    %v1284 = vpack.c.b16 %v852, %v848
    %v1285 = vpack.c.b16 %v853, %v849
    %v1286 = vpack.c.b16 %v854, %v850
    %v1287 = vpack.c.b16 %v855, %v851
    %v1288 = vpack.c.b16 %v860, %v856
    %v1289 = vpack.c.b16 %v861, %v857
    %v1290 = vpack.c.b16 %v862, %v858
    %v1291 = vpack.c.b16 %v863, %v859
    %v1292 = vpack.c.b16 %v868, %v864
    %v1293 = vpack.c.b16 %v869, %v865
    %v1294 = vpack.c.b16 %v870, %v866
    %v1295 = vpack.c.b16 %v871, %v867
    %v1296 = vpack.c.b16 %v876, %v872
    %v1297 = vpack.c.b16 %v877, %v873
    %v1298 = vpack.c.b16 %v878, %v874
    %v1299 = vpack.c.b16 %v879, %v875
    %v1300 = vpack.c.b16 %v884, %v880
    %v1301 = vpack.c.b16 %v885, %v881
    %v1302 = vpack.c.b16 %v886, %v882
    %v1303 = vpack.c.b16 %v887, %v883
    %v1304 = vpack.c.b16 %v892, %v888
    %v1305 = vpack.c.b16 %v893, %v889
    %v1306 = vpack.c.b16 %v894, %v890
    %v1307 = vpack.c.b16 %v895, %v891
    %v1308 = vpack.c.b16 %v900, %v896
    %v1309 = vpack.c.b16 %v901, %v897
    %v1310 = vpack.c.b16 %v902, %v898
    %v1311 = vpack.c.b16 %v903, %v899
    %v1312 = vpack.c.b16 %v908, %v904
    %v1313 = vpack.c.b16 %v909, %v905
    %v1314 = vpack.c.b16 %v910, %v906
    %v1315 = vpack.c.b16 %v911, %v907
    %v1316 = vpack.c.b16 %v916, %v912
    %v1317 = vpack.c.b16 %v917, %v913
    %v1318 = vpack.c.b16 %v918, %v914
    %v1319 = vpack.c.b16 %v919, %v915
    %v1320 = vpack.c.b16 %v924, %v920
    %v1321 = vpack.c.b16 %v925, %v921
    %v1322 = vpack.c.b16 %v926, %v922
    %v1323 = vpack.c.b16 %v927, %v923
    %v1324 = vpack.c.b16 %v932, %v928
    %v1325 = vpack.c.b16 %v933, %v929
    %v1326 = vpack.c.b16 %v934, %v930
    %v1327 = vpack.c.b16 %v935, %v931
    %v1328 = vpack.c.b16 %v940, %v936
    %v1329 = vpack.c.b16 %v941, %v937
    %v1330 = vpack.c.b16 %v942, %v938
    %v1331 = vpack.c.b16 %v943, %v939
    %v1332 = vpack.c.b16 %v948, %v944
    %v1333 = vpack.c.b16 %v949, %v945
    %v1334 = vpack.c.b16 %v950, %v946
    %v1335 = vpack.c.b16 %v951, %v947
    %v1336 = vpack.c.b16 %v956, %v952
    %v1337 = vpack.c.b16 %v957, %v953
    %v1338 = vpack.c.b16 %v958, %v954
    %v1339 = vpack.c.b16 %v959, %v955
    %v1340 = vpack.c.b16 %v964, %v960
    %v1341 = vpack.c.b16 %v965, %v961
    %v1342 = vpack.c.b16 %v966, %v962
    %v1343 = vpack.c.b16 %v967, %v963
    %v1344 = vpack.c.b16 %v972, %v968
    %v1345 = vpack.c.b16 %v973, %v969
    %v1346 = vpack.c.b16 %v974, %v970
    %v1347 = vpack.c.b16 %v975, %v971
    %v1348 = vpack.c.b16 %v980, %v976
    %v1349 = vpack.c.b16 %v981, %v977
    %v1350 = vpack.c.b16 %v982, %v978
    %v1351 = vpack.c.b16 %v983, %v979
    %v1352 = vpack.c.b16 %v988, %v984
    %v1353 = vpack.c.b16 %v989, %v985
    %v1354 = vpack.c.b16 %v990, %v986
    %v1355 = vpack.c.b16 %v991, %v987
    %v1356 = vpack.c.b16 %v996, %v992
    %v1357 = vpack.c.b16 %v997, %v993
    %v1358 = vpack.c.b16 %v998, %v994
    %v1359 = vpack.c.b16 %v999, %v995
    %v1360 = vpack.c.b16 %v1004, %v1000
    %v1361 = vpack.c.b16 %v1005, %v1001
    %v1362 = vpack.c.b16 %v1006, %v1002
    %v1363 = vpack.c.b16 %v1007, %v1003
    %v1364 = vpack.c.b16 %v1012, %v1008
    %v1365 = vpack.c.b16 %v1013, %v1009
    %v1366 = vpack.c.b16 %v1014, %v1010
    %v1367 = vpack.c.b16 %v1015, %v1011
    %v1368 = vpack.c.b16 %v1020, %v1016
    %v1369 = vpack.c.b16 %v1021, %v1017
    %v1370 = vpack.c.b16 %v1022, %v1018
    %v1371 = vpack.c.b16 %v1023, %v1019
    %v1372 = vpack.c.b16 %v1028, %v1024
    %v1373 = vpack.c.b16 %v1029, %v1025
    %v1374 = vpack.c.b16 %v1030, %v1026
    %v1375 = vpack.c.b16 %v1031, %v1027
    %v1376 = vpack.c.b16 %v1036, %v1032
    %v1377 = vpack.c.b16 %v1037, %v1033
    %v1378 = vpack.c.b16 %v1038, %v1034
    %v1379 = vpack.c.b16 %v1039, %v1035
    %v1380 = vpack.c.b16 %v1044, %v1040
    %v1381 = vpack.c.b16 %v1045, %v1041
    %v1382 = vpack.c.b16 %v1046, %v1042
    %v1383 = vpack.c.b16 %v1047, %v1043
    %v1384 = vpack.c.b16 %v1052, %v1048
    %v1385 = vpack.c.b16 %v1053, %v1049
    %v1386 = vpack.c.b16 %v1054, %v1050
    %v1387 = vpack.c.b16 %v1055, %v1051
    %v1388 = vpack.c.b16 %v1060, %v1056
    %v1389 = vpack.c.b16 %v1061, %v1057
    %v1390 = vpack.c.b16 %v1062, %v1058
    %v1391 = vpack.c.b16 %v1063, %v1059
    %v1392 = vpack.c.b16 %v1068, %v1064
    %v1393 = vpack.c.b16 %v1069, %v1065
    %v1394 = vpack.c.b16 %v1070, %v1066
    %v1395 = vpack.c.b16 %v1071, %v1067
    %v1396 = vpack.c.b16 %v1076, %v1072
    %v1397 = vpack.c.b16 %v1077, %v1073
    %v1398 = vpack.c.b16 %v1078, %v1074
    %v1399 = vpack.c.b16 %v1079, %v1075
    %v1400 = vpack.c.b16 %v1084, %v1080
    %v1401 = vpack.c.b16 %v1085, %v1081
    %v1402 = vpack.c.b16 %v1086, %v1082
    %v1403 = vpack.c.b16 %v1087, %v1083
    %v1404 = vpack.c.b16 %v1092, %v1088
    %v1405 = vpack.c.b16 %v1093, %v1089
    %v1406 = vpack.c.b16 %v1094, %v1090
    %v1407 = vpack.c.b16 %v1095, %v1091
    %v1408 = vpack.c.b16 %v1100, %v1096
    %v1409 = vpack.c.b16 %v1101, %v1097
    %v1410 = vpack.c.b16 %v1102, %v1098
    %v1411 = vpack.c.b16 %v1103, %v1099
    %v1412 = vpack.c.b16 %v1108, %v1104
    %v1413 = vpack.c.b16 %v1109, %v1105
    %v1414 = vpack.c.b16 %v1110, %v1106
    %v1415 = vpack.c.b16 %v1111, %v1107
    %v1416 = vpack.c.b16 %v1116, %v1112
    %v1417 = vpack.c.b16 %v1117, %v1113
    %v1418 = vpack.c.b16 %v1118, %v1114
    %v1419 = vpack.c.b16 %v1119, %v1115
    %v1420 = vpack.c.b16 %v1124, %v1120
    %v1421 = vpack.c.b16 %v1125, %v1121
    %v1422 = vpack.c.b16 %v1126, %v1122
    %v1423 = vpack.c.b16 %v1127, %v1123
    %v1424 = vpack.c.b16 %v1132, %v1128
    %v1425 = vpack.c.b16 %v1133, %v1129
    %v1426 = vpack.c.b16 %v1134, %v1130
    %v1427 = vpack.c.b16 %v1135, %v1131
    %v1428 = vpack.c.b16 %v1140, %v1136
    %v1429 = vpack.c.b16 %v1141, %v1137
    %v1430 = vpack.c.b16 %v1142, %v1138
    %v1431 = vpack.c.b16 %v1143, %v1139
    %v1432 = vpack.c.b16 %v1148, %v1144
    %v1433 = vpack.c.b16 %v1149, %v1145
    %v1434 = vpack.c.b16 %v1150, %v1146
    %v1435 = vpack.c.b16 %v1151, %v1147
    %v1436 = vpack.c.b16 %v1156, %v1152
    %v1437 = vpack.c.b16 %v1157, %v1153
    %v1438 = vpack.c.b16 %v1158, %v1154
    %v1439 = vpack.c.b16 %v1159, %v1155
    %v1440 = vpack.c.b16 %v1164, %v1160
    %v1441 = vpack.c.b16 %v1165, %v1161
    %v1442 = vpack.c.b16 %v1166, %v1162
    %v1443 = vpack.c.b16 %v1167, %v1163
    %v1444 = vpack.c.b16 %v1172, %v1168
    %v1445 = vpack.c.b16 %v1173, %v1169
    %v1446 = vpack.c.b16 %v1174, %v1170
    %v1447 = vpack.c.b16 %v1175, %v1171
    %v1448 = vpack.c.b16 %v1180, %v1176
    %v1449 = vpack.c.b16 %v1181, %v1177
    %v1450 = vpack.c.b16 %v1182, %v1178
    %v1451 = vpack.c.b16 %v1183, %v1179
    %v1452 = vpack.c.b16 %v1188, %v1184
    %v1453 = vpack.c.b16 %v1189, %v1185
    %v1454 = vpack.c.b16 %v1190, %v1186
    %v1455 = vpack.c.b16 %v1191, %v1187
    %v1456 = vpack.c.b16 %v1196, %v1192
    %v1457 = vpack.c.b16 %v1197, %v1193
    %v1458 = vpack.c.b16 %v1198, %v1194
    %v1459 = vpack.c.b16 %v1199, %v1195
    %v1460 = vpack.c.b16 %v1204, %v1200
    %v1461 = vpack.c.b16 %v1205, %v1201
    %v1462 = vpack.c.b16 %v1206, %v1202
    %v1463 = vpack.c.b16 %v1207, %v1203
    %1720 = vmatprep.subr.bf16.mxu0 %v1237
    %1721 = vmatpush1.bf16.msra.mxu0 %v1236
    %1722 = vmatprep.subr.bf16.mxu0 %v1233
    %1723 = vmatpush1.bf16.msra.mxu0 %v1232
    %1724 = vmatprep.subr.bf16.mxu0 %v1229
    %1725 = vmatpush1.bf16.msra.mxu0 %v1228
    %1726 = vmatprep.subr.bf16.mxu0 %v1225
    %1727 = vmatpush1.bf16.msra.mxu0 %v1224
    %1728 = vmatprep.subr.bf16.mxu0 %v1221
    %1729 = vmatpush1.bf16.msra.mxu0 %v1220
    %1730 = vmatprep.subr.bf16.mxu0 %v1217
    %1731 = vmatpush1.bf16.msra.mxu0 %v1216
    %1732 = vmatprep.subr.bf16.mxu0 %v1213
    %1733 = vmatpush1.bf16.msra.mxu0 %v1212
    %1734 = vmatprep.subr.bf16.mxu0 %v1209
    %1735 = vmatpush1.bf16.msra.mxu0 %v1208
    %1736 = vmatprep.subr.bf16.mxu0 %v1269
    %1737 = vmatpush2.bf16.msra.mxu0 %v1268
    %1738 = vmatprep.subr.bf16.mxu0 %v1265
    %1739 = vmatpush2.bf16.msra.mxu0 %v1264
    %1740 = vmatprep.subr.bf16.mxu0 %v1261
    %1741 = vmatpush2.bf16.msra.mxu0 %v1260
    %1742 = vmatprep.subr.bf16.mxu0 %v1257
    %1743 = vmatpush2.bf16.msra.mxu0 %v1256
    %1744 = vmatprep.subr.bf16.mxu0 %v1253
    %1745 = vmatpush2.bf16.msra.mxu0 %v1252
    %1746 = vmatprep.subr.bf16.mxu0 %v1249
    %1747 = vmatpush2.bf16.msra.mxu0 %v1248
    %1748 = vmatprep.subr.bf16.mxu0 %v1245
    %1749 = vmatpush2.bf16.msra.mxu0 %v1244
    %1750 = vmatprep.subr.bf16.mxu0 %v1241
    %1751 = vmatpush2.bf16.msra.mxu0 %v1240
    %1752 = vmatprep.mubr.bf16.mxu0 %v425
    %1753 = vmatmul.mubr.bf16.gmra.mxu0 %v424
    %v1754 = vpop.f32.mrf.mxu0
    %v1755 = vadd.f32 %v383, %v1754
    %v1756 = vpop.f32.mrf.mxu0
    %v1757 = vadd.f32 %v387, %v1756
    %v1758 = vpop.f32.mrf.mxu0
    %v1759 = vadd.f32 %v383, %v1758
    %v1760 = vpop.f32.mrf.mxu0
    %v1761 = vadd.f32 %v387, %v1760
    %1762 = vdwg.mxu0
    %1763 = vmatprep.subr.bf16.mxu0 %v1301
    %1764 = vmatpush1.bf16.msra.mxu0 %v1300
    %1765 = vmatprep.subr.bf16.mxu0 %v1297
    %1766 = vmatpush1.bf16.msra.mxu0 %v1296
    %1767 = vmatprep.subr.bf16.mxu0 %v1293
    %1768 = vmatpush1.bf16.msra.mxu0 %v1292
    %1769 = vmatprep.subr.bf16.mxu0 %v1289
    %1770 = vmatpush1.bf16.msra.mxu0 %v1288
    %1771 = vmatprep.subr.bf16.mxu0 %v1285
    %1772 = vmatpush1.bf16.msra.mxu0 %v1284
    %1773 = vmatprep.subr.bf16.mxu0 %v1281
    %1774 = vmatpush1.bf16.msra.mxu0 %v1280
    %1775 = vmatprep.subr.bf16.mxu0 %v1277
    %1776 = vmatpush1.bf16.msra.mxu0 %v1276
    %1777 = vmatprep.subr.bf16.mxu0 %v1273
    %1778 = vmatpush1.bf16.msra.mxu0 %v1272
    %1779 = vmatprep.subr.bf16.mxu0 %v1333
    %1780 = vmatpush2.bf16.msra.mxu0 %v1332
    %1781 = vmatprep.subr.bf16.mxu0 %v1329
    %1782 = vmatpush2.bf16.msra.mxu0 %v1328
    %1783 = vmatprep.subr.bf16.mxu0 %v1325
    %1784 = vmatpush2.bf16.msra.mxu0 %v1324
    %1785 = vmatprep.subr.bf16.mxu0 %v1321
    %1786 = vmatpush2.bf16.msra.mxu0 %v1320
    %1787 = vmatprep.subr.bf16.mxu0 %v1317
    %1788 = vmatpush2.bf16.msra.mxu0 %v1316
    %1789 = vmatprep.subr.bf16.mxu0 %v1313
    %1790 = vmatpush2.bf16.msra.mxu0 %v1312
    %1791 = vmatprep.subr.bf16.mxu0 %v1309
    %1792 = vmatpush2.bf16.msra.mxu0 %v1308
    %1793 = vmatprep.subr.bf16.mxu0 %v1305
    %1794 = vmatpush2.bf16.msra.mxu0 %v1304
    %1795 = vmatprep.mubr.bf16.mxu0 %v427
    %1796 = vmatmul.mubr.bf16.gmra.mxu0 %v426
    %v1797 = vpop.f32.mrf.mxu0
    %v1798 = vadd.f32 %v1755, %v1797
    %v1799 = vpop.f32.mrf.mxu0
    %v1800 = vadd.f32 %v1757, %v1799
    %v1801 = vpop.f32.mrf.mxu0
    %v1802 = vadd.f32 %v1759, %v1801
    %v1803 = vpop.f32.mrf.mxu0
    %v1804 = vadd.f32 %v1761, %v1803
    %1805 = vdwg.mxu0
    %1806 = vmatprep.subr.bf16.mxu0 %v1365
    %1807 = vmatpush1.bf16.msra.mxu0 %v1364
    %1808 = vmatprep.subr.bf16.mxu0 %v1361
    %1809 = vmatpush1.bf16.msra.mxu0 %v1360
    %1810 = vmatprep.subr.bf16.mxu0 %v1357
    %1811 = vmatpush1.bf16.msra.mxu0 %v1356
    %1812 = vmatprep.subr.bf16.mxu0 %v1353
    %1813 = vmatpush1.bf16.msra.mxu0 %v1352
    %1814 = vmatprep.subr.bf16.mxu0 %v1349
    %1815 = vmatpush1.bf16.msra.mxu0 %v1348
    %1816 = vmatprep.subr.bf16.mxu0 %v1345
    %1817 = vmatpush1.bf16.msra.mxu0 %v1344
    %1818 = vmatprep.subr.bf16.mxu0 %v1341
    %1819 = vmatpush1.bf16.msra.mxu0 %v1340
    %1820 = vmatprep.subr.bf16.mxu0 %v1337
    %1821 = vmatpush1.bf16.msra.mxu0 %v1336
    %1822 = vmatprep.subr.bf16.mxu0 %v1397
    %1823 = vmatpush2.bf16.msra.mxu0 %v1396
    %1824 = vmatprep.subr.bf16.mxu0 %v1393
    %1825 = vmatpush2.bf16.msra.mxu0 %v1392
    %1826 = vmatprep.subr.bf16.mxu0 %v1389
    %1827 = vmatpush2.bf16.msra.mxu0 %v1388
    %1828 = vmatprep.subr.bf16.mxu0 %v1385
    %1829 = vmatpush2.bf16.msra.mxu0 %v1384
    %1830 = vmatprep.subr.bf16.mxu0 %v1381
    %1831 = vmatpush2.bf16.msra.mxu0 %v1380
    %1832 = vmatprep.subr.bf16.mxu0 %v1377
    %1833 = vmatpush2.bf16.msra.mxu0 %v1376
    %1834 = vmatprep.subr.bf16.mxu0 %v1373
    %1835 = vmatpush2.bf16.msra.mxu0 %v1372
    %1836 = vmatprep.subr.bf16.mxu0 %v1369
    %1837 = vmatpush2.bf16.msra.mxu0 %v1368
    %1838 = vmatprep.mubr.bf16.mxu0 %v429
    %1839 = vmatmul.mubr.bf16.gmra.mxu0 %v428
    %v1840 = vpop.f32.mrf.mxu0
    %v1841 = vadd.f32 %v1798, %v1840
    %v1842 = vpop.f32.mrf.mxu0
    %v1843 = vadd.f32 %v1800, %v1842
    %v1844 = vpop.f32.mrf.mxu0
    %v1845 = vadd.f32 %v1802, %v1844
    %v1846 = vpop.f32.mrf.mxu0
    %v1847 = vadd.f32 %v1804, %v1846
    %1848 = vdwg.mxu0
    %1849 = vmatprep.subr.bf16.mxu0 %v1429
    %1850 = vmatpush1.bf16.msra.mxu0 %v1428
    %1851 = vmatprep.subr.bf16.mxu0 %v1425
    %1852 = vmatpush1.bf16.msra.mxu0 %v1424
    %1853 = vmatprep.subr.bf16.mxu0 %v1421
    %1854 = vmatpush1.bf16.msra.mxu0 %v1420
    %1855 = vmatprep.subr.bf16.mxu0 %v1417
    %1856 = vmatpush1.bf16.msra.mxu0 %v1416
    %1857 = vmatprep.subr.bf16.mxu0 %v1413
    %1858 = vmatpush1.bf16.msra.mxu0 %v1412
    %1859 = vmatprep.subr.bf16.mxu0 %v1409
    %1860 = vmatpush1.bf16.msra.mxu0 %v1408
    %1861 = vmatprep.subr.bf16.mxu0 %v1405
    %1862 = vmatpush1.bf16.msra.mxu0 %v1404
    %1863 = vmatprep.subr.bf16.mxu0 %v1401
    %1864 = vmatpush1.bf16.msra.mxu0 %v1400
    %1865 = vmatprep.subr.bf16.mxu0 %v1461
    %1866 = vmatpush2.bf16.msra.mxu0 %v1460
    %1867 = vmatprep.subr.bf16.mxu0 %v1457
    %1868 = vmatpush2.bf16.msra.mxu0 %v1456
    %1869 = vmatprep.subr.bf16.mxu0 %v1453
    %1870 = vmatpush2.bf16.msra.mxu0 %v1452
    %1871 = vmatprep.subr.bf16.mxu0 %v1449
    %1872 = vmatpush2.bf16.msra.mxu0 %v1448
    %1873 = vmatprep.subr.bf16.mxu0 %v1445
    %1874 = vmatpush2.bf16.msra.mxu0 %v1444
    %1875 = vmatprep.subr.bf16.mxu0 %v1441
    %1876 = vmatpush2.bf16.msra.mxu0 %v1440
    %1877 = vmatprep.subr.bf16.mxu0 %v1437
    %1878 = vmatpush2.bf16.msra.mxu0 %v1436
    %1879 = vmatprep.subr.bf16.mxu0 %v1433
    %1880 = vmatpush2.bf16.msra.mxu0 %v1432
    %1881 = vmatprep.mubr.bf16.mxu0 %v431
    %1882 = vmatmul.mubr.bf16.gmra.mxu0 %v430
    %v1883 = vpop.f32.mrf.mxu0
    %v1884 = vadd.f32 %v1841, %v1883
    %v1885 = vpop.f32.mrf.mxu0
    %v1886 = vadd.f32 %v1843, %v1885
    %v1887 = vpop.f32.mrf.mxu0
    %v1888 = vadd.f32 %v1845, %v1887
    %v1889 = vpop.f32.mrf.mxu0
    %v1890 = vadd.f32 %v1847, %v1889
    %1891 = vdwg.mxu0
    %1892 = vmatprep.subr.bf16.mxu0 %v1239
    %1893 = vmatpush1.bf16.msra.mxu0 %v1238
    %1894 = vmatprep.subr.bf16.mxu0 %v1235
    %1895 = vmatpush1.bf16.msra.mxu0 %v1234
    %1896 = vmatprep.subr.bf16.mxu0 %v1231
    %1897 = vmatpush1.bf16.msra.mxu0 %v1230
    %1898 = vmatprep.subr.bf16.mxu0 %v1227
    %1899 = vmatpush1.bf16.msra.mxu0 %v1226
    %1900 = vmatprep.subr.bf16.mxu0 %v1223
    %1901 = vmatpush1.bf16.msra.mxu0 %v1222
    %1902 = vmatprep.subr.bf16.mxu0 %v1219
    %1903 = vmatpush1.bf16.msra.mxu0 %v1218
    %1904 = vmatprep.subr.bf16.mxu0 %v1215
    %1905 = vmatpush1.bf16.msra.mxu0 %v1214
    %1906 = vmatprep.subr.bf16.mxu0 %v1211
    %1907 = vmatpush1.bf16.msra.mxu0 %v1210
    %1908 = vmatprep.subr.bf16.mxu0 %v1271
    %1909 = vmatpush2.bf16.msra.mxu0 %v1270
    %1910 = vmatprep.subr.bf16.mxu0 %v1267
    %1911 = vmatpush2.bf16.msra.mxu0 %v1266
    %1912 = vmatprep.subr.bf16.mxu0 %v1263
    %1913 = vmatpush2.bf16.msra.mxu0 %v1262
    %1914 = vmatprep.subr.bf16.mxu0 %v1259
    %1915 = vmatpush2.bf16.msra.mxu0 %v1258
    %1916 = vmatprep.subr.bf16.mxu0 %v1255
    %1917 = vmatpush2.bf16.msra.mxu0 %v1254
    %1918 = vmatprep.subr.bf16.mxu0 %v1251
    %1919 = vmatpush2.bf16.msra.mxu0 %v1250
    %1920 = vmatprep.subr.bf16.mxu0 %v1247
    %1921 = vmatpush2.bf16.msra.mxu0 %v1246
    %1922 = vmatprep.subr.bf16.mxu0 %v1243
    %1923 = vmatpush2.bf16.msra.mxu0 %v1242
    %1924 = vmatprep.mubr.bf16.mxu0 %v425
    %1925 = vmatmul.mubr.bf16.gmra.mxu0 %v424
    %v1926 = vpop.f32.mrf.mxu0
    %v1927 = vadd.f32 %v391, %v1926
    %v1928 = vpop.f32.mrf.mxu0
    %v1929 = vadd.f32 %v395, %v1928
    %v1930 = vpop.f32.mrf.mxu0
    %v1931 = vadd.f32 %v391, %v1930
    %v1932 = vpop.f32.mrf.mxu0
    %v1933 = vadd.f32 %v395, %v1932
    %1934 = vdwg.mxu0
    %1935 = vmatprep.subr.bf16.mxu0 %v1303
    %1936 = vmatpush1.bf16.msra.mxu0 %v1302
    %1937 = vmatprep.subr.bf16.mxu0 %v1299
    %1938 = vmatpush1.bf16.msra.mxu0 %v1298
    %1939 = vmatprep.subr.bf16.mxu0 %v1295
    %1940 = vmatpush1.bf16.msra.mxu0 %v1294
    %1941 = vmatprep.subr.bf16.mxu0 %v1291
    %1942 = vmatpush1.bf16.msra.mxu0 %v1290
    %1943 = vmatprep.subr.bf16.mxu0 %v1287
    %1944 = vmatpush1.bf16.msra.mxu0 %v1286
    %1945 = vmatprep.subr.bf16.mxu0 %v1283
    %1946 = vmatpush1.bf16.msra.mxu0 %v1282
    %1947 = vmatprep.subr.bf16.mxu0 %v1279
    %1948 = vmatpush1.bf16.msra.mxu0 %v1278
    %1949 = vmatprep.subr.bf16.mxu0 %v1275
    %1950 = vmatpush1.bf16.msra.mxu0 %v1274
    %1951 = vmatprep.subr.bf16.mxu0 %v1335
    %1952 = vmatpush2.bf16.msra.mxu0 %v1334
    %1953 = vmatprep.subr.bf16.mxu0 %v1331
    %1954 = vmatpush2.bf16.msra.mxu0 %v1330
    %1955 = vmatprep.subr.bf16.mxu0 %v1327
    %1956 = vmatpush2.bf16.msra.mxu0 %v1326
    %1957 = vmatprep.subr.bf16.mxu0 %v1323
    %1958 = vmatpush2.bf16.msra.mxu0 %v1322
    %1959 = vmatprep.subr.bf16.mxu0 %v1319
    %1960 = vmatpush2.bf16.msra.mxu0 %v1318
    %1961 = vmatprep.subr.bf16.mxu0 %v1315
    %1962 = vmatpush2.bf16.msra.mxu0 %v1314
    %1963 = vmatprep.subr.bf16.mxu0 %v1311
    %1964 = vmatpush2.bf16.msra.mxu0 %v1310
    %1965 = vmatprep.subr.bf16.mxu0 %v1307
    %1966 = vmatpush2.bf16.msra.mxu0 %v1306
    %1967 = vmatprep.mubr.bf16.mxu0 %v427
    %1968 = vmatmul.mubr.bf16.gmra.mxu0 %v426
    %v1969 = vpop.f32.mrf.mxu0
    %v1970 = vadd.f32 %v1927, %v1969
    %v1971 = vpop.f32.mrf.mxu0
    %v1972 = vadd.f32 %v1929, %v1971
    %v1973 = vpop.f32.mrf.mxu0
    %v1974 = vadd.f32 %v1931, %v1973
    %v1975 = vpop.f32.mrf.mxu0
    %v1976 = vadd.f32 %v1933, %v1975
    %1977 = vdwg.mxu0
    %1978 = vmatprep.subr.bf16.mxu0 %v1367
    %1979 = vmatpush1.bf16.msra.mxu0 %v1366
    %1980 = vmatprep.subr.bf16.mxu0 %v1363
    %1981 = vmatpush1.bf16.msra.mxu0 %v1362
    %1982 = vmatprep.subr.bf16.mxu0 %v1359
    %1983 = vmatpush1.bf16.msra.mxu0 %v1358
    %1984 = vmatprep.subr.bf16.mxu0 %v1355
    %1985 = vmatpush1.bf16.msra.mxu0 %v1354
    %1986 = vmatprep.subr.bf16.mxu0 %v1351
    %1987 = vmatpush1.bf16.msra.mxu0 %v1350
    %1988 = vmatprep.subr.bf16.mxu0 %v1347
    %1989 = vmatpush1.bf16.msra.mxu0 %v1346
    %1990 = vmatprep.subr.bf16.mxu0 %v1343
    %1991 = vmatpush1.bf16.msra.mxu0 %v1342
    %1992 = vmatprep.subr.bf16.mxu0 %v1339
    %1993 = vmatpush1.bf16.msra.mxu0 %v1338
    %1994 = vmatprep.subr.bf16.mxu0 %v1399
    %1995 = vmatpush2.bf16.msra.mxu0 %v1398
    %1996 = vmatprep.subr.bf16.mxu0 %v1395
    %1997 = vmatpush2.bf16.msra.mxu0 %v1394
    %1998 = vmatprep.subr.bf16.mxu0 %v1391
    %1999 = vmatpush2.bf16.msra.mxu0 %v1390
    %2000 = vmatprep.subr.bf16.mxu0 %v1387
    %2001 = vmatpush2.bf16.msra.mxu0 %v1386
    %2002 = vmatprep.subr.bf16.mxu0 %v1383
    %2003 = vmatpush2.bf16.msra.mxu0 %v1382
    %2004 = vmatprep.subr.bf16.mxu0 %v1379
    %2005 = vmatpush2.bf16.msra.mxu0 %v1378
    %2006 = vmatprep.subr.bf16.mxu0 %v1375
    %2007 = vmatpush2.bf16.msra.mxu0 %v1374
    %2008 = vmatprep.subr.bf16.mxu0 %v1371
    %2009 = vmatpush2.bf16.msra.mxu0 %v1370
    %2010 = vmatprep.mubr.bf16.mxu0 %v429
    %2011 = vmatmul.mubr.bf16.gmra.mxu0 %v428
    %v2012 = vpop.f32.mrf.mxu0
    %v2013 = vadd.f32 %v1970, %v2012
    %v2014 = vpop.f32.mrf.mxu0
    %v2015 = vadd.f32 %v1972, %v2014
    %v2016 = vpop.f32.mrf.mxu0
    %v2017 = vadd.f32 %v1974, %v2016
    %v2018 = vpop.f32.mrf.mxu0
    %v2019 = vadd.f32 %v1976, %v2018
    %2020 = vdwg.mxu0
    %2021 = vmatprep.subr.bf16.mxu0 %v1431
    %2022 = vmatpush1.bf16.msra.mxu0 %v1430
    %2023 = vmatprep.subr.bf16.mxu0 %v1427
    %2024 = vmatpush1.bf16.msra.mxu0 %v1426
    %2025 = vmatprep.subr.bf16.mxu0 %v1423
    %2026 = vmatpush1.bf16.msra.mxu0 %v1422
    %2027 = vmatprep.subr.bf16.mxu0 %v1419
    %2028 = vmatpush1.bf16.msra.mxu0 %v1418
    %2029 = vmatprep.subr.bf16.mxu0 %v1415
    %2030 = vmatpush1.bf16.msra.mxu0 %v1414
    %2031 = vmatprep.subr.bf16.mxu0 %v1411
    %2032 = vmatpush1.bf16.msra.mxu0 %v1410
    %2033 = vmatprep.subr.bf16.mxu0 %v1407
    %2034 = vmatpush1.bf16.msra.mxu0 %v1406
    %2035 = vmatprep.subr.bf16.mxu0 %v1403
    %2036 = vmatpush1.bf16.msra.mxu0 %v1402
    %2037 = vmatprep.subr.bf16.mxu0 %v1463
    %2038 = vmatpush2.bf16.msra.mxu0 %v1462
    %2039 = vmatprep.subr.bf16.mxu0 %v1459
    %2040 = vmatpush2.bf16.msra.mxu0 %v1458
    %2041 = vmatprep.subr.bf16.mxu0 %v1455
    %2042 = vmatpush2.bf16.msra.mxu0 %v1454
    %2043 = vmatprep.subr.bf16.mxu0 %v1451
    %2044 = vmatpush2.bf16.msra.mxu0 %v1450
    %2045 = vmatprep.subr.bf16.mxu0 %v1447
    %2046 = vmatpush2.bf16.msra.mxu0 %v1446
    %2047 = vmatprep.subr.bf16.mxu0 %v1443
    %2048 = vmatpush2.bf16.msra.mxu0 %v1442
    %2049 = vmatprep.subr.bf16.mxu0 %v1439
    %2050 = vmatpush2.bf16.msra.mxu0 %v1438
    %2051 = vmatprep.subr.bf16.mxu0 %v1435
    %2052 = vmatpush2.bf16.msra.mxu0 %v1434
    %2053 = vmatprep.mubr.bf16.mxu0 %v431
    %2054 = vmatmul.mubr.bf16.gmra.mxu0 %v430
    %v2055 = vpop.f32.mrf.mxu0
    %v2056 = vadd.f32 %v2013, %v2055
    %v2057 = vpop.f32.mrf.mxu0
    %v2058 = vadd.f32 %v2015, %v2057
    %v2059 = vpop.f32.mrf.mxu0
    %v2060 = vadd.f32 %v2017, %v2059
    %v2061 = vpop.f32.mrf.mxu0
    %v2062 = vadd.f32 %v2019, %v2061
    %2063 = vdwg.mxu0
    %vm2064 = vcmp.gt.f32.partialorder %v1884, 0.0
    %vm2065 = vcmp.gt.f32.partialorder %v1886, 0.0
    %vm2066 = vcmp.gt.f32.partialorder %v2056, 0.0
    %vm2067 = vcmp.gt.f32.partialorder %v2058, 0.0
    %vm2068 = vcmp.gt.f32.partialorder %v1888, 0.0
    %vm2069 = vcmp.gt.f32.partialorder %v1890, 0.0
    %vm2070 = vcmp.gt.f32.partialorder %v2060, 0.0
    %vm2071 = vcmp.gt.f32.partialorder %v2062, 0.0
    %v2072 = vmul.f32 %v1884, 0.01
    %v2073 = vmul.f32 %v1886, 0.01
    %v2074 = vmul.f32 %v2056, 0.01
    %v2075 = vmul.f32 %v2058, 0.01
    %v2076 = vmul.f32 %v1888, 0.01
    %v2077 = vmul.f32 %v1890, 0.01
    %v2078 = vmul.f32 %v2060, 0.01
    %v2079 = vmul.f32 %v2062, 0.01
    %v2080 = vsel %vm2064, %v1884, %v2072
    %v2081 = vsel %vm2065, %v1886, %v2073
    %v2082 = vsel %vm2066, %v2056, %v2074
    %v2083 = vsel %vm2067, %v2058, %v2075
    %v2084 = vsel %vm2068, %v1888, %v2076
    %v2085 = vsel %vm2069, %v1890, %v2077
    %v2086 = vsel %vm2070, %v2060, %v2078
    %v2087 = vsel %vm2071, %v2062, %v2079
    %v2088 = vpack.c.bf16 %v2084, %v2080
    %v2089 = vpack.c.bf16 %v2085, %v2081
    %v2090 = vpack.c.bf16 %v2086, %v2082
    %v2091 = vpack.c.bf16 %v2087, %v2083
    %v2092 = vld [vmem:[#allocation8] sm:$0xf]
    %v2093 = vld [vmem:[#allocation8 + $0x4] sm:$0xf]
    %v2094 = vld [vmem:[#allocation8 + $0x8] sm:$0xf]
    %v2095 = vld [vmem:[#allocation8 + $0xc] sm:$0xf]
    %v2096 = vld [vmem:[#allocation8 + $0x10] sm:$0xf]
    %v2097 = vld [vmem:[#allocation8 + $0x14] sm:$0xf]
    %v2098 = vld [vmem:[#allocation8 + $0x18] sm:$0xf]
    %v2099 = vld [vmem:[#allocation8 + $0x1c] sm:$0xf]
    %v2100 = vld [vmem:[#allocation8 + $0x20] sm:$0xf]
    %v2101 = vld [vmem:[#allocation8 + $0x24] sm:$0xf]
    %v2102 = vld [vmem:[#allocation8 + $0x28] sm:$0xf]
    %v2103 = vld [vmem:[#allocation8 + $0x2c] sm:$0xf]
    %v2104 = vld [vmem:[#allocation8 + $0x30] sm:$0xf]
    %v2105 = vld [vmem:[#allocation8 + $0x34] sm:$0xf]
    %v2106 = vld [vmem:[#allocation8 + $0x38] sm:$0xf]
    %v2107 = vld [vmem:[#allocation8 + $0x3c] sm:$0xf]
    %v2108 = vld [vmem:[#allocation8 + $0x40] sm:$0xf]
    %v2109 = vld [vmem:[#allocation8 + $0x44] sm:$0xf]
    %v2110 = vld [vmem:[#allocation8 + $0x48] sm:$0xf]
    %v2111 = vld [vmem:[#allocation8 + $0x4c] sm:$0xf]
    %v2112 = vld [vmem:[#allocation8 + $0x50] sm:$0xf]
    %v2113 = vld [vmem:[#allocation8 + $0x54] sm:$0xf]
    %v2114 = vld [vmem:[#allocation8 + $0x58] sm:$0xf]
    %v2115 = vld [vmem:[#allocation8 + $0x5c] sm:$0xf]
    %v2116 = vld [vmem:[#allocation8 + $0x60] sm:$0xf]
    %v2117 = vld [vmem:[#allocation8 + $0x64] sm:$0xf]
    %v2118 = vld [vmem:[#allocation8 + $0x68] sm:$0xf]
    %v2119 = vld [vmem:[#allocation8 + $0x6c] sm:$0xf]
    %v2120 = vld [vmem:[#allocation8 + $0x70] sm:$0xf]
    %v2121 = vld [vmem:[#allocation8 + $0x74] sm:$0xf]
    %v2122 = vld [vmem:[#allocation8 + $0x78] sm:$0xf]
    %v2123 = vld [vmem:[#allocation8 + $0x7c] sm:$0xf]
    %v2124 = vld [vmem:[#allocation8 + $0x80] sm:$0xf]
    %v2125 = vld [vmem:[#allocation8 + $0x84] sm:$0xf]
    %v2126 = vld [vmem:[#allocation8 + $0x88] sm:$0xf]
    %v2127 = vld [vmem:[#allocation8 + $0x8c] sm:$0xf]
    %v2128 = vld [vmem:[#allocation8 + $0x90] sm:$0xf]
    %v2129 = vld [vmem:[#allocation8 + $0x94] sm:$0xf]
    %v2130 = vld [vmem:[#allocation8 + $0x98] sm:$0xf]
    %v2131 = vld [vmem:[#allocation8 + $0x9c] sm:$0xf]
    %v2132 = vld [vmem:[#allocation8 + $0xa0] sm:$0xf]
    %v2133 = vld [vmem:[#allocation8 + $0xa4] sm:$0xf]
    %v2134 = vld [vmem:[#allocation8 + $0xa8] sm:$0xf]
    %v2135 = vld [vmem:[#allocation8 + $0xac] sm:$0xf]
    %v2136 = vld [vmem:[#allocation8 + $0xb0] sm:$0xf]
    %v2137 = vld [vmem:[#allocation8 + $0xb4] sm:$0xf]
    %v2138 = vld [vmem:[#allocation8 + $0xb8] sm:$0xf]
    %v2139 = vld [vmem:[#allocation8 + $0xbc] sm:$0xf]
    %v2140 = vld [vmem:[#allocation8 + $0xc0] sm:$0xf]
    %v2141 = vld [vmem:[#allocation8 + $0xc4] sm:$0xf]
    %v2142 = vld [vmem:[#allocation8 + $0xc8] sm:$0xf]
    %v2143 = vld [vmem:[#allocation8 + $0xcc] sm:$0xf]
    %v2144 = vld [vmem:[#allocation8 + $0xd0] sm:$0xf]
    %v2145 = vld [vmem:[#allocation8 + $0xd4] sm:$0xf]
    %v2146 = vld [vmem:[#allocation8 + $0xd8] sm:$0xf]
    %v2147 = vld [vmem:[#allocation8 + $0xdc] sm:$0xf]
    %v2148 = vld [vmem:[#allocation8 + $0xe0] sm:$0xf]
    %v2149 = vld [vmem:[#allocation8 + $0xe4] sm:$0xf]
    %v2150 = vld [vmem:[#allocation8 + $0xe8] sm:$0xf]
    %v2151 = vld [vmem:[#allocation8 + $0xec] sm:$0xf]
    %v2152 = vld [vmem:[#allocation8 + $0xf0] sm:$0xf]
    %v2153 = vld [vmem:[#allocation8 + $0xf4] sm:$0xf]
    %v2154 = vld [vmem:[#allocation8 + $0xf8] sm:$0xf]
    %v2155 = vld [vmem:[#allocation8 + $0xfc] sm:$0xf]
    %v2156 = vld [vmem:[%s4] sm:$0x1]
    %v2158 = vlaneseq
    %v2159 = vshrl.u32 %v2158, 7
    %v2160 = vsub.s32 0, %v2159
    %v2161 = vrot.slane %v2156, %v2160
    %v2227 = vunpack.c.l.b16 %v2092
    %v2228 = vunpack.c.l.b16 %v2093
    %v2229 = vunpack.c.l.b16 %v2094
    %v2230 = vunpack.c.l.b16 %v2095
    %v2231 = vunpack.c.l.b16 %v2096
    %v2232 = vunpack.c.l.b16 %v2097
    %v2233 = vunpack.c.l.b16 %v2098
    %v2234 = vunpack.c.l.b16 %v2099
    %v2235 = vunpack.c.l.b16 %v2100
    %v2236 = vunpack.c.l.b16 %v2101
    %v2237 = vunpack.c.l.b16 %v2102
    %v2238 = vunpack.c.l.b16 %v2103
    %v2239 = vunpack.c.l.b16 %v2104
    %v2240 = vunpack.c.l.b16 %v2105
    %v2241 = vunpack.c.l.b16 %v2106
    %v2242 = vunpack.c.l.b16 %v2107
    %v2243 = vunpack.c.l.b16 %v2108
    %v2244 = vunpack.c.l.b16 %v2109
    %v2245 = vunpack.c.l.b16 %v2110
    %v2246 = vunpack.c.l.b16 %v2111
    %v2247 = vunpack.c.l.b16 %v2112
    %v2248 = vunpack.c.l.b16 %v2113
    %v2249 = vunpack.c.l.b16 %v2114
    %v2250 = vunpack.c.l.b16 %v2115
    %v2251 = vunpack.c.l.b16 %v2116
    %v2252 = vunpack.c.l.b16 %v2117
    %v2253 = vunpack.c.l.b16 %v2118
    %v2254 = vunpack.c.l.b16 %v2119
    %v2255 = vunpack.c.l.b16 %v2120
    %v2256 = vunpack.c.l.b16 %v2121
    %v2257 = vunpack.c.l.b16 %v2122
    %v2258 = vunpack.c.l.b16 %v2123
    %v2259 = vunpack.c.l.b16 %v2124
    %v2260 = vunpack.c.l.b16 %v2125
    %v2261 = vunpack.c.l.b16 %v2126
    %v2262 = vunpack.c.l.b16 %v2127
    %v2263 = vunpack.c.l.b16 %v2128
    %v2264 = vunpack.c.l.b16 %v2129
    %v2265 = vunpack.c.l.b16 %v2130
    %v2266 = vunpack.c.l.b16 %v2131
    %v2267 = vunpack.c.l.b16 %v2132
    %v2268 = vunpack.c.l.b16 %v2133
    %v2269 = vunpack.c.l.b16 %v2134
    %v2270 = vunpack.c.l.b16 %v2135
    %v2271 = vunpack.c.l.b16 %v2136
    %v2272 = vunpack.c.l.b16 %v2137
    %v2273 = vunpack.c.l.b16 %v2138
    %v2274 = vunpack.c.l.b16 %v2139
    %v2275 = vunpack.c.l.b16 %v2140
    %v2276 = vunpack.c.l.b16 %v2141
    %v2277 = vunpack.c.l.b16 %v2142
    %v2278 = vunpack.c.l.b16 %v2143
    %v2279 = vunpack.c.l.b16 %v2144
    %v2280 = vunpack.c.l.b16 %v2145
    %v2281 = vunpack.c.l.b16 %v2146
    %v2282 = vunpack.c.l.b16 %v2147
    %v2283 = vunpack.c.l.b16 %v2148
    %v2284 = vunpack.c.l.b16 %v2149
    %v2285 = vunpack.c.l.b16 %v2150
    %v2286 = vunpack.c.l.b16 %v2151
    %v2287 = vunpack.c.l.b16 %v2152
    %v2288 = vunpack.c.l.b16 %v2153
    %v2289 = vunpack.c.l.b16 %v2154
    %v2290 = vunpack.c.l.b16 %v2155
    %v2291 = vpack.c.b16 %v2228, %v2227
    %v2292 = vpack.c.b16 %v2230, %v2229
    %v2293 = vpack.c.b16 %v2232, %v2231
    %v2294 = vpack.c.b16 %v2234, %v2233
    %v2295 = vpack.c.b16 %v2236, %v2235
    %v2296 = vpack.c.b16 %v2238, %v2237
    %v2297 = vpack.c.b16 %v2240, %v2239
    %v2298 = vpack.c.b16 %v2242, %v2241
    %v2299 = vpack.c.b16 %v2244, %v2243
    %v2300 = vpack.c.b16 %v2246, %v2245
    %v2301 = vpack.c.b16 %v2248, %v2247
    %v2302 = vpack.c.b16 %v2250, %v2249
    %v2303 = vpack.c.b16 %v2252, %v2251
    %v2304 = vpack.c.b16 %v2254, %v2253
    %v2305 = vpack.c.b16 %v2256, %v2255
    %v2306 = vpack.c.b16 %v2258, %v2257
    %v2307 = vpack.c.b16 %v2260, %v2259
    %v2308 = vpack.c.b16 %v2262, %v2261
    %v2309 = vpack.c.b16 %v2264, %v2263
    %v2310 = vpack.c.b16 %v2266, %v2265
    %v2311 = vpack.c.b16 %v2268, %v2267
    %v2312 = vpack.c.b16 %v2270, %v2269
    %v2313 = vpack.c.b16 %v2272, %v2271
    %v2314 = vpack.c.b16 %v2274, %v2273
    %v2315 = vpack.c.b16 %v2276, %v2275
    %v2316 = vpack.c.b16 %v2278, %v2277
    %v2317 = vpack.c.b16 %v2280, %v2279
    %v2318 = vpack.c.b16 %v2282, %v2281
    %v2319 = vpack.c.b16 %v2284, %v2283
    %v2320 = vpack.c.b16 %v2286, %v2285
    %v2321 = vpack.c.b16 %v2288, %v2287
    %v2322 = vpack.c.b16 %v2290, %v2289
    %2355 = vmatprep.subr.bf16.mxu0 0
    %2356 = vmatpush1.bf16.msra.mxu0 %v2298
    %2357 = vmatprep.subr.bf16.mxu0 0
    %2358 = vmatpush1.bf16.msra.mxu0 %v2297
    %2359 = vmatprep.subr.bf16.mxu0 0
    %2360 = vmatpush1.bf16.msra.mxu0 %v2296
    %2361 = vmatprep.subr.bf16.mxu0 0
    %2362 = vmatpush1.bf16.msra.mxu0 %v2295
    %2363 = vmatprep.subr.bf16.mxu0 0
    %2364 = vmatpush1.bf16.msra.mxu0 %v2294
    %2365 = vmatprep.subr.bf16.mxu0 0
    %2366 = vmatpush1.bf16.msra.mxu0 %v2293
    %2367 = vmatprep.subr.bf16.mxu0 0
    %2368 = vmatpush1.bf16.msra.mxu0 %v2292
    %2369 = vmatprep.subr.bf16.mxu0 0
    %2370 = vmatpush1.bf16.msra.mxu0 %v2291
    %2371 = vmatprep.subr.bf16.mxu0 0
    %2372 = vmatpush2.bf16.msra.mxu0 %v2306
    %2373 = vmatprep.subr.bf16.mxu0 0
    %2374 = vmatpush2.bf16.msra.mxu0 %v2305
    %2375 = vmatprep.subr.bf16.mxu0 0
    %2376 = vmatpush2.bf16.msra.mxu0 %v2304
    %2377 = vmatprep.subr.bf16.mxu0 0
    %2378 = vmatpush2.bf16.msra.mxu0 %v2303
    %2379 = vmatprep.subr.bf16.mxu0 0
    %2380 = vmatpush2.bf16.msra.mxu0 %v2302
    %2381 = vmatprep.subr.bf16.mxu0 0
    %2382 = vmatpush2.bf16.msra.mxu0 %v2301
    %2383 = vmatprep.subr.bf16.mxu0 0
    %2384 = vmatpush2.bf16.msra.mxu0 %v2300
    %2385 = vmatprep.subr.bf16.mxu0 0
    %2386 = vmatpush2.bf16.msra.mxu0 %v2299
    %2387 = vmatprep.mubr.bf16.mxu0 %v2089
    %2388 = vmatmul.mubr.bf16.gmra.mxu0 %v2088
    %v2389 = vpop.f32.mrf.mxu0
    %v2390 = vadd.f32 %v2161, %v2389
    %v2391 = vpop.f32.mrf.mxu0
    %v2392 = vpop.f32.mrf.mxu0
    %v2393 = vadd.f32 %v2161, %v2392
    %v2394 = vpop.f32.mrf.mxu0
    %2395 = vdwg.mxu0
    %2396 = vmatprep.subr.bf16.mxu0 0
    %2397 = vmatpush1.bf16.msra.mxu0 %v2314
    %2398 = vmatprep.subr.bf16.mxu0 0
    %2399 = vmatpush1.bf16.msra.mxu0 %v2313
    %2400 = vmatprep.subr.bf16.mxu0 0
    %2401 = vmatpush1.bf16.msra.mxu0 %v2312
    %2402 = vmatprep.subr.bf16.mxu0 0
    %2403 = vmatpush1.bf16.msra.mxu0 %v2311
    %2404 = vmatprep.subr.bf16.mxu0 0
    %2405 = vmatpush1.bf16.msra.mxu0 %v2310
    %2406 = vmatprep.subr.bf16.mxu0 0
    %2407 = vmatpush1.bf16.msra.mxu0 %v2309
    %2408 = vmatprep.subr.bf16.mxu0 0
    %2409 = vmatpush1.bf16.msra.mxu0 %v2308
    %2410 = vmatprep.subr.bf16.mxu0 0
    %2411 = vmatpush1.bf16.msra.mxu0 %v2307
    %2412 = vmatprep.subr.bf16.mxu0 0
    %2413 = vmatpush2.bf16.msra.mxu0 %v2322
    %2414 = vmatprep.subr.bf16.mxu0 0
    %2415 = vmatpush2.bf16.msra.mxu0 %v2321
    %2416 = vmatprep.subr.bf16.mxu0 0
    %2417 = vmatpush2.bf16.msra.mxu0 %v2320
    %2418 = vmatprep.subr.bf16.mxu0 0
    %2419 = vmatpush2.bf16.msra.mxu0 %v2319
    %2420 = vmatprep.subr.bf16.mxu0 0
    %2421 = vmatpush2.bf16.msra.mxu0 %v2318
    %2422 = vmatprep.subr.bf16.mxu0 0
    %2423 = vmatpush2.bf16.msra.mxu0 %v2317
    %2424 = vmatprep.subr.bf16.mxu0 0
    %2425 = vmatpush2.bf16.msra.mxu0 %v2316
    %2426 = vmatprep.subr.bf16.mxu0 0
    %2427 = vmatpush2.bf16.msra.mxu0 %v2315
    %2428 = vmatprep.mubr.bf16.mxu0 %v2091
    %2429 = vmatmul.mubr.bf16.gmra.mxu0 %v2090
    %v2430 = vpop.f32.mrf.mxu0
    %v2431 = vadd.f32 %v2390, %v2430
    %v2432 = vpop.f32.mrf.mxu0
    %v2433 = vpop.f32.mrf.mxu0
    %v2434 = vadd.f32 %v2393, %v2433
    %v2435 = vpop.f32.mrf.mxu0
    %2436 = vdwg.mxu0
    %v2437 = vpack.c.bf16 %v2434, %v2431
    %v2438 = vld [vmem:[#allocation10] sm:$0xff]
    %v2439 = vld [vmem:[#allocation10 + $0x8] sm:$0xff]
    %v2440 = vld [vmem:[#allocation10 + $0x10] sm:$0xff]
    %v2441 = vld [vmem:[#allocation10 + $0x18] sm:$0xff]
    %v2442 = vld [vmem:[#allocation10 + $0x20] sm:$0xff]
    %v2443 = vld [vmem:[#allocation10 + $0x28] sm:$0xff]
    %v2444 = vld [vmem:[#allocation10 + $0x30] sm:$0xff]
    %v2445 = vld [vmem:[#allocation10 + $0x38] sm:$0xff]
    %v2446 = vld [vmem:[#allocation10 + $0x40] sm:$0xff]
    %v2447 = vld [vmem:[#allocation10 + $0x48] sm:$0xff]
    %v2448 = vld [vmem:[#allocation10 + $0x50] sm:$0xff]
    %v2449 = vld [vmem:[#allocation10 + $0x58] sm:$0xff]
    %v2450 = vld [vmem:[#allocation10 + $0x60] sm:$0xff]
    %v2451 = vld [vmem:[#allocation10 + $0x68] sm:$0xff]
    %v2452 = vld [vmem:[#allocation10 + $0x70] sm:$0xff]
    %v2453 = vld [vmem:[#allocation10 + $0x78] sm:$0xff]
    %v2454 = vld [vmem:[#allocation10 + $0x80] sm:$0xff]
    %v2455 = vld [vmem:[#allocation10 + $0x88] sm:$0xff]
    %v2456 = vld [vmem:[#allocation10 + $0x90] sm:$0xff]
    %v2457 = vld [vmem:[#allocation10 + $0x98] sm:$0xff]
    %v2458 = vld [vmem:[#allocation10 + $0xa0] sm:$0xff]
    %v2459 = vld [vmem:[#allocation10 + $0xa8] sm:$0xff]
    %v2460 = vld [vmem:[#allocation10 + $0xb0] sm:$0xff]
    %v2461 = vld [vmem:[#allocation10 + $0xb8] sm:$0xff]
    %v2462 = vld [vmem:[#allocation10 + $0xc0] sm:$0xff]
    %v2463 = vld [vmem:[#allocation10 + $0xc8] sm:$0xff]
    %v2464 = vld [vmem:[#allocation10 + $0xd0] sm:$0xff]
    %v2465 = vld [vmem:[#allocation10 + $0xd8] sm:$0xff]
    %v2466 = vld [vmem:[#allocation10 + $0xe0] sm:$0xff]
    %v2467 = vld [vmem:[#allocation10 + $0xe8] sm:$0xff]
    %v2468 = vld [vmem:[#allocation10 + $0xf0] sm:$0xff]
    %v2469 = vld [vmem:[#allocation10 + $0xf8] sm:$0xff]
    %v2470 = vld [vmem:[%s6] sm:$0xf]
    %v2472 = vlaneseq
    %v2473 = vshrl.u32 %v2472, 7
    %v2474 = vsub.s32 0, %v2473
    %v2475 = vrot.slane %v2470, %v2474
    %v2476 = vlaneseq
    %v2477 = vshrl.u32 %v2476, 7
    %v2478 = vsub.s32 1, %v2477
    %v2479 = vrot.slane %v2470, %v2478
    %v2480 = vlaneseq
    %v2481 = vshrl.u32 %v2480, 7
    %v2482 = vsub.s32 2, %v2481
    %v2483 = vrot.slane %v2470, %v2482
    %v2484 = vlaneseq
    %v2485 = vshrl.u32 %v2484, 7
    %v2486 = vsub.s32 3, %v2485
    %v2487 = vrot.slane %v2470, %v2486
    %v2524 = vunpack.c.l.b16 %v2438
    %v2525 = vunpack.c.h.b16 %v2438
    %v2526 = vunpack.c.l.b16 %v2439
    %v2527 = vunpack.c.h.b16 %v2439
    %v2528 = vunpack.c.l.b16 %v2440
    %v2529 = vunpack.c.h.b16 %v2440
    %v2530 = vunpack.c.l.b16 %v2441
    %v2531 = vunpack.c.h.b16 %v2441
    %v2532 = vunpack.c.l.b16 %v2442
    %v2533 = vunpack.c.h.b16 %v2442
    %v2534 = vunpack.c.l.b16 %v2443
    %v2535 = vunpack.c.h.b16 %v2443
    %v2536 = vunpack.c.l.b16 %v2444
    %v2537 = vunpack.c.h.b16 %v2444
    %v2538 = vunpack.c.l.b16 %v2445
    %v2539 = vunpack.c.h.b16 %v2445
    %v2540 = vunpack.c.l.b16 %v2446
    %v2541 = vunpack.c.h.b16 %v2446
    %v2542 = vunpack.c.l.b16 %v2447
    %v2543 = vunpack.c.h.b16 %v2447
    %v2544 = vunpack.c.l.b16 %v2448
    %v2545 = vunpack.c.h.b16 %v2448
    %v2546 = vunpack.c.l.b16 %v2449
    %v2547 = vunpack.c.h.b16 %v2449
    %v2548 = vunpack.c.l.b16 %v2450
    %v2549 = vunpack.c.h.b16 %v2450
    %v2550 = vunpack.c.l.b16 %v2451
    %v2551 = vunpack.c.h.b16 %v2451
    %v2552 = vunpack.c.l.b16 %v2452
    %v2553 = vunpack.c.h.b16 %v2452
    %v2554 = vunpack.c.l.b16 %v2453
    %v2555 = vunpack.c.h.b16 %v2453
    %v2556 = vunpack.c.l.b16 %v2454
    %v2557 = vunpack.c.h.b16 %v2454
    %v2558 = vunpack.c.l.b16 %v2455
    %v2559 = vunpack.c.h.b16 %v2455
    %v2560 = vunpack.c.l.b16 %v2456
    %v2561 = vunpack.c.h.b16 %v2456
    %v2562 = vunpack.c.l.b16 %v2457
    %v2563 = vunpack.c.h.b16 %v2457
    %v2564 = vunpack.c.l.b16 %v2458
    %v2565 = vunpack.c.h.b16 %v2458
    %v2566 = vunpack.c.l.b16 %v2459
    %v2567 = vunpack.c.h.b16 %v2459
    %v2568 = vunpack.c.l.b16 %v2460
    %v2569 = vunpack.c.h.b16 %v2460
    %v2570 = vunpack.c.l.b16 %v2461
    %v2571 = vunpack.c.h.b16 %v2461
    %v2572 = vunpack.c.l.b16 %v2462
    %v2573 = vunpack.c.h.b16 %v2462
    %v2574 = vunpack.c.l.b16 %v2463
    %v2575 = vunpack.c.h.b16 %v2463
    %v2576 = vunpack.c.l.b16 %v2464
    %v2577 = vunpack.c.h.b16 %v2464
    %v2578 = vunpack.c.l.b16 %v2465
    %v2579 = vunpack.c.h.b16 %v2465
    %v2580 = vunpack.c.l.b16 %v2466
    %v2581 = vunpack.c.h.b16 %v2466
    %v2582 = vunpack.c.l.b16 %v2467
    %v2583 = vunpack.c.h.b16 %v2467
    %v2584 = vunpack.c.l.b16 %v2468
    %v2585 = vunpack.c.h.b16 %v2468
    %v2586 = vunpack.c.l.b16 %v2469
    %v2587 = vunpack.c.h.b16 %v2469
    %v2588 = vpack.c.b16 %v2528, %v2524
    %v2589 = vpack.c.b16 %v2529, %v2525
    %v2590 = vpack.c.b16 %v2530, %v2526
    %v2591 = vpack.c.b16 %v2531, %v2527
    %v2592 = vpack.c.b16 %v2536, %v2532
    %v2593 = vpack.c.b16 %v2537, %v2533
    %v2594 = vpack.c.b16 %v2538, %v2534
    %v2595 = vpack.c.b16 %v2539, %v2535
    %v2596 = vpack.c.b16 %v2544, %v2540
    %v2597 = vpack.c.b16 %v2545, %v2541
    %v2598 = vpack.c.b16 %v2546, %v2542
    %v2599 = vpack.c.b16 %v2547, %v2543
    %v2600 = vpack.c.b16 %v2552, %v2548
    %v2601 = vpack.c.b16 %v2553, %v2549
    %v2602 = vpack.c.b16 %v2554, %v2550
    %v2603 = vpack.c.b16 %v2555, %v2551
    %v2604 = vpack.c.b16 %v2560, %v2556
    %v2605 = vpack.c.b16 %v2561, %v2557
    %v2606 = vpack.c.b16 %v2562, %v2558
    %v2607 = vpack.c.b16 %v2563, %v2559
    %v2608 = vpack.c.b16 %v2568, %v2564
    %v2609 = vpack.c.b16 %v2569, %v2565
    %v2610 = vpack.c.b16 %v2570, %v2566
    %v2611 = vpack.c.b16 %v2571, %v2567
    %v2612 = vpack.c.b16 %v2576, %v2572
    %v2613 = vpack.c.b16 %v2577, %v2573
    %v2614 = vpack.c.b16 %v2578, %v2574
    %v2615 = vpack.c.b16 %v2579, %v2575
    %v2616 = vpack.c.b16 %v2584, %v2580
    %v2617 = vpack.c.b16 %v2585, %v2581
    %v2618 = vpack.c.b16 %v2586, %v2582
    %v2619 = vpack.c.b16 %v2587, %v2583
    %2652 = vmatprep.subr.bf16.mxu0 %v2617
    %2653 = vmatpush1.bf16.msra.mxu0 %v2616
    %2654 = vmatprep.subr.bf16.mxu0 %v2613
    %2655 = vmatpush1.bf16.msra.mxu0 %v2612
    %2656 = vmatprep.subr.bf16.mxu0 %v2609
    %2657 = vmatpush1.bf16.msra.mxu0 %v2608
    %2658 = vmatprep.subr.bf16.mxu0 %v2605
    %2659 = vmatpush1.bf16.msra.mxu0 %v2604
    %2660 = vmatprep.subr.bf16.mxu0 %v2601
    %2661 = vmatpush1.bf16.msra.mxu0 %v2600
    %2662 = vmatprep.subr.bf16.mxu0 %v2597
    %2663 = vmatpush1.bf16.msra.mxu0 %v2596
    %2664 = vmatprep.subr.bf16.mxu0 %v2593
    %2665 = vmatpush1.bf16.msra.mxu0 %v2592
    %2666 = vmatprep.subr.bf16.mxu0 %v2589
    %2667 = vmatpush1.bf16.msra.mxu0 %v2588
    %2668 = vmatprep.subr.bf16.mxu0 0
    %2669 = vmatpush2.bf16.msra.mxu0 0
    %2670 = vmatprep.subr.bf16.mxu0 0
    %2671 = vmatpush2.bf16.msra.mxu0 0
    %2672 = vmatprep.subr.bf16.mxu0 0
    %2673 = vmatpush2.bf16.msra.mxu0 0
    %2674 = vmatprep.subr.bf16.mxu0 0
    %2675 = vmatpush2.bf16.msra.mxu0 0
    %2676 = vmatprep.subr.bf16.mxu0 0
    %2677 = vmatpush2.bf16.msra.mxu0 0
    %2678 = vmatprep.subr.bf16.mxu0 0
    %2679 = vmatpush2.bf16.msra.mxu0 0
    %2680 = vmatprep.subr.bf16.mxu0 0
    %2681 = vmatpush2.bf16.msra.mxu0 0
    %2682 = vmatprep.subr.bf16.mxu0 0
    %2683 = vmatpush2.bf16.msra.mxu0 0
    %2684 = vmatprep.mubr.bf16.mxu0 0
    %2685 = vmatmul.mubr.bf16.gmra.mxu0 %v2437
    %v2686 = vpop.f32.mrf.mxu0
    %v2687 = vadd.f32 %v2475, %v2686
    %v2688 = vpop.f32.mrf.mxu0
    %v2689 = vadd.f32 %v2479, %v2688
    %v2690 = vpop.f32.mrf.mxu0
    %v2691 = vadd.f32 %v2475, %v2690
    %v2692 = vpop.f32.mrf.mxu0
    %v2693 = vadd.f32 %v2479, %v2692
    %2694 = vdwg.mxu0
    %2695 = vmatprep.subr.bf16.mxu0 %v2619
    %2696 = vmatpush1.bf16.msra.mxu0 %v2618
    %2697 = vmatprep.subr.bf16.mxu0 %v2615
    %2698 = vmatpush1.bf16.msra.mxu0 %v2614
    %2699 = vmatprep.subr.bf16.mxu0 %v2611
    %2700 = vmatpush1.bf16.msra.mxu0 %v2610
    %2701 = vmatprep.subr.bf16.mxu0 %v2607
    %2702 = vmatpush1.bf16.msra.mxu0 %v2606
    %2703 = vmatprep.subr.bf16.mxu0 %v2603
    %2704 = vmatpush1.bf16.msra.mxu0 %v2602
    %2705 = vmatprep.subr.bf16.mxu0 %v2599
    %2706 = vmatpush1.bf16.msra.mxu0 %v2598
    %2707 = vmatprep.subr.bf16.mxu0 %v2595
    %2708 = vmatpush1.bf16.msra.mxu0 %v2594
    %2709 = vmatprep.subr.bf16.mxu0 %v2591
    %2710 = vmatpush1.bf16.msra.mxu0 %v2590
    %2711 = vmatprep.subr.bf16.mxu0 0
    %2712 = vmatpush2.bf16.msra.mxu0 0
    %2713 = vmatprep.subr.bf16.mxu0 0
    %2714 = vmatpush2.bf16.msra.mxu0 0
    %2715 = vmatprep.subr.bf16.mxu0 0
    %2716 = vmatpush2.bf16.msra.mxu0 0
    %2717 = vmatprep.subr.bf16.mxu0 0
    %2718 = vmatpush2.bf16.msra.mxu0 0
    %2719 = vmatprep.subr.bf16.mxu0 0
    %2720 = vmatpush2.bf16.msra.mxu0 0
    %2721 = vmatprep.subr.bf16.mxu0 0
    %2722 = vmatpush2.bf16.msra.mxu0 0
    %2723 = vmatprep.subr.bf16.mxu0 0
    %2724 = vmatpush2.bf16.msra.mxu0 0
    %2725 = vmatprep.subr.bf16.mxu0 0
    %2726 = vmatpush2.bf16.msra.mxu0 0
    %2727 = vmatprep.mubr.bf16.mxu0 0
    %2728 = vmatmul.mubr.bf16.gmra.mxu0 %v2437
    %v2729 = vpop.f32.mrf.mxu0
    %v2730 = vadd.f32 %v2483, %v2729
    %v2731 = vpop.f32.mrf.mxu0
    %v2732 = vadd.f32 %v2487, %v2731
    %v2733 = vpop.f32.mrf.mxu0
    %v2734 = vadd.f32 %v2483, %v2733
    %v2735 = vpop.f32.mrf.mxu0
    %v2736 = vadd.f32 %v2487, %v2735
    %2737 = vdwg.mxu0
    %vm2738 = vcmp.gt.f32.partialorder %v2687, 0.0
    %vm2739 = vcmp.gt.f32.partialorder %v2689, 0.0
    %vm2740 = vcmp.gt.f32.partialorder %v2730, 0.0
    %vm2741 = vcmp.gt.f32.partialorder %v2732, 0.0
    %vm2742 = vcmp.gt.f32.partialorder %v2691, 0.0
    %vm2743 = vcmp.gt.f32.partialorder %v2693, 0.0
    %vm2744 = vcmp.gt.f32.partialorder %v2734, 0.0
    %vm2745 = vcmp.gt.f32.partialorder %v2736, 0.0
    %v2746 = vmul.f32 %v2687, 0.01
    %v2747 = vmul.f32 %v2689, 0.01
    %v2748 = vmul.f32 %v2730, 0.01
    %v2749 = vmul.f32 %v2732, 0.01
    %v2750 = vmul.f32 %v2691, 0.01
    %v2751 = vmul.f32 %v2693, 0.01
    %v2752 = vmul.f32 %v2734, 0.01
    %v2753 = vmul.f32 %v2736, 0.01
    %v2754 = vsel %vm2738, %v2687, %v2746
    %v2755 = vsel %vm2739, %v2689, %v2747
    %v2756 = vsel %vm2740, %v2730, %v2748
    %v2757 = vsel %vm2741, %v2732, %v2749
    %v2758 = vsel %vm2742, %v2691, %v2750
    %v2759 = vsel %vm2743, %v2693, %v2751
    %v2760 = vsel %vm2744, %v2734, %v2752
    %v2761 = vsel %vm2745, %v2736, %v2753
    %v2762 = vpack.c.bf16 %v2758, %v2754
    %v2763 = vpack.c.bf16 %v2759, %v2755
    %v2764 = vpack.c.bf16 %v2760, %v2756
    %v2765 = vpack.c.bf16 %v2761, %v2757
    %v2766 = vld [vmem:[#allocation11] sm:$0xff]
    %v2767 = vld [vmem:[#allocation11 + $0x8] sm:$0xff]
    %v2768 = vld [vmem:[#allocation11 + $0x10] sm:$0xff]
    %v2769 = vld [vmem:[#allocation11 + $0x18] sm:$0xff]
    %v2770 = vld [vmem:[#allocation11 + $0x20] sm:$0xff]
    %v2771 = vld [vmem:[#allocation11 + $0x28] sm:$0xff]
    %v2772 = vld [vmem:[#allocation11 + $0x30] sm:$0xff]
    %v2773 = vld [vmem:[#allocation11 + $0x38] sm:$0xff]
    %v2774 = vld [vmem:[#allocation11 + $0x40] sm:$0xff]
    %v2775 = vld [vmem:[#allocation11 + $0x48] sm:$0xff]
    %v2776 = vld [vmem:[#allocation11 + $0x50] sm:$0xff]
    %v2777 = vld [vmem:[#allocation11 + $0x58] sm:$0xff]
    %v2778 = vld [vmem:[#allocation11 + $0x60] sm:$0xff]
    %v2779 = vld [vmem:[#allocation11 + $0x68] sm:$0xff]
    %v2780 = vld [vmem:[#allocation11 + $0x70] sm:$0xff]
    %v2781 = vld [vmem:[#allocation11 + $0x78] sm:$0xff]
    %v2782 = vld [vmem:[#allocation11 + $0x80] sm:$0xff]
    %v2783 = vld [vmem:[#allocation11 + $0x88] sm:$0xff]
    %v2784 = vld [vmem:[#allocation11 + $0x90] sm:$0xff]
    %v2785 = vld [vmem:[#allocation11 + $0x98] sm:$0xff]
    %v2786 = vld [vmem:[#allocation11 + $0xa0] sm:$0xff]
    %v2787 = vld [vmem:[#allocation11 + $0xa8] sm:$0xff]
    %v2788 = vld [vmem:[#allocation11 + $0xb0] sm:$0xff]
    %v2789 = vld [vmem:[#allocation11 + $0xb8] sm:$0xff]
    %v2790 = vld [vmem:[#allocation11 + $0xc0] sm:$0xff]
    %v2791 = vld [vmem:[#allocation11 + $0xc8] sm:$0xff]
    %v2792 = vld [vmem:[#allocation11 + $0xd0] sm:$0xff]
    %v2793 = vld [vmem:[#allocation11 + $0xd8] sm:$0xff]
    %v2794 = vld [vmem:[#allocation11 + $0xe0] sm:$0xff]
    %v2795 = vld [vmem:[#allocation11 + $0xe8] sm:$0xff]
    %v2796 = vld [vmem:[#allocation11 + $0xf0] sm:$0xff]
    %v2797 = vld [vmem:[#allocation11 + $0xf8] sm:$0xff]
    %v2798 = vld [vmem:[#allocation11 + $0x100] sm:$0xff]
    %v2799 = vld [vmem:[#allocation11 + $0x108] sm:$0xff]
    %v2800 = vld [vmem:[#allocation11 + $0x110] sm:$0xff]
    %v2801 = vld [vmem:[#allocation11 + $0x118] sm:$0xff]
    %v2802 = vld [vmem:[#allocation11 + $0x120] sm:$0xff]
    %v2803 = vld [vmem:[#allocation11 + $0x128] sm:$0xff]
    %v2804 = vld [vmem:[#allocation11 + $0x130] sm:$0xff]
    %v2805 = vld [vmem:[#allocation11 + $0x138] sm:$0xff]
    %v2806 = vld [vmem:[#allocation11 + $0x140] sm:$0xff]
    %v2807 = vld [vmem:[#allocation11 + $0x148] sm:$0xff]
    %v2808 = vld [vmem:[#allocation11 + $0x150] sm:$0xff]
    %v2809 = vld [vmem:[#allocation11 + $0x158] sm:$0xff]
    %v2810 = vld [vmem:[#allocation11 + $0x160] sm:$0xff]
    %v2811 = vld [vmem:[#allocation11 + $0x168] sm:$0xff]
    %v2812 = vld [vmem:[#allocation11 + $0x170] sm:$0xff]
    %v2813 = vld [vmem:[#allocation11 + $0x178] sm:$0xff]
    %v2814 = vld [vmem:[#allocation11 + $0x180] sm:$0xff]
    %v2815 = vld [vmem:[#allocation11 + $0x188] sm:$0xff]
    %v2816 = vld [vmem:[#allocation11 + $0x190] sm:$0xff]
    %v2817 = vld [vmem:[#allocation11 + $0x198] sm:$0xff]
    %v2818 = vld [vmem:[#allocation11 + $0x1a0] sm:$0xff]
    %v2819 = vld [vmem:[#allocation11 + $0x1a8] sm:$0xff]
    %v2820 = vld [vmem:[#allocation11 + $0x1b0] sm:$0xff]
    %v2821 = vld [vmem:[#allocation11 + $0x1b8] sm:$0xff]
    %v2822 = vld [vmem:[#allocation11 + $0x1c0] sm:$0xff]
    %v2823 = vld [vmem:[#allocation11 + $0x1c8] sm:$0xff]
    %v2824 = vld [vmem:[#allocation11 + $0x1d0] sm:$0xff]
    %v2825 = vld [vmem:[#allocation11 + $0x1d8] sm:$0xff]
    %v2826 = vld [vmem:[#allocation11 + $0x1e0] sm:$0xff]
    %v2827 = vld [vmem:[#allocation11 + $0x1e8] sm:$0xff]
    %v2828 = vld [vmem:[#allocation11 + $0x1f0] sm:$0xff]
    %v2829 = vld [vmem:[#allocation11 + $0x1f8] sm:$0xff]
    %v2830 = vld [vmem:[#allocation11 + $0x200] sm:$0xff]
    %v2831 = vld [vmem:[#allocation11 + $0x208] sm:$0xff]
    %v2832 = vld [vmem:[#allocation11 + $0x210] sm:$0xff]
    %v2833 = vld [vmem:[#allocation11 + $0x218] sm:$0xff]
    %v2834 = vld [vmem:[#allocation11 + $0x220] sm:$0xff]
    %v2835 = vld [vmem:[#allocation11 + $0x228] sm:$0xff]
    %v2836 = vld [vmem:[#allocation11 + $0x230] sm:$0xff]
    %v2837 = vld [vmem:[#allocation11 + $0x238] sm:$0xff]
    %v2838 = vld [vmem:[#allocation11 + $0x240] sm:$0xff]
    %v2839 = vld [vmem:[#allocation11 + $0x248] sm:$0xff]
    %v2840 = vld [vmem:[#allocation11 + $0x250] sm:$0xff]
    %v2841 = vld [vmem:[#allocation11 + $0x258] sm:$0xff]
    %v2842 = vld [vmem:[#allocation11 + $0x260] sm:$0xff]
    %v2843 = vld [vmem:[#allocation11 + $0x268] sm:$0xff]
    %v2844 = vld [vmem:[#allocation11 + $0x270] sm:$0xff]
    %v2845 = vld [vmem:[#allocation11 + $0x278] sm:$0xff]
    %v2846 = vld [vmem:[#allocation11 + $0x280] sm:$0xff]
    %v2847 = vld [vmem:[#allocation11 + $0x288] sm:$0xff]
    %v2848 = vld [vmem:[#allocation11 + $0x290] sm:$0xff]
    %v2849 = vld [vmem:[#allocation11 + $0x298] sm:$0xff]
    %v2850 = vld [vmem:[#allocation11 + $0x2a0] sm:$0xff]
    %v2851 = vld [vmem:[#allocation11 + $0x2a8] sm:$0xff]
    %v2852 = vld [vmem:[#allocation11 + $0x2b0] sm:$0xff]
    %v2853 = vld [vmem:[#allocation11 + $0x2b8] sm:$0xff]
    %v2854 = vld [vmem:[#allocation11 + $0x2c0] sm:$0xff]
    %v2855 = vld [vmem:[#allocation11 + $0x2c8] sm:$0xff]
    %v2856 = vld [vmem:[#allocation11 + $0x2d0] sm:$0xff]
    %v2857 = vld [vmem:[#allocation11 + $0x2d8] sm:$0xff]
    %v2858 = vld [vmem:[#allocation11 + $0x2e0] sm:$0xff]
    %v2859 = vld [vmem:[#allocation11 + $0x2e8] sm:$0xff]
    %v2860 = vld [vmem:[#allocation11 + $0x2f0] sm:$0xff]
    %v2861 = vld [vmem:[#allocation11 + $0x2f8] sm:$0xff]
    %v2862 = vld [vmem:[#allocation11 + $0x300] sm:$0xff]
    %v2863 = vld [vmem:[#allocation11 + $0x308] sm:$0xff]
    %v2864 = vld [vmem:[#allocation11 + $0x310] sm:$0xff]
    %v2865 = vld [vmem:[#allocation11 + $0x318] sm:$0xff]
    %v2866 = vld [vmem:[#allocation11 + $0x320] sm:$0xff]
    %v2867 = vld [vmem:[#allocation11 + $0x328] sm:$0xff]
    %v2868 = vld [vmem:[#allocation11 + $0x330] sm:$0xff]
    %v2869 = vld [vmem:[#allocation11 + $0x338] sm:$0xff]
    %v2870 = vld [vmem:[#allocation11 + $0x340] sm:$0xff]
    %v2871 = vld [vmem:[#allocation11 + $0x348] sm:$0xff]
    %v2872 = vld [vmem:[#allocation11 + $0x350] sm:$0xff]
    %v2873 = vld [vmem:[#allocation11 + $0x358] sm:$0xff]
    %v2874 = vld [vmem:[#allocation11 + $0x360] sm:$0xff]
    %v2875 = vld [vmem:[#allocation11 + $0x368] sm:$0xff]
    %v2876 = vld [vmem:[#allocation11 + $0x370] sm:$0xff]
    %v2877 = vld [vmem:[#allocation11 + $0x378] sm:$0xff]
    %v2878 = vld [vmem:[#allocation11 + $0x380] sm:$0xff]
    %v2879 = vld [vmem:[#allocation11 + $0x388] sm:$0xff]
    %v2880 = vld [vmem:[#allocation11 + $0x390] sm:$0xff]
    %v2881 = vld [vmem:[#allocation11 + $0x398] sm:$0xff]
    %v2882 = vld [vmem:[#allocation11 + $0x3a0] sm:$0xff]
    %v2883 = vld [vmem:[#allocation11 + $0x3a8] sm:$0xff]
    %v2884 = vld [vmem:[#allocation11 + $0x3b0] sm:$0xff]
    %v2885 = vld [vmem:[#allocation11 + $0x3b8] sm:$0xff]
    %v2886 = vld [vmem:[#allocation11 + $0x3c0] sm:$0xff]
    %v2887 = vld [vmem:[#allocation11 + $0x3c8] sm:$0xff]
    %v2888 = vld [vmem:[#allocation11 + $0x3d0] sm:$0xff]
    %v2889 = vld [vmem:[#allocation11 + $0x3d8] sm:$0xff]
    %v2890 = vld [vmem:[#allocation11 + $0x3e0] sm:$0xff]
    %v2891 = vld [vmem:[#allocation11 + $0x3e8] sm:$0xff]
    %v2892 = vld [vmem:[#allocation11 + $0x3f0] sm:$0xff]
    %v2893 = vld [vmem:[#allocation11 + $0x3f8] sm:$0xff]
    %v2894 = vld [vmem:[#allocation11 + $0x400] sm:$0xff]
    %v2895 = vld [vmem:[#allocation11 + $0x408] sm:$0xff]
    %v2896 = vld [vmem:[#allocation11 + $0x410] sm:$0xff]
    %v2897 = vld [vmem:[#allocation11 + $0x418] sm:$0xff]
    %v2898 = vld [vmem:[#allocation11 + $0x420] sm:$0xff]
    %v2899 = vld [vmem:[#allocation11 + $0x428] sm:$0xff]
    %v2900 = vld [vmem:[#allocation11 + $0x430] sm:$0xff]
    %v2901 = vld [vmem:[#allocation11 + $0x438] sm:$0xff]
    %v2902 = vld [vmem:[#allocation11 + $0x440] sm:$0xff]
    %v2903 = vld [vmem:[#allocation11 + $0x448] sm:$0xff]
    %v2904 = vld [vmem:[#allocation11 + $0x450] sm:$0xff]
    %v2905 = vld [vmem:[#allocation11 + $0x458] sm:$0xff]
    %v2906 = vld [vmem:[#allocation11 + $0x460] sm:$0xff]
    %v2907 = vld [vmem:[#allocation11 + $0x468] sm:$0xff]
    %v2908 = vld [vmem:[#allocation11 + $0x470] sm:$0xff]
    %v2909 = vld [vmem:[#allocation11 + $0x478] sm:$0xff]
    %v2910 = vld [vmem:[#allocation11 + $0x480] sm:$0xff]
    %v2911 = vld [vmem:[#allocation11 + $0x488] sm:$0xff]
    %v2912 = vld [vmem:[#allocation11 + $0x490] sm:$0xff]
    %v2913 = vld [vmem:[#allocation11 + $0x498] sm:$0xff]
    %v2914 = vld [vmem:[#allocation11 + $0x4a0] sm:$0xff]
    %v2915 = vld [vmem:[#allocation11 + $0x4a8] sm:$0xff]
    %v2916 = vld [vmem:[#allocation11 + $0x4b0] sm:$0xff]
    %v2917 = vld [vmem:[#allocation11 + $0x4b8] sm:$0xff]
    %v2918 = vld [vmem:[#allocation11 + $0x4c0] sm:$0xff]
    %v2919 = vld [vmem:[#allocation11 + $0x4c8] sm:$0xff]
    %v2920 = vld [vmem:[#allocation11 + $0x4d0] sm:$0xff]
    %v2921 = vld [vmem:[#allocation11 + $0x4d8] sm:$0xff]
    %v2922 = vld [vmem:[#allocation11 + $0x4e0] sm:$0xff]
    %v2923 = vld [vmem:[#allocation11 + $0x4e8] sm:$0xff]
    %v2924 = vld [vmem:[#allocation11 + $0x4f0] sm:$0xff]
    %v2925 = vld [vmem:[#allocation11 + $0x4f8] sm:$0xff]
    %v2926 = vld [vmem:[#allocation11 + $0x500] sm:$0xff]
    %v2927 = vld [vmem:[#allocation11 + $0x508] sm:$0xff]
    %v2928 = vld [vmem:[#allocation11 + $0x510] sm:$0xff]
    %v2929 = vld [vmem:[#allocation11 + $0x518] sm:$0xff]
    %v2930 = vld [vmem:[#allocation11 + $0x520] sm:$0xff]
    %v2931 = vld [vmem:[#allocation11 + $0x528] sm:$0xff]
    %v2932 = vld [vmem:[#allocation11 + $0x530] sm:$0xff]
    %v2933 = vld [vmem:[#allocation11 + $0x538] sm:$0xff]
    %v2934 = vld [vmem:[#allocation11 + $0x540] sm:$0xff]
    %v2935 = vld [vmem:[#allocation11 + $0x548] sm:$0xff]
    %v2936 = vld [vmem:[#allocation11 + $0x550] sm:$0xff]
    %v2937 = vld [vmem:[#allocation11 + $0x558] sm:$0xff]
    %v2938 = vld [vmem:[#allocation11 + $0x560] sm:$0xff]
    %v2939 = vld [vmem:[#allocation11 + $0x568] sm:$0xff]
    %v2940 = vld [vmem:[#allocation11 + $0x570] sm:$0xff]
    %v2941 = vld [vmem:[#allocation11 + $0x578] sm:$0xff]
    %v2942 = vld [vmem:[#allocation11 + $0x580] sm:$0xff]
    %v2943 = vld [vmem:[#allocation11 + $0x588] sm:$0xff]
    %v2944 = vld [vmem:[#allocation11 + $0x590] sm:$0xff]
    %v2945 = vld [vmem:[#allocation11 + $0x598] sm:$0xff]
    %v2946 = vld [vmem:[#allocation11 + $0x5a0] sm:$0xff]
    %v2947 = vld [vmem:[#allocation11 + $0x5a8] sm:$0xff]
    %v2948 = vld [vmem:[#allocation11 + $0x5b0] sm:$0xff]
    %v2949 = vld [vmem:[#allocation11 + $0x5b8] sm:$0xff]
    %v2950 = vld [vmem:[#allocation11 + $0x5c0] sm:$0xff]
    %v2951 = vld [vmem:[#allocation11 + $0x5c8] sm:$0xff]
    %v2952 = vld [vmem:[#allocation11 + $0x5d0] sm:$0xff]
    %v2953 = vld [vmem:[#allocation11 + $0x5d8] sm:$0xff]
    %v2954 = vld [vmem:[#allocation11 + $0x5e0] sm:$0xff]
    %v2955 = vld [vmem:[#allocation11 + $0x5e8] sm:$0xff]
    %v2956 = vld [vmem:[#allocation11 + $0x5f0] sm:$0xff]
    %v2957 = vld [vmem:[#allocation11 + $0x5f8] sm:$0xff]
    %v2958 = vld [vmem:[#allocation11 + $0x600] sm:$0xff]
    %v2959 = vld [vmem:[#allocation11 + $0x608] sm:$0xff]
    %v2960 = vld [vmem:[#allocation11 + $0x610] sm:$0xff]
    %v2961 = vld [vmem:[#allocation11 + $0x618] sm:$0xff]
    %v2962 = vld [vmem:[#allocation11 + $0x620] sm:$0xff]
    %v2963 = vld [vmem:[#allocation11 + $0x628] sm:$0xff]
    %v2964 = vld [vmem:[#allocation11 + $0x630] sm:$0xff]
    %v2965 = vld [vmem:[#allocation11 + $0x638] sm:$0xff]
    %v2966 = vld [vmem:[#allocation11 + $0x640] sm:$0xff]
    %v2967 = vld [vmem:[#allocation11 + $0x648] sm:$0xff]
    %v2968 = vld [vmem:[#allocation11 + $0x650] sm:$0xff]
    %v2969 = vld [vmem:[#allocation11 + $0x658] sm:$0xff]
    %v2970 = vld [vmem:[#allocation11 + $0x660] sm:$0xff]
    %v2971 = vld [vmem:[#allocation11 + $0x668] sm:$0xff]
    %v2972 = vld [vmem:[#allocation11 + $0x670] sm:$0xff]
    %v2973 = vld [vmem:[#allocation11 + $0x678] sm:$0xff]
    %v2974 = vld [vmem:[#allocation11 + $0x680] sm:$0xff]
    %v2975 = vld [vmem:[#allocation11 + $0x688] sm:$0xff]
    %v2976 = vld [vmem:[#allocation11 + $0x690] sm:$0xff]
    %v2977 = vld [vmem:[#allocation11 + $0x698] sm:$0xff]
    %v2978 = vld [vmem:[#allocation11 + $0x6a0] sm:$0xff]
    %v2979 = vld [vmem:[#allocation11 + $0x6a8] sm:$0xff]
    %v2980 = vld [vmem:[#allocation11 + $0x6b0] sm:$0xff]
    %v2981 = vld [vmem:[#allocation11 + $0x6b8] sm:$0xff]
    %v2982 = vld [vmem:[#allocation11 + $0x6c0] sm:$0xff]
    %v2983 = vld [vmem:[#allocation11 + $0x6c8] sm:$0xff]
    %v2984 = vld [vmem:[#allocation11 + $0x6d0] sm:$0xff]
    %v2985 = vld [vmem:[#allocation11 + $0x6d8] sm:$0xff]
    %v2986 = vld [vmem:[#allocation11 + $0x6e0] sm:$0xff]
    %v2987 = vld [vmem:[#allocation11 + $0x6e8] sm:$0xff]
    %v2988 = vld [vmem:[#allocation11 + $0x6f0] sm:$0xff]
    %v2989 = vld [vmem:[#allocation11 + $0x6f8] sm:$0xff]
    %v2990 = vld [vmem:[#allocation11 + $0x700] sm:$0xff]
    %v2991 = vld [vmem:[#allocation11 + $0x708] sm:$0xff]
    %v2992 = vld [vmem:[#allocation11 + $0x710] sm:$0xff]
    %v2993 = vld [vmem:[#allocation11 + $0x718] sm:$0xff]
    %v2994 = vld [vmem:[#allocation11 + $0x720] sm:$0xff]
    %v2995 = vld [vmem:[#allocation11 + $0x728] sm:$0xff]
    %v2996 = vld [vmem:[#allocation11 + $0x730] sm:$0xff]
    %v2997 = vld [vmem:[#allocation11 + $0x738] sm:$0xff]
    %v2998 = vld [vmem:[#allocation11 + $0x740] sm:$0xff]
    %v2999 = vld [vmem:[#allocation11 + $0x748] sm:$0xff]
    %v3000 = vld [vmem:[#allocation11 + $0x750] sm:$0xff]
    %v3001 = vld [vmem:[#allocation11 + $0x758] sm:$0xff]
    %v3002 = vld [vmem:[#allocation11 + $0x760] sm:$0xff]
    %v3003 = vld [vmem:[#allocation11 + $0x768] sm:$0xff]
    %v3004 = vld [vmem:[#allocation11 + $0x770] sm:$0xff]
    %v3005 = vld [vmem:[#allocation11 + $0x778] sm:$0xff]
    %v3006 = vld [vmem:[#allocation11 + $0x780] sm:$0xff]
    %v3007 = vld [vmem:[#allocation11 + $0x788] sm:$0xff]
    %v3008 = vld [vmem:[#allocation11 + $0x790] sm:$0xff]
    %v3009 = vld [vmem:[#allocation11 + $0x798] sm:$0xff]
    %v3010 = vld [vmem:[#allocation11 + $0x7a0] sm:$0xff]
    %v3011 = vld [vmem:[#allocation11 + $0x7a8] sm:$0xff]
    %v3012 = vld [vmem:[#allocation11 + $0x7b0] sm:$0xff]
    %v3013 = vld [vmem:[#allocation11 + $0x7b8] sm:$0xff]
    %v3014 = vld [vmem:[#allocation11 + $0x7c0] sm:$0xff]
    %v3015 = vld [vmem:[#allocation11 + $0x7c8] sm:$0xff]
    %v3016 = vld [vmem:[#allocation11 + $0x7d0] sm:$0xff]
    %v3017 = vld [vmem:[#allocation11 + $0x7d8] sm:$0xff]
    %v3018 = vld [vmem:[#allocation11 + $0x7e0] sm:$0xff]
    %v3019 = vld [vmem:[#allocation11 + $0x7e8] sm:$0xff]
    %v3020 = vld [vmem:[#allocation11 + $0x7f0] sm:$0xff]
    %v3021 = vld [vmem:[#allocation11 + $0x7f8] sm:$0xff]
    %v3022 = vld [vmem:[%s8] sm:$0xff]
    %v3024 = vlaneseq
    %v3025 = vshrl.u32 %v3024, 7
    %v3026 = vsub.s32 0, %v3025
    %v3027 = vrot.slane %v3022, %v3026
    %v3028 = vlaneseq
    %v3029 = vshrl.u32 %v3028, 7
    %v3030 = vsub.s32 1, %v3029
    %v3031 = vrot.slane %v3022, %v3030
    %v3032 = vlaneseq
    %v3033 = vshrl.u32 %v3032, 7
    %v3034 = vsub.s32 2, %v3033
    %v3035 = vrot.slane %v3022, %v3034
    %v3036 = vlaneseq
    %v3037 = vshrl.u32 %v3036, 7
    %v3038 = vsub.s32 3, %v3037
    %v3039 = vrot.slane %v3022, %v3038
    %v3040 = vlaneseq
    %v3041 = vshrl.u32 %v3040, 7
    %v3042 = vsub.s32 4, %v3041
    %v3043 = vrot.slane %v3022, %v3042
    %v3044 = vlaneseq
    %v3045 = vshrl.u32 %v3044, 7
    %v3046 = vsub.s32 5, %v3045
    %v3047 = vrot.slane %v3022, %v3046
    %v3048 = vlaneseq
    %v3049 = vshrl.u32 %v3048, 7
    %v3050 = vsub.s32 6, %v3049
    %v3051 = vrot.slane %v3022, %v3050
    %v3052 = vlaneseq
    %v3053 = vshrl.u32 %v3052, 7
    %v3054 = vsub.s32 7, %v3053
    %v3055 = vrot.slane %v3022, %v3054
    %v3320 = vunpack.c.l.b16 %v2766
    %v3321 = vunpack.c.h.b16 %v2766
    %v3322 = vunpack.c.l.b16 %v2767
    %v3323 = vunpack.c.h.b16 %v2767
    %v3324 = vunpack.c.l.b16 %v2768
    %v3325 = vunpack.c.h.b16 %v2768
    %v3326 = vunpack.c.l.b16 %v2769
    %v3327 = vunpack.c.h.b16 %v2769
    %v3328 = vunpack.c.l.b16 %v2770
    %v3329 = vunpack.c.h.b16 %v2770
    %v3330 = vunpack.c.l.b16 %v2771
    %v3331 = vunpack.c.h.b16 %v2771
    %v3332 = vunpack.c.l.b16 %v2772
    %v3333 = vunpack.c.h.b16 %v2772
    %v3334 = vunpack.c.l.b16 %v2773
    %v3335 = vunpack.c.h.b16 %v2773
    %v3336 = vunpack.c.l.b16 %v2774
    %v3337 = vunpack.c.h.b16 %v2774
    %v3338 = vunpack.c.l.b16 %v2775
    %v3339 = vunpack.c.h.b16 %v2775
    %v3340 = vunpack.c.l.b16 %v2776
    %v3341 = vunpack.c.h.b16 %v2776
    %v3342 = vunpack.c.l.b16 %v2777
    %v3343 = vunpack.c.h.b16 %v2777
    %v3344 = vunpack.c.l.b16 %v2778
    %v3345 = vunpack.c.h.b16 %v2778
    %v3346 = vunpack.c.l.b16 %v2779
    %v3347 = vunpack.c.h.b16 %v2779
    %v3348 = vunpack.c.l.b16 %v2780
    %v3349 = vunpack.c.h.b16 %v2780
    %v3350 = vunpack.c.l.b16 %v2781
    %v3351 = vunpack.c.h.b16 %v2781
    %v3352 = vunpack.c.l.b16 %v2782
    %v3353 = vunpack.c.h.b16 %v2782
    %v3354 = vunpack.c.l.b16 %v2783
    %v3355 = vunpack.c.h.b16 %v2783
    %v3356 = vunpack.c.l.b16 %v2784
    %v3357 = vunpack.c.h.b16 %v2784
    %v3358 = vunpack.c.l.b16 %v2785
    %v3359 = vunpack.c.h.b16 %v2785
    %v3360 = vunpack.c.l.b16 %v2786
    %v3361 = vunpack.c.h.b16 %v2786
    %v3362 = vunpack.c.l.b16 %v2787
    %v3363 = vunpack.c.h.b16 %v2787
    %v3364 = vunpack.c.l.b16 %v2788
    %v3365 = vunpack.c.h.b16 %v2788
    %v3366 = vunpack.c.l.b16 %v2789
    %v3367 = vunpack.c.h.b16 %v2789
    %v3368 = vunpack.c.l.b16 %v2790
    %v3369 = vunpack.c.h.b16 %v2790
    %v3370 = vunpack.c.l.b16 %v2791
    %v3371 = vunpack.c.h.b16 %v2791
    %v3372 = vunpack.c.l.b16 %v2792
    %v3373 = vunpack.c.h.b16 %v2792
    %v3374 = vunpack.c.l.b16 %v2793
    %v3375 = vunpack.c.h.b16 %v2793
    %v3376 = vunpack.c.l.b16 %v2794
    %v3377 = vunpack.c.h.b16 %v2794
    %v3378 = vunpack.c.l.b16 %v2795
    %v3379 = vunpack.c.h.b16 %v2795
    %v3380 = vunpack.c.l.b16 %v2796
    %v3381 = vunpack.c.h.b16 %v2796
    %v3382 = vunpack.c.l.b16 %v2797
    %v3383 = vunpack.c.h.b16 %v2797
    %v3384 = vunpack.c.l.b16 %v2798
    %v3385 = vunpack.c.h.b16 %v2798
    %v3386 = vunpack.c.l.b16 %v2799
    %v3387 = vunpack.c.h.b16 %v2799
    %v3388 = vunpack.c.l.b16 %v2800
    %v3389 = vunpack.c.h.b16 %v2800
    %v3390 = vunpack.c.l.b16 %v2801
    %v3391 = vunpack.c.h.b16 %v2801
    %v3392 = vunpack.c.l.b16 %v2802
    %v3393 = vunpack.c.h.b16 %v2802
    %v3394 = vunpack.c.l.b16 %v2803
    %v3395 = vunpack.c.h.b16 %v2803
    %v3396 = vunpack.c.l.b16 %v2804
    %v3397 = vunpack.c.h.b16 %v2804
    %v3398 = vunpack.c.l.b16 %v2805
    %v3399 = vunpack.c.h.b16 %v2805
    %v3400 = vunpack.c.l.b16 %v2806
    %v3401 = vunpack.c.h.b16 %v2806
    %v3402 = vunpack.c.l.b16 %v2807
    %v3403 = vunpack.c.h.b16 %v2807
    %v3404 = vunpack.c.l.b16 %v2808
    %v3405 = vunpack.c.h.b16 %v2808
    %v3406 = vunpack.c.l.b16 %v2809
    %v3407 = vunpack.c.h.b16 %v2809
    %v3408 = vunpack.c.l.b16 %v2810
    %v3409 = vunpack.c.h.b16 %v2810
    %v3410 = vunpack.c.l.b16 %v2811
    %v3411 = vunpack.c.h.b16 %v2811
    %v3412 = vunpack.c.l.b16 %v2812
    %v3413 = vunpack.c.h.b16 %v2812
    %v3414 = vunpack.c.l.b16 %v2813
    %v3415 = vunpack.c.h.b16 %v2813
    %v3416 = vunpack.c.l.b16 %v2814
    %v3417 = vunpack.c.h.b16 %v2814
    %v3418 = vunpack.c.l.b16 %v2815
    %v3419 = vunpack.c.h.b16 %v2815
    %v3420 = vunpack.c.l.b16 %v2816
    %v3421 = vunpack.c.h.b16 %v2816
    %v3422 = vunpack.c.l.b16 %v2817
    %v3423 = vunpack.c.h.b16 %v2817
    %v3424 = vunpack.c.l.b16 %v2818
    %v3425 = vunpack.c.h.b16 %v2818
    %v3426 = vunpack.c.l.b16 %v2819
    %v3427 = vunpack.c.h.b16 %v2819
    %v3428 = vunpack.c.l.b16 %v2820
    %v3429 = vunpack.c.h.b16 %v2820
    %v3430 = vunpack.c.l.b16 %v2821
    %v3431 = vunpack.c.h.b16 %v2821
    %v3432 = vunpack.c.l.b16 %v2822
    %v3433 = vunpack.c.h.b16 %v2822
    %v3434 = vunpack.c.l.b16 %v2823
    %v3435 = vunpack.c.h.b16 %v2823
    %v3436 = vunpack.c.l.b16 %v2824
    %v3437 = vunpack.c.h.b16 %v2824
    %v3438 = vunpack.c.l.b16 %v2825
    %v3439 = vunpack.c.h.b16 %v2825
    %v3440 = vunpack.c.l.b16 %v2826
    %v3441 = vunpack.c.h.b16 %v2826
    %v3442 = vunpack.c.l.b16 %v2827
    %v3443 = vunpack.c.h.b16 %v2827
    %v3444 = vunpack.c.l.b16 %v2828
    %v3445 = vunpack.c.h.b16 %v2828
    %v3446 = vunpack.c.l.b16 %v2829
    %v3447 = vunpack.c.h.b16 %v2829
    %v3448 = vunpack.c.l.b16 %v2830
    %v3449 = vunpack.c.h.b16 %v2830
    %v3450 = vunpack.c.l.b16 %v2831
    %v3451 = vunpack.c.h.b16 %v2831
    %v3452 = vunpack.c.l.b16 %v2832
    %v3453 = vunpack.c.h.b16 %v2832
    %v3454 = vunpack.c.l.b16 %v2833
    %v3455 = vunpack.c.h.b16 %v2833
    %v3456 = vunpack.c.l.b16 %v2834
    %v3457 = vunpack.c.h.b16 %v2834
    %v3458 = vunpack.c.l.b16 %v2835
    %v3459 = vunpack.c.h.b16 %v2835
    %v3460 = vunpack.c.l.b16 %v2836
    %v3461 = vunpack.c.h.b16 %v2836
    %v3462 = vunpack.c.l.b16 %v2837
    %v3463 = vunpack.c.h.b16 %v2837
    %v3464 = vunpack.c.l.b16 %v2838
    %v3465 = vunpack.c.h.b16 %v2838
    %v3466 = vunpack.c.l.b16 %v2839
    %v3467 = vunpack.c.h.b16 %v2839
    %v3468 = vunpack.c.l.b16 %v2840
    %v3469 = vunpack.c.h.b16 %v2840
    %v3470 = vunpack.c.l.b16 %v2841
    %v3471 = vunpack.c.h.b16 %v2841
    %v3472 = vunpack.c.l.b16 %v2842
    %v3473 = vunpack.c.h.b16 %v2842
    %v3474 = vunpack.c.l.b16 %v2843
    %v3475 = vunpack.c.h.b16 %v2843
    %v3476 = vunpack.c.l.b16 %v2844
    %v3477 = vunpack.c.h.b16 %v2844
    %v3478 = vunpack.c.l.b16 %v2845
    %v3479 = vunpack.c.h.b16 %v2845
    %v3480 = vunpack.c.l.b16 %v2846
    %v3481 = vunpack.c.h.b16 %v2846
    %v3482 = vunpack.c.l.b16 %v2847
    %v3483 = vunpack.c.h.b16 %v2847
    %v3484 = vunpack.c.l.b16 %v2848
    %v3485 = vunpack.c.h.b16 %v2848
    %v3486 = vunpack.c.l.b16 %v2849
    %v3487 = vunpack.c.h.b16 %v2849
    %v3488 = vunpack.c.l.b16 %v2850
    %v3489 = vunpack.c.h.b16 %v2850
    %v3490 = vunpack.c.l.b16 %v2851
    %v3491 = vunpack.c.h.b16 %v2851
    %v3492 = vunpack.c.l.b16 %v2852
    %v3493 = vunpack.c.h.b16 %v2852
    %v3494 = vunpack.c.l.b16 %v2853
    %v3495 = vunpack.c.h.b16 %v2853
    %v3496 = vunpack.c.l.b16 %v2854
    %v3497 = vunpack.c.h.b16 %v2854
    %v3498 = vunpack.c.l.b16 %v2855
    %v3499 = vunpack.c.h.b16 %v2855
    %v3500 = vunpack.c.l.b16 %v2856
    %v3501 = vunpack.c.h.b16 %v2856
    %v3502 = vunpack.c.l.b16 %v2857
    %v3503 = vunpack.c.h.b16 %v2857
    %v3504 = vunpack.c.l.b16 %v2858
    %v3505 = vunpack.c.h.b16 %v2858
    %v3506 = vunpack.c.l.b16 %v2859
    %v3507 = vunpack.c.h.b16 %v2859
    %v3508 = vunpack.c.l.b16 %v2860
    %v3509 = vunpack.c.h.b16 %v2860
    %v3510 = vunpack.c.l.b16 %v2861
    %v3511 = vunpack.c.h.b16 %v2861
    %v3512 = vunpack.c.l.b16 %v2862
    %v3513 = vunpack.c.h.b16 %v2862
    %v3514 = vunpack.c.l.b16 %v2863
    %v3515 = vunpack.c.h.b16 %v2863
    %v3516 = vunpack.c.l.b16 %v2864
    %v3517 = vunpack.c.h.b16 %v2864
    %v3518 = vunpack.c.l.b16 %v2865
    %v3519 = vunpack.c.h.b16 %v2865
    %v3520 = vunpack.c.l.b16 %v2866
    %v3521 = vunpack.c.h.b16 %v2866
    %v3522 = vunpack.c.l.b16 %v2867
    %v3523 = vunpack.c.h.b16 %v2867
    %v3524 = vunpack.c.l.b16 %v2868
    %v3525 = vunpack.c.h.b16 %v2868
    %v3526 = vunpack.c.l.b16 %v2869
    %v3527 = vunpack.c.h.b16 %v2869
    %v3528 = vunpack.c.l.b16 %v2870
    %v3529 = vunpack.c.h.b16 %v2870
    %v3530 = vunpack.c.l.b16 %v2871
    %v3531 = vunpack.c.h.b16 %v2871
    %v3532 = vunpack.c.l.b16 %v2872
    %v3533 = vunpack.c.h.b16 %v2872
    %v3534 = vunpack.c.l.b16 %v2873
    %v3535 = vunpack.c.h.b16 %v2873
    %v3536 = vunpack.c.l.b16 %v2874
    %v3537 = vunpack.c.h.b16 %v2874
    %v3538 = vunpack.c.l.b16 %v2875
    %v3539 = vunpack.c.h.b16 %v2875
    %v3540 = vunpack.c.l.b16 %v2876
    %v3541 = vunpack.c.h.b16 %v2876
    %v3542 = vunpack.c.l.b16 %v2877
    %v3543 = vunpack.c.h.b16 %v2877
    %v3544 = vunpack.c.l.b16 %v2878
    %v3545 = vunpack.c.h.b16 %v2878
    %v3546 = vunpack.c.l.b16 %v2879
    %v3547 = vunpack.c.h.b16 %v2879
    %v3548 = vunpack.c.l.b16 %v2880
    %v3549 = vunpack.c.h.b16 %v2880
    %v3550 = vunpack.c.l.b16 %v2881
    %v3551 = vunpack.c.h.b16 %v2881
    %v3552 = vunpack.c.l.b16 %v2882
    %v3553 = vunpack.c.h.b16 %v2882
    %v3554 = vunpack.c.l.b16 %v2883
    %v3555 = vunpack.c.h.b16 %v2883
    %v3556 = vunpack.c.l.b16 %v2884
    %v3557 = vunpack.c.h.b16 %v2884
    %v3558 = vunpack.c.l.b16 %v2885
    %v3559 = vunpack.c.h.b16 %v2885
    %v3560 = vunpack.c.l.b16 %v2886
    %v3561 = vunpack.c.h.b16 %v2886
    %v3562 = vunpack.c.l.b16 %v2887
    %v3563 = vunpack.c.h.b16 %v2887
    %v3564 = vunpack.c.l.b16 %v2888
    %v3565 = vunpack.c.h.b16 %v2888
    %v3566 = vunpack.c.l.b16 %v2889
    %v3567 = vunpack.c.h.b16 %v2889
    %v3568 = vunpack.c.l.b16 %v2890
    %v3569 = vunpack.c.h.b16 %v2890
    %v3570 = vunpack.c.l.b16 %v2891
    %v3571 = vunpack.c.h.b16 %v2891
    %v3572 = vunpack.c.l.b16 %v2892
    %v3573 = vunpack.c.h.b16 %v2892
    %v3574 = vunpack.c.l.b16 %v2893
    %v3575 = vunpack.c.h.b16 %v2893
    %v3576 = vunpack.c.l.b16 %v2894
    %v3577 = vunpack.c.h.b16 %v2894
    %v3578 = vunpack.c.l.b16 %v2895
    %v3579 = vunpack.c.h.b16 %v2895
    %v3580 = vunpack.c.l.b16 %v2896
    %v3581 = vunpack.c.h.b16 %v2896
    %v3582 = vunpack.c.l.b16 %v2897
    %v3583 = vunpack.c.h.b16 %v2897
    %v3584 = vunpack.c.l.b16 %v2898
    %v3585 = vunpack.c.h.b16 %v2898
    %v3586 = vunpack.c.l.b16 %v2899
    %v3587 = vunpack.c.h.b16 %v2899
    %v3588 = vunpack.c.l.b16 %v2900
    %v3589 = vunpack.c.h.b16 %v2900
    %v3590 = vunpack.c.l.b16 %v2901
    %v3591 = vunpack.c.h.b16 %v2901
    %v3592 = vunpack.c.l.b16 %v2902
    %v3593 = vunpack.c.h.b16 %v2902
    %v3594 = vunpack.c.l.b16 %v2903
    %v3595 = vunpack.c.h.b16 %v2903
    %v3596 = vunpack.c.l.b16 %v2904
    %v3597 = vunpack.c.h.b16 %v2904
    %v3598 = vunpack.c.l.b16 %v2905
    %v3599 = vunpack.c.h.b16 %v2905
    %v3600 = vunpack.c.l.b16 %v2906
    %v3601 = vunpack.c.h.b16 %v2906
    %v3602 = vunpack.c.l.b16 %v2907
    %v3603 = vunpack.c.h.b16 %v2907
    %v3604 = vunpack.c.l.b16 %v2908
    %v3605 = vunpack.c.h.b16 %v2908
    %v3606 = vunpack.c.l.b16 %v2909
    %v3607 = vunpack.c.h.b16 %v2909
    %v3608 = vunpack.c.l.b16 %v2910
    %v3609 = vunpack.c.h.b16 %v2910
    %v3610 = vunpack.c.l.b16 %v2911
    %v3611 = vunpack.c.h.b16 %v2911
    %v3612 = vunpack.c.l.b16 %v2912
    %v3613 = vunpack.c.h.b16 %v2912
    %v3614 = vunpack.c.l.b16 %v2913
    %v3615 = vunpack.c.h.b16 %v2913
    %v3616 = vunpack.c.l.b16 %v2914
    %v3617 = vunpack.c.h.b16 %v2914
    %v3618 = vunpack.c.l.b16 %v2915
    %v3619 = vunpack.c.h.b16 %v2915
    %v3620 = vunpack.c.l.b16 %v2916
    %v3621 = vunpack.c.h.b16 %v2916
    %v3622 = vunpack.c.l.b16 %v2917
    %v3623 = vunpack.c.h.b16 %v2917
    %v3624 = vunpack.c.l.b16 %v2918
    %v3625 = vunpack.c.h.b16 %v2918
    %v3626 = vunpack.c.l.b16 %v2919
    %v3627 = vunpack.c.h.b16 %v2919
    %v3628 = vunpack.c.l.b16 %v2920
    %v3629 = vunpack.c.h.b16 %v2920
    %v3630 = vunpack.c.l.b16 %v2921
    %v3631 = vunpack.c.h.b16 %v2921
    %v3632 = vunpack.c.l.b16 %v2922
    %v3633 = vunpack.c.h.b16 %v2922
    %v3634 = vunpack.c.l.b16 %v2923
    %v3635 = vunpack.c.h.b16 %v2923
    %v3636 = vunpack.c.l.b16 %v2924
    %v3637 = vunpack.c.h.b16 %v2924
    %v3638 = vunpack.c.l.b16 %v2925
    %v3639 = vunpack.c.h.b16 %v2925
    %v3640 = vunpack.c.l.b16 %v2926
    %v3641 = vunpack.c.h.b16 %v2926
    %v3642 = vunpack.c.l.b16 %v2927
    %v3643 = vunpack.c.h.b16 %v2927
    %v3644 = vunpack.c.l.b16 %v2928
    %v3645 = vunpack.c.h.b16 %v2928
    %v3646 = vunpack.c.l.b16 %v2929
    %v3647 = vunpack.c.h.b16 %v2929
    %v3648 = vunpack.c.l.b16 %v2930
    %v3649 = vunpack.c.h.b16 %v2930
    %v3650 = vunpack.c.l.b16 %v2931
    %v3651 = vunpack.c.h.b16 %v2931
    %v3652 = vunpack.c.l.b16 %v2932
    %v3653 = vunpack.c.h.b16 %v2932
    %v3654 = vunpack.c.l.b16 %v2933
    %v3655 = vunpack.c.h.b16 %v2933
    %v3656 = vunpack.c.l.b16 %v2934
    %v3657 = vunpack.c.h.b16 %v2934
    %v3658 = vunpack.c.l.b16 %v2935
    %v3659 = vunpack.c.h.b16 %v2935
    %v3660 = vunpack.c.l.b16 %v2936
    %v3661 = vunpack.c.h.b16 %v2936
    %v3662 = vunpack.c.l.b16 %v2937
    %v3663 = vunpack.c.h.b16 %v2937
    %v3664 = vunpack.c.l.b16 %v2938
    %v3665 = vunpack.c.h.b16 %v2938
    %v3666 = vunpack.c.l.b16 %v2939
    %v3667 = vunpack.c.h.b16 %v2939
    %v3668 = vunpack.c.l.b16 %v2940
    %v3669 = vunpack.c.h.b16 %v2940
    %v3670 = vunpack.c.l.b16 %v2941
    %v3671 = vunpack.c.h.b16 %v2941
    %v3672 = vunpack.c.l.b16 %v2942
    %v3673 = vunpack.c.h.b16 %v2942
    %v3674 = vunpack.c.l.b16 %v2943
    %v3675 = vunpack.c.h.b16 %v2943
    %v3676 = vunpack.c.l.b16 %v2944
    %v3677 = vunpack.c.h.b16 %v2944
    %v3678 = vunpack.c.l.b16 %v2945
    %v3679 = vunpack.c.h.b16 %v2945
    %v3680 = vunpack.c.l.b16 %v2946
    %v3681 = vunpack.c.h.b16 %v2946
    %v3682 = vunpack.c.l.b16 %v2947
    %v3683 = vunpack.c.h.b16 %v2947
    %v3684 = vunpack.c.l.b16 %v2948
    %v3685 = vunpack.c.h.b16 %v2948
    %v3686 = vunpack.c.l.b16 %v2949
    %v3687 = vunpack.c.h.b16 %v2949
    %v3688 = vunpack.c.l.b16 %v2950
    %v3689 = vunpack.c.h.b16 %v2950
    %v3690 = vunpack.c.l.b16 %v2951
    %v3691 = vunpack.c.h.b16 %v2951
    %v3692 = vunpack.c.l.b16 %v2952
    %v3693 = vunpack.c.h.b16 %v2952
    %v3694 = vunpack.c.l.b16 %v2953
    %v3695 = vunpack.c.h.b16 %v2953
    %v3696 = vunpack.c.l.b16 %v2954
    %v3697 = vunpack.c.h.b16 %v2954
    %v3698 = vunpack.c.l.b16 %v2955
    %v3699 = vunpack.c.h.b16 %v2955
    %v3700 = vunpack.c.l.b16 %v2956
    %v3701 = vunpack.c.h.b16 %v2956
    %v3702 = vunpack.c.l.b16 %v2957
    %v3703 = vunpack.c.h.b16 %v2957
    %v3704 = vunpack.c.l.b16 %v2958
    %v3705 = vunpack.c.h.b16 %v2958
    %v3706 = vunpack.c.l.b16 %v2959
    %v3707 = vunpack.c.h.b16 %v2959
    %v3708 = vunpack.c.l.b16 %v2960
    %v3709 = vunpack.c.h.b16 %v2960
    %v3710 = vunpack.c.l.b16 %v2961
    %v3711 = vunpack.c.h.b16 %v2961
    %v3712 = vunpack.c.l.b16 %v2962
    %v3713 = vunpack.c.h.b16 %v2962
    %v3714 = vunpack.c.l.b16 %v2963
    %v3715 = vunpack.c.h.b16 %v2963
    %v3716 = vunpack.c.l.b16 %v2964
    %v3717 = vunpack.c.h.b16 %v2964
    %v3718 = vunpack.c.l.b16 %v2965
    %v3719 = vunpack.c.h.b16 %v2965
    %v3720 = vunpack.c.l.b16 %v2966
    %v3721 = vunpack.c.h.b16 %v2966
    %v3722 = vunpack.c.l.b16 %v2967
    %v3723 = vunpack.c.h.b16 %v2967
    %v3724 = vunpack.c.l.b16 %v2968
    %v3725 = vunpack.c.h.b16 %v2968
    %v3726 = vunpack.c.l.b16 %v2969
    %v3727 = vunpack.c.h.b16 %v2969
    %v3728 = vunpack.c.l.b16 %v2970
    %v3729 = vunpack.c.h.b16 %v2970
    %v3730 = vunpack.c.l.b16 %v2971
    %v3731 = vunpack.c.h.b16 %v2971
    %v3732 = vunpack.c.l.b16 %v2972
    %v3733 = vunpack.c.h.b16 %v2972
    %v3734 = vunpack.c.l.b16 %v2973
    %v3735 = vunpack.c.h.b16 %v2973
    %v3736 = vunpack.c.l.b16 %v2974
    %v3737 = vunpack.c.h.b16 %v2974
    %v3738 = vunpack.c.l.b16 %v2975
    %v3739 = vunpack.c.h.b16 %v2975
    %v3740 = vunpack.c.l.b16 %v2976
    %v3741 = vunpack.c.h.b16 %v2976
    %v3742 = vunpack.c.l.b16 %v2977
    %v3743 = vunpack.c.h.b16 %v2977
    %v3744 = vunpack.c.l.b16 %v2978
    %v3745 = vunpack.c.h.b16 %v2978
    %v3746 = vunpack.c.l.b16 %v2979
    %v3747 = vunpack.c.h.b16 %v2979
    %v3748 = vunpack.c.l.b16 %v2980
    %v3749 = vunpack.c.h.b16 %v2980
    %v3750 = vunpack.c.l.b16 %v2981
    %v3751 = vunpack.c.h.b16 %v2981
    %v3752 = vunpack.c.l.b16 %v2982
    %v3753 = vunpack.c.h.b16 %v2982
    %v3754 = vunpack.c.l.b16 %v2983
    %v3755 = vunpack.c.h.b16 %v2983
    %v3756 = vunpack.c.l.b16 %v2984
    %v3757 = vunpack.c.h.b16 %v2984
    %v3758 = vunpack.c.l.b16 %v2985
    %v3759 = vunpack.c.h.b16 %v2985
    %v3760 = vunpack.c.l.b16 %v2986
    %v3761 = vunpack.c.h.b16 %v2986
    %v3762 = vunpack.c.l.b16 %v2987
    %v3763 = vunpack.c.h.b16 %v2987
    %v3764 = vunpack.c.l.b16 %v2988
    %v3765 = vunpack.c.h.b16 %v2988
    %v3766 = vunpack.c.l.b16 %v2989
    %v3767 = vunpack.c.h.b16 %v2989
    %v3768 = vunpack.c.l.b16 %v2990
    %v3769 = vunpack.c.h.b16 %v2990
    %v3770 = vunpack.c.l.b16 %v2991
    %v3771 = vunpack.c.h.b16 %v2991
    %v3772 = vunpack.c.l.b16 %v2992
    %v3773 = vunpack.c.h.b16 %v2992
    %v3774 = vunpack.c.l.b16 %v2993
    %v3775 = vunpack.c.h.b16 %v2993
    %v3776 = vunpack.c.l.b16 %v2994
    %v3777 = vunpack.c.h.b16 %v2994
    %v3778 = vunpack.c.l.b16 %v2995
    %v3779 = vunpack.c.h.b16 %v2995
    %v3780 = vunpack.c.l.b16 %v2996
    %v3781 = vunpack.c.h.b16 %v2996
    %v3782 = vunpack.c.l.b16 %v2997
    %v3783 = vunpack.c.h.b16 %v2997
    %v3784 = vunpack.c.l.b16 %v2998
    %v3785 = vunpack.c.h.b16 %v2998
    %v3786 = vunpack.c.l.b16 %v2999
    %v3787 = vunpack.c.h.b16 %v2999
    %v3788 = vunpack.c.l.b16 %v3000
    %v3789 = vunpack.c.h.b16 %v3000
    %v3790 = vunpack.c.l.b16 %v3001
    %v3791 = vunpack.c.h.b16 %v3001
    %v3792 = vunpack.c.l.b16 %v3002
    %v3793 = vunpack.c.h.b16 %v3002
    %v3794 = vunpack.c.l.b16 %v3003
    %v3795 = vunpack.c.h.b16 %v3003
    %v3796 = vunpack.c.l.b16 %v3004
    %v3797 = vunpack.c.h.b16 %v3004
    %v3798 = vunpack.c.l.b16 %v3005
    %v3799 = vunpack.c.h.b16 %v3005
    %v3800 = vunpack.c.l.b16 %v3006
    %v3801 = vunpack.c.h.b16 %v3006
    %v3802 = vunpack.c.l.b16 %v3007
    %v3803 = vunpack.c.h.b16 %v3007
    %v3804 = vunpack.c.l.b16 %v3008
    %v3805 = vunpack.c.h.b16 %v3008
    %v3806 = vunpack.c.l.b16 %v3009
    %v3807 = vunpack.c.h.b16 %v3009
    %v3808 = vunpack.c.l.b16 %v3010
    %v3809 = vunpack.c.h.b16 %v3010
    %v3810 = vunpack.c.l.b16 %v3011
    %v3811 = vunpack.c.h.b16 %v3011
    %v3812 = vunpack.c.l.b16 %v3012
    %v3813 = vunpack.c.h.b16 %v3012
    %v3814 = vunpack.c.l.b16 %v3013
    %v3815 = vunpack.c.h.b16 %v3013
    %v3816 = vunpack.c.l.b16 %v3014
    %v3817 = vunpack.c.h.b16 %v3014
    %v3818 = vunpack.c.l.b16 %v3015
    %v3819 = vunpack.c.h.b16 %v3015
    %v3820 = vunpack.c.l.b16 %v3016
    %v3821 = vunpack.c.h.b16 %v3016
    %v3822 = vunpack.c.l.b16 %v3017
    %v3823 = vunpack.c.h.b16 %v3017
    %v3824 = vunpack.c.l.b16 %v3018
    %v3825 = vunpack.c.h.b16 %v3018
    %v3826 = vunpack.c.l.b16 %v3019
    %v3827 = vunpack.c.h.b16 %v3019
    %v3828 = vunpack.c.l.b16 %v3020
    %v3829 = vunpack.c.h.b16 %v3020
    %v3830 = vunpack.c.l.b16 %v3021
    %v3831 = vunpack.c.h.b16 %v3021
    %v3832 = vpack.c.b16 %v3328, %v3320
    %v3833 = vpack.c.b16 %v3329, %v3321
    %v3834 = vpack.c.b16 %v3330, %v3322
    %v3835 = vpack.c.b16 %v3331, %v3323
    %v3836 = vpack.c.b16 %v3332, %v3324
    %v3837 = vpack.c.b16 %v3333, %v3325
    %v3838 = vpack.c.b16 %v3334, %v3326
    %v3839 = vpack.c.b16 %v3335, %v3327
    %v3840 = vpack.c.b16 %v3344, %v3336
    %v3841 = vpack.c.b16 %v3345, %v3337
    %v3842 = vpack.c.b16 %v3346, %v3338
    %v3843 = vpack.c.b16 %v3347, %v3339
    %v3844 = vpack.c.b16 %v3348, %v3340
    %v3845 = vpack.c.b16 %v3349, %v3341
    %v3846 = vpack.c.b16 %v3350, %v3342
    %v3847 = vpack.c.b16 %v3351, %v3343
    %v3848 = vpack.c.b16 %v3360, %v3352
    %v3849 = vpack.c.b16 %v3361, %v3353
    %v3850 = vpack.c.b16 %v3362, %v3354
    %v3851 = vpack.c.b16 %v3363, %v3355
    %v3852 = vpack.c.b16 %v3364, %v3356
    %v3853 = vpack.c.b16 %v3365, %v3357
    %v3854 = vpack.c.b16 %v3366, %v3358
    %v3855 = vpack.c.b16 %v3367, %v3359
    %v3856 = vpack.c.b16 %v3376, %v3368
    %v3857 = vpack.c.b16 %v3377, %v3369
    %v3858 = vpack.c.b16 %v3378, %v3370
    %v3859 = vpack.c.b16 %v3379, %v3371
    %v3860 = vpack.c.b16 %v3380, %v3372
    %v3861 = vpack.c.b16 %v3381, %v3373
    %v3862 = vpack.c.b16 %v3382, %v3374
    %v3863 = vpack.c.b16 %v3383, %v3375
    %v3864 = vpack.c.b16 %v3392, %v3384
    %v3865 = vpack.c.b16 %v3393, %v3385
    %v3866 = vpack.c.b16 %v3394, %v3386
    %v3867 = vpack.c.b16 %v3395, %v3387
    %v3868 = vpack.c.b16 %v3396, %v3388
    %v3869 = vpack.c.b16 %v3397, %v3389
    %v3870 = vpack.c.b16 %v3398, %v3390
    %v3871 = vpack.c.b16 %v3399, %v3391
    %v3872 = vpack.c.b16 %v3408, %v3400
    %v3873 = vpack.c.b16 %v3409, %v3401
    %v3874 = vpack.c.b16 %v3410, %v3402
    %v3875 = vpack.c.b16 %v3411, %v3403
    %v3876 = vpack.c.b16 %v3412, %v3404
    %v3877 = vpack.c.b16 %v3413, %v3405
    %v3878 = vpack.c.b16 %v3414, %v3406
    %v3879 = vpack.c.b16 %v3415, %v3407
    %v3880 = vpack.c.b16 %v3424, %v3416
    %v3881 = vpack.c.b16 %v3425, %v3417
    %v3882 = vpack.c.b16 %v3426, %v3418
    %v3883 = vpack.c.b16 %v3427, %v3419
    %v3884 = vpack.c.b16 %v3428, %v3420
    %v3885 = vpack.c.b16 %v3429, %v3421
    %v3886 = vpack.c.b16 %v3430, %v3422
    %v3887 = vpack.c.b16 %v3431, %v3423
    %v3888 = vpack.c.b16 %v3440, %v3432
    %v3889 = vpack.c.b16 %v3441, %v3433
    %v3890 = vpack.c.b16 %v3442, %v3434
    %v3891 = vpack.c.b16 %v3443, %v3435
    %v3892 = vpack.c.b16 %v3444, %v3436
    %v3893 = vpack.c.b16 %v3445, %v3437
    %v3894 = vpack.c.b16 %v3446, %v3438
    %v3895 = vpack.c.b16 %v3447, %v3439
    %v3896 = vpack.c.b16 %v3456, %v3448
    %v3897 = vpack.c.b16 %v3457, %v3449
    %v3898 = vpack.c.b16 %v3458, %v3450
    %v3899 = vpack.c.b16 %v3459, %v3451
    %v3900 = vpack.c.b16 %v3460, %v3452
    %v3901 = vpack.c.b16 %v3461, %v3453
    %v3902 = vpack.c.b16 %v3462, %v3454
    %v3903 = vpack.c.b16 %v3463, %v3455
    %v3904 = vpack.c.b16 %v3472, %v3464
    %v3905 = vpack.c.b16 %v3473, %v3465
    %v3906 = vpack.c.b16 %v3474, %v3466
    %v3907 = vpack.c.b16 %v3475, %v3467
    %v3908 = vpack.c.b16 %v3476, %v3468
    %v3909 = vpack.c.b16 %v3477, %v3469
    %v3910 = vpack.c.b16 %v3478, %v3470
    %v3911 = vpack.c.b16 %v3479, %v3471
    %v3912 = vpack.c.b16 %v3488, %v3480
    %v3913 = vpack.c.b16 %v3489, %v3481
    %v3914 = vpack.c.b16 %v3490, %v3482
    %v3915 = vpack.c.b16 %v3491, %v3483
    %v3916 = vpack.c.b16 %v3492, %v3484
    %v3917 = vpack.c.b16 %v3493, %v3485
    %v3918 = vpack.c.b16 %v3494, %v3486
    %v3919 = vpack.c.b16 %v3495, %v3487
    %v3920 = vpack.c.b16 %v3504, %v3496
    %v3921 = vpack.c.b16 %v3505, %v3497
    %v3922 = vpack.c.b16 %v3506, %v3498
    %v3923 = vpack.c.b16 %v3507, %v3499
    %v3924 = vpack.c.b16 %v3508, %v3500
    %v3925 = vpack.c.b16 %v3509, %v3501
    %v3926 = vpack.c.b16 %v3510, %v3502
    %v3927 = vpack.c.b16 %v3511, %v3503
    %v3928 = vpack.c.b16 %v3520, %v3512
    %v3929 = vpack.c.b16 %v3521, %v3513
    %v3930 = vpack.c.b16 %v3522, %v3514
    %v3931 = vpack.c.b16 %v3523, %v3515
    %v3932 = vpack.c.b16 %v3524, %v3516
    %v3933 = vpack.c.b16 %v3525, %v3517
    %v3934 = vpack.c.b16 %v3526, %v3518
    %v3935 = vpack.c.b16 %v3527, %v3519
    %v3936 = vpack.c.b16 %v3536, %v3528
    %v3937 = vpack.c.b16 %v3537, %v3529
    %v3938 = vpack.c.b16 %v3538, %v3530
    %v3939 = vpack.c.b16 %v3539, %v3531
    %v3940 = vpack.c.b16 %v3540, %v3532
    %v3941 = vpack.c.b16 %v3541, %v3533
    %v3942 = vpack.c.b16 %v3542, %v3534
    %v3943 = vpack.c.b16 %v3543, %v3535
    %v3944 = vpack.c.b16 %v3552, %v3544
    %v3945 = vpack.c.b16 %v3553, %v3545
    %v3946 = vpack.c.b16 %v3554, %v3546
    %v3947 = vpack.c.b16 %v3555, %v3547
    %v3948 = vpack.c.b16 %v3556, %v3548
    %v3949 = vpack.c.b16 %v3557, %v3549
    %v3950 = vpack.c.b16 %v3558, %v3550
    %v3951 = vpack.c.b16 %v3559, %v3551
    %v3952 = vpack.c.b16 %v3568, %v3560
    %v3953 = vpack.c.b16 %v3569, %v3561
    %v3954 = vpack.c.b16 %v3570, %v3562
    %v3955 = vpack.c.b16 %v3571, %v3563
    %v3956 = vpack.c.b16 %v3572, %v3564
    %v3957 = vpack.c.b16 %v3573, %v3565
    %v3958 = vpack.c.b16 %v3574, %v3566
    %v3959 = vpack.c.b16 %v3575, %v3567
    %v3960 = vpack.c.b16 %v3584, %v3576
    %v3961 = vpack.c.b16 %v3585, %v3577
    %v3962 = vpack.c.b16 %v3586, %v3578
    %v3963 = vpack.c.b16 %v3587, %v3579
    %v3964 = vpack.c.b16 %v3588, %v3580
    %v3965 = vpack.c.b16 %v3589, %v3581
    %v3966 = vpack.c.b16 %v3590, %v3582
    %v3967 = vpack.c.b16 %v3591, %v3583
    %v3968 = vpack.c.b16 %v3600, %v3592
    %v3969 = vpack.c.b16 %v3601, %v3593
    %v3970 = vpack.c.b16 %v3602, %v3594
    %v3971 = vpack.c.b16 %v3603, %v3595
    %v3972 = vpack.c.b16 %v3604, %v3596
    %v3973 = vpack.c.b16 %v3605, %v3597
    %v3974 = vpack.c.b16 %v3606, %v3598
    %v3975 = vpack.c.b16 %v3607, %v3599
    %v3976 = vpack.c.b16 %v3616, %v3608
    %v3977 = vpack.c.b16 %v3617, %v3609
    %v3978 = vpack.c.b16 %v3618, %v3610
    %v3979 = vpack.c.b16 %v3619, %v3611
    %v3980 = vpack.c.b16 %v3620, %v3612
    %v3981 = vpack.c.b16 %v3621, %v3613
    %v3982 = vpack.c.b16 %v3622, %v3614
    %v3983 = vpack.c.b16 %v3623, %v3615
    %v3984 = vpack.c.b16 %v3632, %v3624
    %v3985 = vpack.c.b16 %v3633, %v3625
    %v3986 = vpack.c.b16 %v3634, %v3626
    %v3987 = vpack.c.b16 %v3635, %v3627
    %v3988 = vpack.c.b16 %v3636, %v3628
    %v3989 = vpack.c.b16 %v3637, %v3629
    %v3990 = vpack.c.b16 %v3638, %v3630
    %v3991 = vpack.c.b16 %v3639, %v3631
    %v3992 = vpack.c.b16 %v3648, %v3640
    %v3993 = vpack.c.b16 %v3649, %v3641
    %v3994 = vpack.c.b16 %v3650, %v3642
    %v3995 = vpack.c.b16 %v3651, %v3643
    %v3996 = vpack.c.b16 %v3652, %v3644
    %v3997 = vpack.c.b16 %v3653, %v3645
    %v3998 = vpack.c.b16 %v3654, %v3646
    %v3999 = vpack.c.b16 %v3655, %v3647
    %v4000 = vpack.c.b16 %v3664, %v3656
    %v4001 = vpack.c.b16 %v3665, %v3657
    %v4002 = vpack.c.b16 %v3666, %v3658
    %v4003 = vpack.c.b16 %v3667, %v3659
    %v4004 = vpack.c.b16 %v3668, %v3660
    %v4005 = vpack.c.b16 %v3669, %v3661
    %v4006 = vpack.c.b16 %v3670, %v3662
    %v4007 = vpack.c.b16 %v3671, %v3663
    %v4008 = vpack.c.b16 %v3680, %v3672
    %v4009 = vpack.c.b16 %v3681, %v3673
    %v4010 = vpack.c.b16 %v3682, %v3674
    %v4011 = vpack.c.b16 %v3683, %v3675
    %v4012 = vpack.c.b16 %v3684, %v3676
    %v4013 = vpack.c.b16 %v3685, %v3677
    %v4014 = vpack.c.b16 %v3686, %v3678
    %v4015 = vpack.c.b16 %v3687, %v3679
    %v4016 = vpack.c.b16 %v3696, %v3688
    %v4017 = vpack.c.b16 %v3697, %v3689
    %v4018 = vpack.c.b16 %v3698, %v3690
    %v4019 = vpack.c.b16 %v3699, %v3691
    %v4020 = vpack.c.b16 %v3700, %v3692
    %v4021 = vpack.c.b16 %v3701, %v3693
    %v4022 = vpack.c.b16 %v3702, %v3694
    %v4023 = vpack.c.b16 %v3703, %v3695
    %v4024 = vpack.c.b16 %v3712, %v3704
    %v4025 = vpack.c.b16 %v3713, %v3705
    %v4026 = vpack.c.b16 %v3714, %v3706
    %v4027 = vpack.c.b16 %v3715, %v3707
    %v4028 = vpack.c.b16 %v3716, %v3708
    %v4029 = vpack.c.b16 %v3717, %v3709
    %v4030 = vpack.c.b16 %v3718, %v3710
    %v4031 = vpack.c.b16 %v3719, %v3711
    %v4032 = vpack.c.b16 %v3728, %v3720
    %v4033 = vpack.c.b16 %v3729, %v3721
    %v4034 = vpack.c.b16 %v3730, %v3722
    %v4035 = vpack.c.b16 %v3731, %v3723
    %v4036 = vpack.c.b16 %v3732, %v3724
    %v4037 = vpack.c.b16 %v3733, %v3725
    %v4038 = vpack.c.b16 %v3734, %v3726
    %v4039 = vpack.c.b16 %v3735, %v3727
    %v4040 = vpack.c.b16 %v3744, %v3736
    %v4041 = vpack.c.b16 %v3745, %v3737
    %v4042 = vpack.c.b16 %v3746, %v3738
    %v4043 = vpack.c.b16 %v3747, %v3739
    %v4044 = vpack.c.b16 %v3748, %v3740
    %v4045 = vpack.c.b16 %v3749, %v3741
    %v4046 = vpack.c.b16 %v3750, %v3742
    %v4047 = vpack.c.b16 %v3751, %v3743
    %v4048 = vpack.c.b16 %v3760, %v3752
    %v4049 = vpack.c.b16 %v3761, %v3753
    %v4050 = vpack.c.b16 %v3762, %v3754
    %v4051 = vpack.c.b16 %v3763, %v3755
    %v4052 = vpack.c.b16 %v3764, %v3756
    %v4053 = vpack.c.b16 %v3765, %v3757
    %v4054 = vpack.c.b16 %v3766, %v3758
    %v4055 = vpack.c.b16 %v3767, %v3759
    %v4056 = vpack.c.b16 %v3776, %v3768
    %v4057 = vpack.c.b16 %v3777, %v3769
    %v4058 = vpack.c.b16 %v3778, %v3770
    %v4059 = vpack.c.b16 %v3779, %v3771
    %v4060 = vpack.c.b16 %v3780, %v3772
    %v4061 = vpack.c.b16 %v3781, %v3773
    %v4062 = vpack.c.b16 %v3782, %v3774
    %v4063 = vpack.c.b16 %v3783, %v3775
    %v4064 = vpack.c.b16 %v3792, %v3784
    %v4065 = vpack.c.b16 %v3793, %v3785
    %v4066 = vpack.c.b16 %v3794, %v3786
    %v4067 = vpack.c.b16 %v3795, %v3787
    %v4068 = vpack.c.b16 %v3796, %v3788
    %v4069 = vpack.c.b16 %v3797, %v3789
    %v4070 = vpack.c.b16 %v3798, %v3790
    %v4071 = vpack.c.b16 %v3799, %v3791
    %v4072 = vpack.c.b16 %v3808, %v3800
    %v4073 = vpack.c.b16 %v3809, %v3801
    %v4074 = vpack.c.b16 %v3810, %v3802
    %v4075 = vpack.c.b16 %v3811, %v3803
    %v4076 = vpack.c.b16 %v3812, %v3804
    %v4077 = vpack.c.b16 %v3813, %v3805
    %v4078 = vpack.c.b16 %v3814, %v3806
    %v4079 = vpack.c.b16 %v3815, %v3807
    %v4080 = vpack.c.b16 %v3824, %v3816
    %v4081 = vpack.c.b16 %v3825, %v3817
    %v4082 = vpack.c.b16 %v3826, %v3818
    %v4083 = vpack.c.b16 %v3827, %v3819
    %v4084 = vpack.c.b16 %v3828, %v3820
    %v4085 = vpack.c.b16 %v3829, %v3821
    %v4086 = vpack.c.b16 %v3830, %v3822
    %v4087 = vpack.c.b16 %v3831, %v3823
    %4344 = vmatprep.subr.bf16.mxu0 %v3889
    %4345 = vmatpush1.bf16.msra.mxu0 %v3888
    %4346 = vmatprep.subr.bf16.mxu0 %v3881
    %4347 = vmatpush1.bf16.msra.mxu0 %v3880
    %4348 = vmatprep.subr.bf16.mxu0 %v3873
    %4349 = vmatpush1.bf16.msra.mxu0 %v3872
    %4350 = vmatprep.subr.bf16.mxu0 %v3865
    %4351 = vmatpush1.bf16.msra.mxu0 %v3864
    %4352 = vmatprep.subr.bf16.mxu0 %v3857
    %4353 = vmatpush1.bf16.msra.mxu0 %v3856
    %4354 = vmatprep.subr.bf16.mxu0 %v3849
    %4355 = vmatpush1.bf16.msra.mxu0 %v3848
    %4356 = vmatprep.subr.bf16.mxu0 %v3841
    %4357 = vmatpush1.bf16.msra.mxu0 %v3840
    %4358 = vmatprep.subr.bf16.mxu0 %v3833
    %4359 = vmatpush1.bf16.msra.mxu0 %v3832
    %4360 = vmatprep.subr.bf16.mxu0 %v3953
    %4361 = vmatpush2.bf16.msra.mxu0 %v3952
    %4362 = vmatprep.subr.bf16.mxu0 %v3945
    %4363 = vmatpush2.bf16.msra.mxu0 %v3944
    %4364 = vmatprep.subr.bf16.mxu0 %v3937
    %4365 = vmatpush2.bf16.msra.mxu0 %v3936
    %4366 = vmatprep.subr.bf16.mxu0 %v3929
    %4367 = vmatpush2.bf16.msra.mxu0 %v3928
    %4368 = vmatprep.subr.bf16.mxu0 %v3921
    %4369 = vmatpush2.bf16.msra.mxu0 %v3920
    %4370 = vmatprep.subr.bf16.mxu0 %v3913
    %4371 = vmatpush2.bf16.msra.mxu0 %v3912
    %4372 = vmatprep.subr.bf16.mxu0 %v3905
    %4373 = vmatpush2.bf16.msra.mxu0 %v3904
    %4374 = vmatprep.subr.bf16.mxu0 %v3897
    %4375 = vmatpush2.bf16.msra.mxu0 %v3896
    %4376 = vmatprep.mubr.bf16.mxu0 %v2763
    %4377 = vmatmul.mubr.bf16.gmra.mxu0 %v2762
    %v4378 = vpop.f32.mrf.mxu0
    %v4379 = vadd.f32 %v3027, %v4378
    %v4380 = vpop.f32.mrf.mxu0
    %v4381 = vadd.f32 %v3031, %v4380
    %v4382 = vpop.f32.mrf.mxu0
    %v4383 = vadd.f32 %v3027, %v4382
    %v4384 = vpop.f32.mrf.mxu0
    %v4385 = vadd.f32 %v3031, %v4384
    %4386 = vdwg.mxu0
    %4387 = vmatprep.subr.bf16.mxu0 %v4017
    %4388 = vmatpush1.bf16.msra.mxu0 %v4016
    %4389 = vmatprep.subr.bf16.mxu0 %v4009
    %4390 = vmatpush1.bf16.msra.mxu0 %v4008
    %4391 = vmatprep.subr.bf16.mxu0 %v4001
    %4392 = vmatpush1.bf16.msra.mxu0 %v4000
    %4393 = vmatprep.subr.bf16.mxu0 %v3993
    %4394 = vmatpush1.bf16.msra.mxu0 %v3992
    %4395 = vmatprep.subr.bf16.mxu0 %v3985
    %4396 = vmatpush1.bf16.msra.mxu0 %v3984
    %4397 = vmatprep.subr.bf16.mxu0 %v3977
    %4398 = vmatpush1.bf16.msra.mxu0 %v3976
    %4399 = vmatprep.subr.bf16.mxu0 %v3969
    %4400 = vmatpush1.bf16.msra.mxu0 %v3968
    %4401 = vmatprep.subr.bf16.mxu0 %v3961
    %4402 = vmatpush1.bf16.msra.mxu0 %v3960
    %4403 = vmatprep.subr.bf16.mxu0 %v4081
    %4404 = vmatpush2.bf16.msra.mxu0 %v4080
    %4405 = vmatprep.subr.bf16.mxu0 %v4073
    %4406 = vmatpush2.bf16.msra.mxu0 %v4072
    %4407 = vmatprep.subr.bf16.mxu0 %v4065
    %4408 = vmatpush2.bf16.msra.mxu0 %v4064
    %4409 = vmatprep.subr.bf16.mxu0 %v4057
    %4410 = vmatpush2.bf16.msra.mxu0 %v4056
    %4411 = vmatprep.subr.bf16.mxu0 %v4049
    %4412 = vmatpush2.bf16.msra.mxu0 %v4048
    %4413 = vmatprep.subr.bf16.mxu0 %v4041
    %4414 = vmatpush2.bf16.msra.mxu0 %v4040
    %4415 = vmatprep.subr.bf16.mxu0 %v4033
    %4416 = vmatpush2.bf16.msra.mxu0 %v4032
    %4417 = vmatprep.subr.bf16.mxu0 %v4025
    %4418 = vmatpush2.bf16.msra.mxu0 %v4024
    %4419 = vmatprep.mubr.bf16.mxu0 %v2765
    %4420 = vmatmul.mubr.bf16.gmra.mxu0 %v2764
    %v4421 = vpop.f32.mrf.mxu0
    %v4422 = vadd.f32 %v4379, %v4421
    %v4423 = vpop.f32.mrf.mxu0
    %v4424 = vadd.f32 %v4381, %v4423
    %v4425 = vpop.f32.mrf.mxu0
    %v4426 = vadd.f32 %v4383, %v4425
    %v4427 = vpop.f32.mrf.mxu0
    %v4428 = vadd.f32 %v4385, %v4427
    %4429 = vdwg.mxu0
    %4430 = vmatprep.subr.bf16.mxu0 %v3891
    %4431 = vmatpush1.bf16.msra.mxu0 %v3890
    %4432 = vmatprep.subr.bf16.mxu0 %v3883
    %4433 = vmatpush1.bf16.msra.mxu0 %v3882
    %4434 = vmatprep.subr.bf16.mxu0 %v3875
    %4435 = vmatpush1.bf16.msra.mxu0 %v3874
    %4436 = vmatprep.subr.bf16.mxu0 %v3867
    %4437 = vmatpush1.bf16.msra.mxu0 %v3866
    %4438 = vmatprep.subr.bf16.mxu0 %v3859
    %4439 = vmatpush1.bf16.msra.mxu0 %v3858
    %4440 = vmatprep.subr.bf16.mxu0 %v3851
    %4441 = vmatpush1.bf16.msra.mxu0 %v3850
    %4442 = vmatprep.subr.bf16.mxu0 %v3843
    %4443 = vmatpush1.bf16.msra.mxu0 %v3842
    %4444 = vmatprep.subr.bf16.mxu0 %v3835
    %4445 = vmatpush1.bf16.msra.mxu0 %v3834
    %4446 = vmatprep.subr.bf16.mxu0 %v3955
    %4447 = vmatpush2.bf16.msra.mxu0 %v3954
    %4448 = vmatprep.subr.bf16.mxu0 %v3947
    %4449 = vmatpush2.bf16.msra.mxu0 %v3946
    %4450 = vmatprep.subr.bf16.mxu0 %v3939
    %4451 = vmatpush2.bf16.msra.mxu0 %v3938
    %4452 = vmatprep.subr.bf16.mxu0 %v3931
    %4453 = vmatpush2.bf16.msra.mxu0 %v3930
    %4454 = vmatprep.subr.bf16.mxu0 %v3923
    %4455 = vmatpush2.bf16.msra.mxu0 %v3922
    %4456 = vmatprep.subr.bf16.mxu0 %v3915
    %4457 = vmatpush2.bf16.msra.mxu0 %v3914
    %4458 = vmatprep.subr.bf16.mxu0 %v3907
    %4459 = vmatpush2.bf16.msra.mxu0 %v3906
    %4460 = vmatprep.subr.bf16.mxu0 %v3899
    %4461 = vmatpush2.bf16.msra.mxu0 %v3898
    %4462 = vmatprep.mubr.bf16.mxu0 %v2763
    %4463 = vmatmul.mubr.bf16.gmra.mxu0 %v2762
    %v4464 = vpop.f32.mrf.mxu0
    %v4465 = vadd.f32 %v3035, %v4464
    %v4466 = vpop.f32.mrf.mxu0
    %v4467 = vadd.f32 %v3039, %v4466
    %v4468 = vpop.f32.mrf.mxu0
    %v4469 = vadd.f32 %v3035, %v4468
    %v4470 = vpop.f32.mrf.mxu0
    %v4471 = vadd.f32 %v3039, %v4470
    %4472 = vdwg.mxu0
    %4473 = vmatprep.subr.bf16.mxu0 %v4019
    %4474 = vmatpush1.bf16.msra.mxu0 %v4018
    %4475 = vmatprep.subr.bf16.mxu0 %v4011
    %4476 = vmatpush1.bf16.msra.mxu0 %v4010
    %4477 = vmatprep.subr.bf16.mxu0 %v4003
    %4478 = vmatpush1.bf16.msra.mxu0 %v4002
    %4479 = vmatprep.subr.bf16.mxu0 %v3995
    %4480 = vmatpush1.bf16.msra.mxu0 %v3994
    %4481 = vmatprep.subr.bf16.mxu0 %v3987
    %4482 = vmatpush1.bf16.msra.mxu0 %v3986
    %4483 = vmatprep.subr.bf16.mxu0 %v3979
    %4484 = vmatpush1.bf16.msra.mxu0 %v3978
    %4485 = vmatprep.subr.bf16.mxu0 %v3971
    %4486 = vmatpush1.bf16.msra.mxu0 %v3970
    %4487 = vmatprep.subr.bf16.mxu0 %v3963
    %4488 = vmatpush1.bf16.msra.mxu0 %v3962
    %4489 = vmatprep.subr.bf16.mxu0 %v4083
    %4490 = vmatpush2.bf16.msra.mxu0 %v4082
    %4491 = vmatprep.subr.bf16.mxu0 %v4075
    %4492 = vmatpush2.bf16.msra.mxu0 %v4074
    %4493 = vmatprep.subr.bf16.mxu0 %v4067
    %4494 = vmatpush2.bf16.msra.mxu0 %v4066
    %4495 = vmatprep.subr.bf16.mxu0 %v4059
    %4496 = vmatpush2.bf16.msra.mxu0 %v4058
    %4497 = vmatprep.subr.bf16.mxu0 %v4051
    %4498 = vmatpush2.bf16.msra.mxu0 %v4050
    %4499 = vmatprep.subr.bf16.mxu0 %v4043
    %4500 = vmatpush2.bf16.msra.mxu0 %v4042
    %4501 = vmatprep.subr.bf16.mxu0 %v4035
    %4502 = vmatpush2.bf16.msra.mxu0 %v4034
    %4503 = vmatprep.subr.bf16.mxu0 %v4027
    %4504 = vmatpush2.bf16.msra.mxu0 %v4026
    %4505 = vmatprep.mubr.bf16.mxu0 %v2765
    %4506 = vmatmul.mubr.bf16.gmra.mxu0 %v2764
    %v4507 = vpop.f32.mrf.mxu0
    %v4508 = vadd.f32 %v4465, %v4507
    %v4509 = vpop.f32.mrf.mxu0
    %v4510 = vadd.f32 %v4467, %v4509
    %v4511 = vpop.f32.mrf.mxu0
    %v4512 = vadd.f32 %v4469, %v4511
    %v4513 = vpop.f32.mrf.mxu0
    %v4514 = vadd.f32 %v4471, %v4513
    %4515 = vdwg.mxu0
    %4516 = vmatprep.subr.bf16.mxu0 %v3893
    %4517 = vmatpush1.bf16.msra.mxu0 %v3892
    %4518 = vmatprep.subr.bf16.mxu0 %v3885
    %4519 = vmatpush1.bf16.msra.mxu0 %v3884
    %4520 = vmatprep.subr.bf16.mxu0 %v3877
    %4521 = vmatpush1.bf16.msra.mxu0 %v3876
    %4522 = vmatprep.subr.bf16.mxu0 %v3869
    %4523 = vmatpush1.bf16.msra.mxu0 %v3868
    %4524 = vmatprep.subr.bf16.mxu0 %v3861
    %4525 = vmatpush1.bf16.msra.mxu0 %v3860
    %4526 = vmatprep.subr.bf16.mxu0 %v3853
    %4527 = vmatpush1.bf16.msra.mxu0 %v3852
    %4528 = vmatprep.subr.bf16.mxu0 %v3845
    %4529 = vmatpush1.bf16.msra.mxu0 %v3844
    %4530 = vmatprep.subr.bf16.mxu0 %v3837
    %4531 = vmatpush1.bf16.msra.mxu0 %v3836
    %4532 = vmatprep.subr.bf16.mxu0 %v3957
    %4533 = vmatpush2.bf16.msra.mxu0 %v3956
    %4534 = vmatprep.subr.bf16.mxu0 %v3949
    %4535 = vmatpush2.bf16.msra.mxu0 %v3948
    %4536 = vmatprep.subr.bf16.mxu0 %v3941
    %4537 = vmatpush2.bf16.msra.mxu0 %v3940
    %4538 = vmatprep.subr.bf16.mxu0 %v3933
    %4539 = vmatpush2.bf16.msra.mxu0 %v3932
    %4540 = vmatprep.subr.bf16.mxu0 %v3925
    %4541 = vmatpush2.bf16.msra.mxu0 %v3924
    %4542 = vmatprep.subr.bf16.mxu0 %v3917
    %4543 = vmatpush2.bf16.msra.mxu0 %v3916
    %4544 = vmatprep.subr.bf16.mxu0 %v3909
    %4545 = vmatpush2.bf16.msra.mxu0 %v3908
    %4546 = vmatprep.subr.bf16.mxu0 %v3901
    %4547 = vmatpush2.bf16.msra.mxu0 %v3900
    %4548 = vmatprep.mubr.bf16.mxu0 %v2763
    %4549 = vmatmul.mubr.bf16.gmra.mxu0 %v2762
    %v4550 = vpop.f32.mrf.mxu0
    %v4551 = vadd.f32 %v3043, %v4550
    %v4552 = vpop.f32.mrf.mxu0
    %v4553 = vadd.f32 %v3047, %v4552
    %v4554 = vpop.f32.mrf.mxu0
    %v4555 = vadd.f32 %v3043, %v4554
    %v4556 = vpop.f32.mrf.mxu0
    %v4557 = vadd.f32 %v3047, %v4556
    %4558 = vdwg.mxu0
    %4559 = vmatprep.subr.bf16.mxu0 %v4021
    %4560 = vmatpush1.bf16.msra.mxu0 %v4020
    %4561 = vmatprep.subr.bf16.mxu0 %v4013
    %4562 = vmatpush1.bf16.msra.mxu0 %v4012
    %4563 = vmatprep.subr.bf16.mxu0 %v4005
    %4564 = vmatpush1.bf16.msra.mxu0 %v4004
    %4565 = vmatprep.subr.bf16.mxu0 %v3997
    %4566 = vmatpush1.bf16.msra.mxu0 %v3996
    %4567 = vmatprep.subr.bf16.mxu0 %v3989
    %4568 = vmatpush1.bf16.msra.mxu0 %v3988
    %4569 = vmatprep.subr.bf16.mxu0 %v3981
    %4570 = vmatpush1.bf16.msra.mxu0 %v3980
    %4571 = vmatprep.subr.bf16.mxu0 %v3973
    %4572 = vmatpush1.bf16.msra.mxu0 %v3972
    %4573 = vmatprep.subr.bf16.mxu0 %v3965
    %4574 = vmatpush1.bf16.msra.mxu0 %v3964
    %4575 = vmatprep.subr.bf16.mxu0 %v4085
    %4576 = vmatpush2.bf16.msra.mxu0 %v4084
    %4577 = vmatprep.subr.bf16.mxu0 %v4077
    %4578 = vmatpush2.bf16.msra.mxu0 %v4076
    %4579 = vmatprep.subr.bf16.mxu0 %v4069
    %4580 = vmatpush2.bf16.msra.mxu0 %v4068
    %4581 = vmatprep.subr.bf16.mxu0 %v4061
    %4582 = vmatpush2.bf16.msra.mxu0 %v4060
    %4583 = vmatprep.subr.bf16.mxu0 %v4053
    %4584 = vmatpush2.bf16.msra.mxu0 %v4052
    %4585 = vmatprep.subr.bf16.mxu0 %v4045
    %4586 = vmatpush2.bf16.msra.mxu0 %v4044
    %4587 = vmatprep.subr.bf16.mxu0 %v4037
    %4588 = vmatpush2.bf16.msra.mxu0 %v4036
    %4589 = vmatprep.subr.bf16.mxu0 %v4029
    %4590 = vmatpush2.bf16.msra.mxu0 %v4028
    %4591 = vmatprep.mubr.bf16.mxu0 %v2765
    %4592 = vmatmul.mubr.bf16.gmra.mxu0 %v2764
    %v4593 = vpop.f32.mrf.mxu0
    %v4594 = vadd.f32 %v4551, %v4593
    %v4595 = vpop.f32.mrf.mxu0
    %v4596 = vadd.f32 %v4553, %v4595
    %v4597 = vpop.f32.mrf.mxu0
    %v4598 = vadd.f32 %v4555, %v4597
    %v4599 = vpop.f32.mrf.mxu0
    %v4600 = vadd.f32 %v4557, %v4599
    %4601 = vdwg.mxu0
    %4602 = vmatprep.subr.bf16.mxu0 %v3895
    %4603 = vmatpush1.bf16.msra.mxu0 %v3894
    %4604 = vmatprep.subr.bf16.mxu0 %v3887
    %4605 = vmatpush1.bf16.msra.mxu0 %v3886
    %4606 = vmatprep.subr.bf16.mxu0 %v3879
    %4607 = vmatpush1.bf16.msra.mxu0 %v3878
    %4608 = vmatprep.subr.bf16.mxu0 %v3871
    %4609 = vmatpush1.bf16.msra.mxu0 %v3870
    %4610 = vmatprep.subr.bf16.mxu0 %v3863
    %4611 = vmatpush1.bf16.msra.mxu0 %v3862
    %4612 = vmatprep.subr.bf16.mxu0 %v3855
    %4613 = vmatpush1.bf16.msra.mxu0 %v3854
    %4614 = vmatprep.subr.bf16.mxu0 %v3847
    %4615 = vmatpush1.bf16.msra.mxu0 %v3846
    %4616 = vmatprep.subr.bf16.mxu0 %v3839
    %4617 = vmatpush1.bf16.msra.mxu0 %v3838
    %4618 = vmatprep.subr.bf16.mxu0 %v3959
    %4619 = vmatpush2.bf16.msra.mxu0 %v3958
    %4620 = vmatprep.subr.bf16.mxu0 %v3951
    %4621 = vmatpush2.bf16.msra.mxu0 %v3950
    %4622 = vmatprep.subr.bf16.mxu0 %v3943
    %4623 = vmatpush2.bf16.msra.mxu0 %v3942
    %4624 = vmatprep.subr.bf16.mxu0 %v3935
    %4625 = vmatpush2.bf16.msra.mxu0 %v3934
    %4626 = vmatprep.subr.bf16.mxu0 %v3927
    %4627 = vmatpush2.bf16.msra.mxu0 %v3926
    %4628 = vmatprep.subr.bf16.mxu0 %v3919
    %4629 = vmatpush2.bf16.msra.mxu0 %v3918
    %4630 = vmatprep.subr.bf16.mxu0 %v3911
    %4631 = vmatpush2.bf16.msra.mxu0 %v3910
    %4632 = vmatprep.subr.bf16.mxu0 %v3903
    %4633 = vmatpush2.bf16.msra.mxu0 %v3902
    %4634 = vmatprep.mubr.bf16.mxu0 %v2763
    %4635 = vmatmul.mubr.bf16.gmra.mxu0 %v2762
    %v4636 = vpop.f32.mrf.mxu0
    %v4637 = vadd.f32 %v3051, %v4636
    %v4638 = vpop.f32.mrf.mxu0
    %v4639 = vadd.f32 %v3055, %v4638
    %v4640 = vpop.f32.mrf.mxu0
    %v4641 = vadd.f32 %v3051, %v4640
    %v4642 = vpop.f32.mrf.mxu0
    %v4643 = vadd.f32 %v3055, %v4642
    %4644 = vdwg.mxu0
    %4645 = vmatprep.subr.bf16.mxu0 %v4023
    %4646 = vmatpush1.bf16.msra.mxu0 %v4022
    %4647 = vmatprep.subr.bf16.mxu0 %v4015
    %4648 = vmatpush1.bf16.msra.mxu0 %v4014
    %4649 = vmatprep.subr.bf16.mxu0 %v4007
    %4650 = vmatpush1.bf16.msra.mxu0 %v4006
    %4651 = vmatprep.subr.bf16.mxu0 %v3999
    %4652 = vmatpush1.bf16.msra.mxu0 %v3998
    %4653 = vmatprep.subr.bf16.mxu0 %v3991
    %4654 = vmatpush1.bf16.msra.mxu0 %v3990
    %4655 = vmatprep.subr.bf16.mxu0 %v3983
    %4656 = vmatpush1.bf16.msra.mxu0 %v3982
    %4657 = vmatprep.subr.bf16.mxu0 %v3975
    %4658 = vmatpush1.bf16.msra.mxu0 %v3974
    %4659 = vmatprep.subr.bf16.mxu0 %v3967
    %4660 = vmatpush1.bf16.msra.mxu0 %v3966
    %4661 = vmatprep.subr.bf16.mxu0 %v4087
    %4662 = vmatpush2.bf16.msra.mxu0 %v4086
    %4663 = vmatprep.subr.bf16.mxu0 %v4079
    %4664 = vmatpush2.bf16.msra.mxu0 %v4078
    %4665 = vmatprep.subr.bf16.mxu0 %v4071
    %4666 = vmatpush2.bf16.msra.mxu0 %v4070
    %4667 = vmatprep.subr.bf16.mxu0 %v4063
    %4668 = vmatpush2.bf16.msra.mxu0 %v4062
    %4669 = vmatprep.subr.bf16.mxu0 %v4055
    %4670 = vmatpush2.bf16.msra.mxu0 %v4054
    %4671 = vmatprep.subr.bf16.mxu0 %v4047
    %4672 = vmatpush2.bf16.msra.mxu0 %v4046
    %4673 = vmatprep.subr.bf16.mxu0 %v4039
    %4674 = vmatpush2.bf16.msra.mxu0 %v4038
    %4675 = vmatprep.subr.bf16.mxu0 %v4031
    %4676 = vmatpush2.bf16.msra.mxu0 %v4030
    %4677 = vmatprep.mubr.bf16.mxu0 %v2765
    %4678 = vmatmul.mubr.bf16.gmra.mxu0 %v2764
    %v4679 = vpop.f32.mrf.mxu0
    %v4680 = vadd.f32 %v4637, %v4679
    %v4681 = vpop.f32.mrf.mxu0
    %v4682 = vadd.f32 %v4639, %v4681
    %v4683 = vpop.f32.mrf.mxu0
    %v4684 = vadd.f32 %v4641, %v4683
    %v4685 = vpop.f32.mrf.mxu0
    %v4686 = vadd.f32 %v4643, %v4685
    %4687 = vdwg.mxu0
    %v4688 = vpack.c.bf16 %v4426, %v4422
    %v4689 = vpack.c.bf16 %v4428, %v4424
    %v4690 = vpack.c.bf16 %v4512, %v4508
    %v4691 = vpack.c.bf16 %v4514, %v4510
    %v4692 = vpack.c.bf16 %v4598, %v4594
    %v4693 = vpack.c.bf16 %v4600, %v4596
    %v4694 = vpack.c.bf16 %v4684, %v4680
    %v4695 = vpack.c.bf16 %v4686, %v4682
    %v4704 = vunpack.c.l.b16 %v4688
    %v4705 = vunpack.c.l.b16 %v4689
    %v4706 = vunpack.c.l.b16 %v4690
    %v4707 = vunpack.c.l.b16 %v4691
    %v4708 = vunpack.c.l.b16 %v4692
    %v4709 = vunpack.c.l.b16 %v4693
    %v4710 = vunpack.c.l.b16 %v4694
    %v4711 = vunpack.c.l.b16 %v4695
    %v4712 = vunpack.c.h.b16 %v4688
    %v4713 = vunpack.c.h.b16 %v4689
    %v4714 = vunpack.c.h.b16 %v4690
    %v4715 = vunpack.c.h.b16 %v4691
    %v4716 = vunpack.c.h.b16 %v4692
    %v4717 = vunpack.c.h.b16 %v4693
    %v4718 = vunpack.c.h.b16 %v4694
    %v4719 = vunpack.c.h.b16 %v4695
    %v4720 = vpack.c.b16 %v4705, %v4704
    %v4721 = vpack.c.b16 %v4707, %v4706
    %v4722 = vpack.c.b16 %v4709, %v4708
    %v4723 = vpack.c.b16 %v4711, %v4710
    %v4724 = vpack.c.b16 %v4713, %v4712
    %v4725 = vpack.c.b16 %v4715, %v4714
    %v4726 = vpack.c.b16 %v4717, %v4716
    %v4727 = vpack.c.b16 %v4719, %v4718
    %4736 = vst [vmem:[#allocation13] sm:$0xff] %v4720
    %4737 = vst [vmem:[#allocation13 + $0x8] sm:$0xff] %v4721
    %4738 = vst [vmem:[#allocation13 + $0x10] sm:$0xff] %v4722
    %4739 = vst [vmem:[#allocation13 + $0x18] sm:$0xff] %v4723
    %4740 = vst [vmem:[#allocation13 + $0x20] sm:$0xff] %v4724
    %4741 = vst [vmem:[#allocation13 + $0x28] sm:$0xff] %v4725
    %4742 = vst [vmem:[#allocation13 + $0x30] sm:$0xff] %v4726
    %4743 = vst [vmem:[#allocation13 + $0x38] sm:$0xff] %v4727
    // Predicated region
    $region62: #{tpu_custom_call.1} parent=1 // pred_check
      _
    $region63: #{tpu_custom_call.1} parent=1 // pred_check_branch
      %4745 = sbr.rel (0) target = $region65
    $region64: #{tpu_custom_call.1} parent=1 // pred_region
      %s4747 = ssub.s32 1024, 1024
      %4748 = vsyncadd [#allocation4], %s4747
      %s4749 = sshll.u32 [#allocation13], 4
      %s4750 = int_to_ptr.vmem [resolvable:$true] %s4749
      %4755 = dma.vmem_to_hbm [thread:$0]  %s4750, 1024, %s9, [#allocation4], 512, 512, 32
    $region65: #{tpu_custom_call.1} parent=1 // pred_fallthru
      _
    // Predicated region
    $region66: #{tpu_custom_call.1} parent=1 // pred_check
      _
    $region67: #{tpu_custom_call.1} parent=1 // pred_check_branch
      %4757 = sbr.rel (0) target = $region69
    $region68: #{tpu_custom_call.1} parent=1 // pred_region
      %4758 = dma.done [#allocation4], 1024
    $region69: #{tpu_custom_call.1} parent=1 // pred_fallthru
      _
    %4759 = vsyncpa [#allocation3], 1
    %4760 = vsyncpa [#allocation6], 1
    %4761 = vsyncpa [#allocation9], 1
    %4762 = vsyncpa [#allocation12], 1
    %4763 = vsyncpa [#allocation4], 1

</llo_original>
